<compile_context>
chip_gen: v7x
topology: tpu7x:2x2x1
jax: 0.10.0
libtpu: 0.0.40
codegen_flags: <defaults>
</compile_context>

<pallas_src>
import functools

import jax
import jax.numpy as jnp
from jax.experimental import pallas as pl
from jax.experimental.pallas import tpu as pltpu


def _detect_vmem_limit():
    """Generation-aware scoped-VMEM request (v5e/v6e: 128 MiB physical, v7x: 64 MiB)."""
    try:
        cap = int(getattr(pltpu.get_tpu_info(), "vmem_capacity_bytes", 64 * 1024 * 1024))
    except Exception:
        cap = 64 * 1024 * 1024
    return int(min(cap - cap // 4, 100 * 1024 * 1024))


_VMEM_LIMIT = _detect_vmem_limit()
# Spikes are exactly 0/1 -> int8 HBM storage is lossless and halves spike traffic.
# TODO(synk): on v7x an fp8 dtype (and fp8 weights) would additionally unlock the fp8 MXU rate.
_SPIKE_DTYPE = jnp.int8


def _round_tile(total, target):
    """Largest row tile <= target dividing `total`; prefer multiples of 32 (packed spike
    dtypes), then 8; else the full dim."""
    target = int(min(target, total))
    if target >= total:
        return total
    for step in (32, 8):
        cand = (target // step) * step
        while cand >= step:
            if total % cand == 0:
                return cand
            cand -= step
    return total


def _tile_rows(total, per_row_bytes, fixed_bytes, cap=512):
    """Row tile sized so pipeline buffers + scratch stay within ~half the VMEM budget."""
    avail = max((_VMEM_LIMIT // 2) - fixed_bytes, 1 << 20)
    return _round_tile(total, min(cap, max(32, avail // max(per_row_bytes, 1))))


def _pick_tile_b(B, target=8):
    """Batch items folded into one attention grid step (amortizes ~600-cycle step cost)."""
    for cand in range(min(B, target), 0, -1):
        if B % cand == 0:
            return cand
    return 1


# ------------------- Stage 1: fused Linear + BN + LIF (q/k/v projection) -------------------

def _linear_bn_lif_kernel(x_ref, w_ref, s_ref, b_ref, o_ref, v_ref, *, tau, vth):
    t = pl.program_id(1)

    @pl.when(t == 0)
    def _():
        v_ref[...] = jnp.zeros_like(v_ref)

    lhs = x_ref[0].astype(w_ref.dtype)                       # bf16 matmul operand
    y = jnp.dot(lhs, w_ref[...], preferred_element_type=jnp.float32)
    y = y * s_ref[...] + b_ref[...]                          # folded eval-mode BN (+ bias), f32
    v = v_ref[...]
    h = v + (y - v) * (1.0 / tau)                            # LIF charge (decay_input, tau=2)
    spk = (h >= vth).astype(jnp.float32)
    o_ref[0] = spk.astype(o_ref.dtype)                       # 0/1 -> int8 spike slab
    v_ref[...] = h * (1.0 - spk)                             # hard reset to 0


def linear_bn_lif(x, w, scale, bias, *, vth=1.0, tau=2.0, out_dtype=_SPIKE_DTYPE):
    """y = (x @ W) * scale + bias -> multi-step LIF spikes.
    x: (T, M, Cin) f32;  w: (Cin, Cout) bf16;  scale/bias: (Cout,) f32.  Out: (T, M, Cout)."""
    T, M, Cin = x.shape
    Cout = w.shape[1]
    out_bytes = jnp.dtype(out_dtype).itemsize
    per_row = 8 * Cin + 2 * out_bytes * Cout + 4 * Cout      # x dbl-buf + out dbl-buf + membrane
    fixed = 4 * Cin * Cout                                   # bf16 weight, double-buffered
    tile_m = _tile_rows(M, per_row, fixed)

    s2 = scale.reshape(1, Cout).astype(jnp.float32)
    b2 = bias.reshape(1, Cout).astype(jnp.float32)

    return pl.pallas_call(
        functools.partial(_linear_bn_lif_kernel, tau=tau, vth=vth),
        out_shape=jax.ShapeDtypeStruct((T, M, Cout), out_dtype),
        grid=(M // tile_m, T),            # rows "parallel", T innermost "arbitrary" (LIF state)
        in_specs=[pl.BlockSpec((1, tile_m, Cin), lambda m, t: (t, m, 0)),
                  pl.BlockSpec((Cin, Cout), lambda m, t: (0, 0)),
                  pl.BlockSpec((1, Cout), lambda m, t: (0, 0)),
                  pl.BlockSpec((1, Cout), lambda m, t: (0, 0))],
        out_specs=pl.BlockSpec((1, tile_m, Cout), lambda m, t: (t, m, 0)),
        scratch_shapes=[pltpu.VMEM((tile_m, Cout), jnp.float32)],   # fused q/k/v membranes
        compiler_params=pltpu.CompilerParams(
            dimension_semantics=("parallel", "arbitrary"),
            vmem_limit_bytes=_VMEM_LIMIT),
    )(x, w, s2, b2)


# ---- Stage 2: attention (all heads) + attn_lif + proj Linear+BN+LIF + residual, fused ----

def _ssa_attn_proj_kernel(qkv_ref, x_ref, wp_ref, sp_ref, bp_ref,
                          attn_ref, out_ref, vm_a_ref, vm_p_ref,
                          *, num_heads, b_tile, scale, tau, vth_attn, vth_proj):
    t = pl.program_id(1)

    @pl.when(t == 0)
    def _():
        vm_a_ref[...] = jnp.zeros_like(vm_a_ref)
        vm_p_ref[...] = jnp.zeros_like(vm_p_ref)

    N = qkv_ref.shape[2]
    C3 = qkv_ref.shape[3]
    C = C3 // 3
    D = C // num_heads

    ctx_rows = []
    for b in range(b_tile):                                   # static unrolled batch loop
        r = qkv_ref[0, b].astype(jnp.float32).astype(jnp.bfloat16)   # (N, 3C) 0/1 spikes
        ctx_cols = []
        for h in range(num_heads):                            # per-head 2-D dots (no head einsum)
            qh = r[:, h * D:(h + 1) * D]
            kh = r[:, C + h * D:C + (h + 1) * D]
            vh = r[:, 2 * C + h * D:2 * C + (h + 1) * D]
            s = jnp.dot(qh, kh.T, preferred_element_type=jnp.float32) * scale   # (N, N)
            attn_ref[0, b, h] = s.astype(attn_ref.dtype)      # exact multiples of 0.125 in bf16
            ctx_cols.append(jnp.dot(s.astype(jnp.bfloat16), vh,
                                    preferred_element_type=jnp.float32))        # (N, D)
        ctx_rows.append(jnp.concatenate(ctx_cols, axis=1))    # (N, C) == torch .transpose(2, 3)
    ctx = jnp.concatenate(ctx_rows, axis=0)                   # (b_tile*N, C)

    # attn_lif (v_threshold = 0.5), membrane carried across T in VMEM scratch.
    va = vm_a_ref[...]
    ha = va + (ctx - va) * (1.0 / tau)
    spk_a = (ha >= vth_attn).astype(jnp.float32)
    vm_a_ref[...] = ha * (1.0 - spk_a)

    # proj Linear + BN + LIF + residual x, fused epilogue (one matmul for the whole tile).
    y = jnp.dot(spk_a.astype(wp_ref.dtype), wp_ref[...], preferred_element_type=jnp.float32)
    y = y * sp_ref[...] + bp_ref[...]
    vp = vm_p_ref[...]
    hp = vp + (y - vp) * (1.0 / tau)
    spk_p = (hp >= vth_proj).astype(jnp.float32)
    vm_p_ref[...] = hp * (1.0 - spk_p)

    out_ref[0] = x_ref[0] + spk_p.reshape(b_tile, N, C)       # x + x_attn


def ssa_attention_proj(qkv, x, proj, *, num_heads, scale=0.125, tau=2.0,
                       vth_attn=0.5, vth_proj=1.0, attn_dtype=jnp.bfloat16):
    """qkv: (T, B, N, 3C) spike slab (int8); x: (T, B, N, C) residual input.
    Returns (attn (T,B,H,N,N) bf16, x + x_attn (T,B,N,C) f32)."""
    T, B, N, C3 = qkv.shape
    C = C3 // 3
    H = num_heads
    assert C % H == 0
    assert C // H <= 256, "bf16 attn storage only lossless for head_dim <= 256"
    b_tile = _pick_tile_b(B)

    sp = proj["scale"].reshape(1, C).astype(jnp.float32)
    bp = proj["bias"].reshape(1, C).astype(jnp.float32)

    kernel = functools.partial(_ssa_attn_proj_kernel, num_heads=H, b_tile=b_tile,
                               scale=scale, tau=tau,
                               vth_attn=vth_attn, vth_proj=vth_proj)
    return pl.pallas_call(
        kernel,
        out_shape=(jax.ShapeDtypeStruct((T, B, H, N, N), attn_dtype),
                   jax.ShapeDtypeStruct((T, B, N, C), jnp.float32)),
        grid=(B // b_tile, T),            # batch groups "parallel", T innermost (LIF states)
        in_specs=[pl.BlockSpec((1, b_tile, N, C3), lambda b, t: (t, b, 0, 0)),
                  pl.BlockSpec((1, b_tile, N, C), lambda b, t: (t, b, 0, 0)),
                  pl.BlockSpec((C, C), lambda b, t: (0, 0)),
                  pl.BlockSpec((1, C), lambda b, t: (0, 0)),
                  pl.BlockSpec((1, C), lambda b, t: (0, 0))],
        out_specs=(pl.BlockSpec((1, b_tile, H, N, N), lambda b, t: (t, b, 0, 0, 0)),
                   pl.BlockSpec((1, b_tile, N, C), lambda b, t: (t, b, 0, 0))),
        scratch_shapes=[pltpu.VMEM((b_tile * N, C), jnp.float32),   # attn_lif membrane
                        pltpu.VMEM((b_tile * N, C), jnp.float32)],  # proj_lif membrane
        compiler_params=pltpu.CompilerParams(
            dimension_semantics=("parallel", "arbitrary"),
            vmem_limit_bytes=_VMEM_LIMIT),
    )(qkv, x, proj["w"], sp, bp)


# --------------- Stage 3: fused MLP (fc1+BN+LIF -> fc2+BN+LIF) + x1 residual ---------------

def _mlp_fused_kernel(x_ref, w1_ref, s1_ref, b1_ref, w2_ref, s2_ref, b2_ref,
                      o_ref, v1_ref, v2_ref, *, tau, vth):
    t = pl.program_id(1)

    @pl.when(t == 0)
    def _():
        v1_ref[...] = jnp.zeros_like(v1_ref)
        v2_ref[...] = jnp.zeros_like(v2_ref)

    xin = x_ref[0]                                            # (tile_m, C) f32 (== residual)

    y1 = jnp.dot(xin.astype(w1_ref.dtype), w1_ref[...], preferred_element_type=jnp.float32)
    y1 = y1 * s1_ref[...] + b1_ref[...]
    v1 = v1_ref[...]
    h1 = v1 + (y1 - v1) * (1.0 / tau)
    spk1 = (h1 >= vth).astype(jnp.float32)                    # hidden spikes stay in VMEM
    v1_ref[...] = h1 * (1.0 - spk1)

    y2 = jnp.dot(spk1.astype(w2_ref.dtype), w2_ref[...], preferred_element_type=jnp.float32)
    y2 = y2 * s2_ref[...] + b2_ref[...]
    v2 = v2_ref[...]
    h2 = v2 + (y2 - v2) * (1.0 / tau)
    spk2 = (h2 >= vth).astype(jnp.float32)
    v2_ref[...] = h2 * (1.0 - spk2)

    o_ref[0] = xin + spk2                                     # x1 + mlp(x1), f32


def mlp_fused(x, fc1, fc2, *, tau=2.0, vth=1.0):
    """x: (T, M, C) f32 -> (T, M, C) f32 = x + MLP(x); hidden spikes never leave VMEM."""
    T, M, C = x.shape
    hidden = fc1["w"].shape[1]
    per_row = 8 * C + 8 * C + 4 * hidden + 4 * C              # x dbl, out dbl, two membranes
    fixed = 4 * (C * hidden + hidden * C)                     # both bf16 weights, dbl-buffered
    tile_m = _tile_rows(M, per_row, fixed)

    s1 = fc1["scale"].reshape(1, hidden).astype(jnp.float32)
    b1 = fc1["bias"].reshape(1, hidden).astype(jnp.float32)
    s2 = fc2["scale"].reshape(1, C).astype(jnp.float32)
    b2 = fc2["bias"].reshape(1, C).astype(jnp.float32)

    return pl.pallas_call(
        functools.partial(_mlp_fused_kernel, tau=tau, vth=vth),
        out_shape=jax.ShapeDtypeStruct((T, M, C), jnp.float32),
        grid=(M // tile_m, T),
        in_specs=[pl.BlockSpec((1, tile_m, C), lambda m, t: (t, m, 0)),
                  pl.BlockSpec((C, hidden), lambda m, t: (0, 0)),
                  pl.BlockSpec((1, hidden), lambda m, t: (0, 0)),
                  pl.BlockSpec((1, hidden), lambda m, t: (0, 0)),
                  pl.BlockSpec((hidden, C), lambda m, t: (0, 0)),
                  pl.BlockSpec((1, C), lambda m, t: (0, 0)),
                  pl.BlockSpec((1, C), lambda m, t: (0, 0))],
        out_specs=pl.BlockSpec((1, tile_m, C), lambda m, t: (t, m, 0)),
        scratch_shapes=[pltpu.VMEM((tile_m, hidden), jnp.float32),  # fc1_lif membrane
                        pltpu.VMEM((tile_m, C), jnp.float32)],      # fc2_lif membrane
        compiler_params=pltpu.CompilerParams(
            dimension_semantics=("parallel", "arbitrary"),
            vmem_limit_bytes=_VMEM_LIMIT),
    )(x, fc1["w"], s1, b1, fc2["w"], s2, b2)


# ------------------------------- parameter setup -------------------------------------

def init_linear_bn(key, cin, cout, w_dtype=jnp.bfloat16):
    """Deterministic Linear + eval-mode BatchNorm1d, folded to (W, scale, bias)."""
    k1, k2, k3, k4, k5, k6 = jax.random.split(key, 6)
    w = jax.random.normal(k1, (cin, cout), jnp.float32) * 0.2
    b_lin = jax.random.normal(k2, (cout,), jnp.float32) * 0.05
    gamma = 1.0 + 0.1 * jax.random.normal(k3, (cout,), jnp.float32)
    beta = 0.1 * jax.random.normal(k4, (cout,), jnp.float32)
    run_mean = 0.05 * jax.random.normal(k5, (cout,), jnp.float32)
    run_var = 1.0 + 0.1 * jax.random.uniform(k6, (cout,), jnp.float32)
    eps = 1e-5
    scale = gamma / jnp.sqrt(run_var + eps)
    bias = (b_lin - run_mean) * scale + beta
    return {"w": w.astype(w_dtype), "scale": scale, "bias": bias}


def init_block_params(key, dim, num_heads, mlp_ratio=4.0):
    assert dim % num_heads == 0
    kq, kk, kv, kp, k1, k2 = jax.random.split(key, 6)
    pq = init_linear_bn(kq, dim, dim)
    pk = init_linear_bn(kk, dim, dim)
    pv = init_linear_bn(kv, dim, dim)
    # Fuse q/k/v into a single (C, 3C) projection (channel order: [q | k | v]).
    qkv = {"w": jnp.concatenate([pq["w"], pk["w"], pv["w"]], axis=1),
           "scale": jnp.concatenate([pq["scale"], pk["scale"], pv["scale"]]),
           "bias": jnp.concatenate([pq["bias"], pk["bias"], pv["bias"]])}
    hidden = int(dim * mlp_ratio)
    return {
        "num_heads": num_heads,
        "qkv": qkv,
        "proj": init_linear_bn(kp, dim, dim),
        "fc1": init_linear_bn(k1, dim, hidden),
        "fc2": init_linear_bn(k2, hidden, dim),
    }


# --------------------------------- Block forward -------------------------------------

def block_forward(x, params):
    T, B, N, C = x.shape
    H = params["num_heads"]
    M = B * N
    x = x.astype(jnp.float32)
    xf = x.reshape(T, M, C)

    # ---- SSA: fused q/k/v projection (q/k/v/attn LIFs: tau=2, v_th=1) -> int8 spike slab.
    qkv = linear_bn_lif(xf, params["qkv"]["w"], params["qkv"]["scale"],
                        params["qkv"]["bias"], vth=1.0)                 # (T, M, 3C) int8

    # Attention + attn_lif (v_th=0.5) + proj Linear+BN+LIF + residual x, one kernel.
    attn, x1 = ssa_attention_proj(qkv.reshape(T, B, N, 3 * C), x,
                                  params["proj"], num_heads=H)          # x1 = x + x_attn

    # ---- MLP: fc1/fc2 fused (hidden spikes never hit HBM), residual x1 in epilogue.
    x2 = mlp_fused(x1.reshape(T, M, C), params["fc1"], params["fc2"])   # (T, M, C) f32

    return x2.reshape(T, B, N, C), attn


# -------------------------------------- main -----------------------------------------

if __name__ == "__main__":
    T, B, N, C = 4, 2, 8, 32
    num_heads = 4

    key = jax.random.PRNGKey(0)
    kp, kx = jax.random.split(key, 2)

    params = init_block_params(kp, C, num_heads, mlp_ratio=4.0)
    x = jax.random.normal(kx, (T, B, N, C), jnp.float32)

    fwd = jax.jit(functools.partial(block_forward, params=params))
    y, attn = fwd(x)
    jax.block_until_ready((y, attn))

    assert y.shape == (T, B, N, C) and y.dtype == jnp.float32
    assert attn.shape == (T, B, num_heads, N, N)
    assert bool(jnp.all(jnp.isfinite(y)))
    assert bool(jnp.all(jnp.isfinite(attn.astype(jnp.float32))))
    print("KERNEL_OK")
</pallas_src>

<mosaic_0001>
module attributes {stable_mosaic.version = 11 : i64} {
  func.func @_linear_bn_lif_kernel(%arg0: i32, %arg1: i32, %arg2: memref<1x16x32xf32, #tpu.memory_space<vmem>>, %arg3: memref<32x96xbf16, #tpu.memory_space<vmem>>, %arg4: memref<1x96xf32, #tpu.memory_space<vmem>>, %arg5: memref<1x96xf32, #tpu.memory_space<vmem>>, %arg6: memref<1x16x96xi8, #tpu.memory_space<vmem>>, %arg7: memref<16x96xf32, #tpu.memory_space<vmem>>) attributes {dimension_semantics = [#tpu.dimension_semantics<parallel>, #tpu.dimension_semantics<arbitrary>], iteration_bounds = array<i64: 1, 4>, scalar_prefetch = 0 : i64, scratch_operands = 1 : i64, tpu.core_type = #tpu.core_type<tc>, window_params = [{transform_indices = @transform_0, window_bounds = array<i64: 1, 16, 32>}, {pipeline_mode = #tpu.pipeline_mode<synchronous>, transform_indices = @transform_1, window_bounds = array<i64: 32, 96>}, {pipeline_mode = #tpu.pipeline_mode<synchronous>, transform_indices = @transform_2, window_bounds = array<i64: 1, 96>}, {pipeline_mode = #tpu.pipeline_mode<synchronous>, transform_indices = @transform_3, window_bounds = array<i64: 1, 96>}, {transform_indices = @transform_4, window_bounds = array<i64: 1, 16, 96>}]} {
    %c0_i32 = arith.constant 0 : i32
    %0 = arith.cmpi eq, %arg1, %c0_i32 : i32
    %1 = arith.extui %0 : i1 to i32
    %c0_i32_0 = arith.constant 0 : i32
    %2 = arith.cmpi ne, %1, %c0_i32_0 : i32
    scf.if %2 {
      %cst_19 = arith.constant 0.000000e+00 : f32
      %31 = vector.broadcast %cst_19 : f32 to vector<16x96xf32>
      %c0_20 = arith.constant 0 : index
      %c0_21 = arith.constant 0 : index
      %32 = vector.load %arg7[%c0_20, %c0_21] : memref<16x96xf32, #tpu.memory_space<vmem>>, vector<16x96xf32>
      tpu.vector_store %arg7[%c0_20, %c0_21], %31 {strides = array<i32>} : memref<16x96xf32, #tpu.memory_space<vmem>>, vector<16x96xf32>,
    } else {
    }
    %c0 = arith.constant 0 : index
    %c0_1 = arith.constant 0 : index
    %c0_2 = arith.constant 0 : index
    %3 = vector.load %arg2[%c0, %c0_1, %c0_2] : memref<1x16x32xf32, #tpu.memory_space<vmem>>, vector<1x16x32xf32>
    %4 = vector.shape_cast %3 : vector<1x16x32xf32> to vector<16x32xf32>
    %5 = arith.truncf %4 : vector<16x32xf32> to vector<16x32xbf16>
    %c0_3 = arith.constant 0 : index
    %c0_4 = arith.constant 0 : index
    %6 = vector.load %arg3[%c0_3, %c0_4] : memref<32x96xbf16, #tpu.memory_space<vmem>>, vector<32x96xbf16>
    %cst = arith.constant dense<0.000000e+00> : vector<16x96xf32>
    %7 = tpu.matmul %5, %6, %cst {dimension_numbers = #tpu.dot_dimension_numbers<[1], [0], [0], [1], [0, 0, 1, 1], [], []>} : vector<16x32xbf16>, vector<32x96xbf16>, vector<16x96xf32> -> vector<16x96xf32>
    %c0_5 = arith.constant 0 : index
    %c0_6 = arith.constant 0 : index
    %8 = vector.load %arg4[%c0_5, %c0_6] : memref<1x96xf32, #tpu.memory_space<vmem>>, vector<1x96xf32>
    %9 = vector.broadcast %8 : vector<1x96xf32> to vector<16x96xf32>
    %10 = arith.mulf %7, %9 : vector<16x96xf32>
    %c0_7 = arith.constant 0 : index
    %c0_8 = arith.constant 0 : index
    %11 = vector.load %arg5[%c0_7, %c0_8] : memref<1x96xf32, #tpu.memory_space<vmem>>, vector<1x96xf32>
    %12 = vector.broadcast %11 : vector<1x96xf32> to vector<16x96xf32>
    %13 = arith.addf %10, %12 : vector<16x96xf32>
    %c0_9 = arith.constant 0 : index
    %c0_10 = arith.constant 0 : index
    %14 = vector.load %arg7[%c0_9, %c0_10] : memref<16x96xf32, #tpu.memory_space<vmem>>, vector<16x96xf32>
    %15 = arith.subf %13, %14 : vector<16x96xf32>
    %cst_11 = arith.constant 5.000000e-01 : f32
    %16 = vector.broadcast %cst_11 : f32 to vector<16x96xf32>
    %17 = arith.mulf %15, %16 : vector<16x96xf32>
    %18 = arith.addf %14, %17 : vector<16x96xf32>
    %cst_12 = arith.constant 1.000000e+00 : f32
    %19 = vector.broadcast %cst_12 : f32 to vector<16x96xf32>
    %20 = arith.cmpf oge, %18, %19 : vector<16x96xf32>
    %21 = arith.extui %20 : vector<16x96xi1> to vector<16x96xi32>
    %22 = arith.sitofp %21 : vector<16x96xi32> to vector<16x96xf32>
    %23 = arith.fptosi %22 : vector<16x96xf32> to vector<16x96xi8>
    %c0_13 = arith.constant 0 : index
    %c0_14 = arith.constant 0 : index
    %c0_15 = arith.constant 0 : index
    %24 = vector.load %arg6[%c0_13, %c0_14, %c0_15] : memref<1x16x96xi8, #tpu.memory_space<vmem>>, vector<1x16x96xi8>
    %25 = vector.shape_cast %24 : vector<1x16x96xi8> to vector<16x96xi8>
    %26 = vector.shape_cast %23 : vector<16x96xi8> to vector<1x16x96xi8>
    tpu.vector_store %arg6[%c0_13, %c0_14, %c0_15], %26 {strides = array<i32>} : memref<1x16x96xi8, #tpu.memory_space<vmem>>, vector<1x16x96xi8>,
    %cst_16 = arith.constant 1.000000e+00 : f32
    %27 = vector.broadcast %cst_16 : f32 to vector<16x96xf32>
    %28 = arith.subf %27, %22 : vector<16x96xf32>
    %29 = arith.mulf %18, %28 : vector<16x96xf32>
    %c0_17 = arith.constant 0 : index
    %c0_18 = arith.constant 0 : index
    %30 = vector.load %arg7[%c0_17, %c0_18] : memref<16x96xf32, #tpu.memory_space<vmem>>, vector<16x96xf32>
    tpu.vector_store %arg7[%c0_17, %c0_18], %29 {strides = array<i32>} : memref<16x96xf32, #tpu.memory_space<vmem>>, vector<16x96xf32>,
    return
  }
  func.func @transform_0(%arg0: i32, %arg1: i32) -> (i32, i32, i32) {
    %c0_i32 = arith.constant 0 : i32
    %c0_i32_0 = arith.constant 0 : i32
    return %arg1, %arg0, %c0_i32 : i32, i32, i32
  }
  func.func @transform_1(%arg0: i32, %arg1: i32) -> (i32, i32) {
    %c0_i32 = arith.constant 0 : i32
    %c0_i32_0 = arith.constant 0 : i32
    %c0_i32_1 = arith.constant 0 : i32
    return %c0_i32, %c0_i32_0 : i32, i32
  }
  func.func @transform_2(%arg0: i32, %arg1: i32) -> (i32, i32) {
    %c0_i32 = arith.constant 0 : i32
    %c0_i32_0 = arith.constant 0 : i32
    %c0_i32_1 = arith.constant 0 : i32
    return %c0_i32, %c0_i32_0 : i32, i32
  }
  func.func @transform_3(%arg0: i32, %arg1: i32) -> (i32, i32) {
    %c0_i32 = arith.constant 0 : i32
    %c0_i32_0 = arith.constant 0 : i32
    %c0_i32_1 = arith.constant 0 : i32
    return %c0_i32, %c0_i32_0 : i32, i32
  }
  func.func @transform_4(%arg0: i32, %arg1: i32) -> (i32, i32, i32) {
    %c0_i32 = arith.constant 0 : i32
    %c0_i32_0 = arith.constant 0 : i32
    return %arg1, %arg0, %c0_i32 : i32, i32, i32
  }
}

module attributes {stable_mosaic.version = 11 : i64} {
  func.func @_mlp_fused_kernel(%arg0: i32, %arg1: i32, %arg2: memref<1x16x32xf32, #tpu.memory_space<vmem>>, %arg3: memref<32x128xbf16, #tpu.memory_space<vmem>>, %arg4: memref<1x128xf32, #tpu.memory_space<vmem>>, %arg5: memref<1x128xf32, #tpu.memory_space<vmem>>, %arg6: memref<128x32xbf16, #tpu.memory_space<vmem>>, %arg7: memref<1x32xf32, #tpu.memory_space<vmem>>, %arg8: memref<1x32xf32, #tpu.memory_space<vmem>>, %arg9: memref<1x16x32xf32, #tpu.memory_space<vmem>>, %arg10: memref<16x128xf32, #tpu.memory_space<vmem>>, %arg11: memref<16x32xf32, #tpu.memory_space<vmem>>) attributes {dimension_semantics = [#tpu.dimension_semantics<parallel>, #tpu.dimension_semantics<arbitrary>], iteration_bounds = array<i64: 1, 4>, scalar_prefetch = 0 : i64, scratch_operands = 2 : i64, tpu.core_type = #tpu.core_type<tc>, window_params = [{transform_indices = @transform_0, window_bounds = array<i64: 1, 16, 32>}, {pipeline_mode = #tpu.pipeline_mode<synchronous>, transform_indices = @transform_1, window_bounds = array<i64: 32, 128>}, {pipeline_mode = #tpu.pipeline_mode<synchronous>, transform_indices = @transform_2, window_bounds = array<i64: 1, 128>}, {pipeline_mode = #tpu.pipeline_mode<synchronous>, transform_indices = @transform_3, window_bounds = array<i64: 1, 128>}, {pipeline_mode = #tpu.pipeline_mode<synchronous>, transform_indices = @transform_4, window_bounds = array<i64: 128, 32>}, {pipeline_mode = #tpu.pipeline_mode<synchronous>, transform_indices = @transform_5, window_bounds = array<i64: 1, 32>}, {pipeline_mode = #tpu.pipeline_mode<synchronous>, transform_indices = @transform_6, window_bounds = array<i64: 1, 32>}, {transform_indices = @transform_7, window_bounds = array<i64: 1, 16, 32>}]} {
    %c0_i32 = arith.constant 0 : i32
    %0 = arith.cmpi eq, %arg1, %c0_i32 : i32
    %1 = arith.extui %0 : i1 to i32
    %c0_i32_0 = arith.constant 0 : i32
    %2 = arith.cmpi ne, %1, %c0_i32_0 : i32
    scf.if %2 {
      %cst_33 = arith.constant 0.000000e+00 : f32
      %53 = vector.broadcast %cst_33 : f32 to vector<16x128xf32>
      %c0_34 = arith.constant 0 : index
      %c0_35 = arith.constant 0 : index
      %54 = vector.load %arg10[%c0_34, %c0_35] : memref<16x128xf32, #tpu.memory_space<vmem>>, vector<16x128xf32>
      tpu.vector_store %arg10[%c0_34, %c0_35], %53 {strides = array<i32>} : memref<16x128xf32, #tpu.memory_space<vmem>>, vector<16x128xf32>,
      %cst_36 = arith.constant 0.000000e+00 : f32
      %55 = vector.broadcast %cst_36 : f32 to vector<16x32xf32>
      %c0_37 = arith.constant 0 : index
      %c0_38 = arith.constant 0 : index
      %56 = vector.load %arg11[%c0_37, %c0_38] : memref<16x32xf32, #tpu.memory_space<vmem>>, vector<16x32xf32>
      tpu.vector_store %arg11[%c0_37, %c0_38], %55 {strides = array<i32>} : memref<16x32xf32, #tpu.memory_space<vmem>>, vector<16x32xf32>,
    } else {
    }
    %c0 = arith.constant 0 : index
    %c0_1 = arith.constant 0 : index
    %c0_2 = arith.constant 0 : index
    %3 = vector.load %arg2[%c0, %c0_1, %c0_2] : memref<1x16x32xf32, #tpu.memory_space<vmem>>, vector<1x16x32xf32>
    %4 = vector.shape_cast %3 : vector<1x16x32xf32> to vector<16x32xf32>
    %5 = arith.truncf %4 : vector<16x32xf32> to vector<16x32xbf16>
    %c0_3 = arith.constant 0 : index
    %c0_4 = arith.constant 0 : index
    %6 = vector.load %arg3[%c0_3, %c0_4] : memref<32x128xbf16, #tpu.memory_space<vmem>>, vector<32x128xbf16>
    %cst = arith.constant dense<0.000000e+00> : vector<16x128xf32>
    %7 = tpu.matmul %5, %6, %cst {dimension_numbers = #tpu.dot_dimension_numbers<[1], [0], [0], [1], [0, 0, 1, 1], [], []>} : vector<16x32xbf16>, vector<32x128xbf16>, vector<16x128xf32> -> vector<16x128xf32>
    %c0_5 = arith.constant 0 : index
    %c0_6 = arith.constant 0 : index
    %8 = vector.load %arg4[%c0_5, %c0_6] : memref<1x128xf32, #tpu.memory_space<vmem>>, vector<1x128xf32>
    %9 = vector.broadcast %8 : vector<1x128xf32> to vector<16x128xf32>
    %10 = arith.mulf %7, %9 : vector<16x128xf32>
    %c0_7 = arith.constant 0 : index
    %c0_8 = arith.constant 0 : index
    %11 = vector.load %arg5[%c0_7, %c0_8] : memref<1x128xf32, #tpu.memory_space<vmem>>, vector<1x128xf32>
    %12 = vector.broadcast %11 : vector<1x128xf32> to vector<16x128xf32>
    %13 = arith.addf %10, %12 : vector<16x128xf32>
    %c0_9 = arith.constant 0 : index
    %c0_10 = arith.constant 0 : index
    %14 = vector.load %arg10[%c0_9, %c0_10] : memref<16x128xf32, #tpu.memory_space<vmem>>, vector<16x128xf32>
    %15 = arith.subf %13, %14 : vector<16x128xf32>
    %cst_11 = arith.constant 5.000000e-01 : f32
    %16 = vector.broadcast %cst_11 : f32 to vector<16x128xf32>
    %17 = arith.mulf %15, %16 : vector<16x128xf32>
    %18 = arith.addf %14, %17 : vector<16x128xf32>
    %cst_12 = arith.constant 1.000000e+00 : f32
    %19 = vector.broadcast %cst_12 : f32 to vector<16x128xf32>
    %20 = arith.cmpf oge, %18, %19 : vector<16x128xf32>
    %21 = arith.extui %20 : vector<16x128xi1> to vector<16x128xi32>
    %22 = arith.sitofp %21 : vector<16x128xi32> to vector<16x128xf32>
    %cst_13 = arith.constant 1.000000e+00 : f32
    %23 = vector.broadcast %cst_13 : f32 to vector<16x128xf32>
    %24 = arith.subf %23, %22 : vector<16x128xf32>
    %25 = arith.mulf %18, %24 : vector<16x128xf32>
    %c0_14 = arith.constant 0 : index
    %c0_15 = arith.constant 0 : index
    %26 = vector.load %arg10[%c0_14, %c0_15] : memref<16x128xf32, #tpu.memory_space<vmem>>, vector<16x128xf32>
    tpu.vector_store %arg10[%c0_14, %c0_15], %25 {strides = array<i32>} : memref<16x128xf32, #tpu.memory_space<vmem>>, vector<16x128xf32>,
    %27 = arith.truncf %22 : vector<16x128xf32> to vector<16x128xbf16>
    %c0_16 = arith.constant 0 : index
    %c0_17 = arith.constant 0 : index
    %28 = vector.load %arg6[%c0_16, %c0_17] : memref<128x32xbf16, #tpu.memory_space<vmem>>, vector<128x32xbf16>
    %cst_18 = arith.constant dense<0.000000e+00> : vector<16x32xf32>
    %29 = tpu.matmul %27, %28, %cst_18 {dimension_numbers = #tpu.dot_dimension_numbers<[1], [0], [0], [1], [0, 0, 1, 1], [], []>} : vector<16x128xbf16>, vector<128x32xbf16>, vector<16x32xf32> -> vector<16x32xf32>
    %c0_19 = arith.constant 0 : index
    %c0_20 = arith.constant 0 : index
    %30 = vector.load %arg7[%c0_19, %c0_20] : memref<1x32xf32, #tpu.memory_space<vmem>>, vector<1x32xf32>
    %31 = vector.broadcast %30 : vector<1x32xf32> to vector<16x32xf32>
    %32 = arith.mulf %29, %31 : vector<16x32xf32>
    %c0_21 = arith.constant 0 : index
    %c0_22 = arith.constant 0 : index
    %33 = vector.load %arg8[%c0_21, %c0_22] : memref<1x32xf32, #tpu.memory_space<vmem>>, vector<1x32xf32>
    %34 = vector.broadcast %33 : vector<1x32xf32> to vector<16x32xf32>
    %35 = arith.addf %32, %34 : vector<16x32xf32>
    %c0_23 = arith.constant 0 : index
    %c0_24 = arith.constant 0 : index
    %36 = vector.load %arg11[%c0_23, %c0_24] : memref<16x32xf32, #tpu.memory_space<vmem>>, vector<16x32xf32>
    %37 = arith.subf %35, %36 : vector<16x32xf32>
    %cst_25 = arith.constant 5.000000e-01 : f32
    %38 = vector.broadcast %cst_25 : f32 to vector<16x32xf32>
    %39 = arith.mulf %37, %38 : vector<16x32xf32>
    %40 = arith.addf %36, %39 : vector<16x32xf32>
    %cst_26 = arith.constant 1.000000e+00 : f32
    %41 = vector.broadcast %cst_26 : f32 to vector<16x32xf32>
    %42 = arith.cmpf oge, %40, %41 : vector<16x32xf32>
    %43 = arith.extui %42 : vector<16x32xi1> to vector<16x32xi32>
    %44 = arith.sitofp %43 : vector<16x32xi32> to vector<16x32xf32>
    %cst_27 = arith.constant 1.000000e+00 : f32
    %45 = vector.broadcast %cst_27 : f32 to vector<16x32xf32>
    %46 = arith.subf %45, %44 : vector<16x32xf32>
    %47 = arith.mulf %40, %46 : vector<16x32xf32>
    %c0_28 = arith.constant 0 : index
    %c0_29 = arith.constant 0 : index
    %48 = vector.load %arg11[%c0_28, %c0_29] : memref<16x32xf32, #tpu.memory_space<vmem>>, vector<16x32xf32>
    tpu.vector_store %arg11[%c0_28, %c0_29], %47 {strides = array<i32>} : memref<16x32xf32, #tpu.memory_space<vmem>>, vector<16x32xf32>,
    %49 = arith.addf %4, %44 : vector<16x32xf32>
    %c0_30 = arith.constant 0 : index
    %c0_31 = arith.constant 0 : index
    %c0_32 = arith.constant 0 : index
    %50 = vector.load %arg9[%c0_30, %c0_31, %c0_32] : memref<1x16x32xf32, #tpu.memory_space<vmem>>, vector<1x16x32xf32>
    %51 = vector.shape_cast %50 : vector<1x16x32xf32> to vector<16x32xf32>
    %52 = vector.shape_cast %49 : vector<16x32xf32> to vector<1x16x32xf32>
    tpu.vector_store %arg9[%c0_30, %c0_31, %c0_32], %52 {strides = array<i32>} : memref<1x16x32xf32, #tpu.memory_space<vmem>>, vector<1x16x32xf32>,
    return
  }
  func.func @transform_0(%arg0: i32, %arg1: i32) -> (i32, i32, i32) {
    %c0_i32 = arith.constant 0 : i32
    %c0_i32_0 = arith.constant 0 : i32
    return %arg1, %arg0, %c0_i32 : i32, i32, i32
  }
  func.func @transform_1(%arg0: i32, %arg1: i32) -> (i32, i32) {
    %c0_i32 = arith.constant 0 : i32
    %c0_i32_0 = arith.constant 0 : i32
    %c0_i32_1 = arith.constant 0 : i32
    return %c0_i32, %c0_i32_0 : i32, i32
  }
  func.func @transform_2(%arg0: i32, %arg1: i32) -> (i32, i32) {
    %c0_i32 = arith.constant 0 : i32
    %c0_i32_0 = arith.constant 0 : i32
    %c0_i32_1 = arith.constant 0 : i32
    return %c0_i32, %c0_i32_0 : i32, i32
  }
  func.func @transform_3(%arg0: i32, %arg1: i32) -> (i32, i32) {
    %c0_i32 = arith.constant 0 : i32
    %c0_i32_0 = arith.constant 0 : i32
    %c0_i32_1 = arith.constant 0 : i32
    return %c0_i32, %c0_i32_0 : i32, i32
  }
  func.func @transform_4(%arg0: i32, %arg1: i32) -> (i32, i32) {
    %c0_i32 = arith.constant 0 : i32
    %c0_i32_0 = arith.constant 0 : i32
    %c0_i32_1 = arith.constant 0 : i32
    return %c0_i32, %c0_i32_0 : i32, i32
  }
  func.func @transform_5(%arg0: i32, %arg1: i32) -> (i32, i32) {
    %c0_i32 = arith.constant 0 : i32
    %c0_i32_0 = arith.constant 0 : i32
    %c0_i32_1 = arith.constant 0 : i32
    return %c0_i32, %c0_i32_0 : i32, i32
  }
  func.func @transform_6(%arg0: i32, %arg1: i32) -> (i32, i32) {
    %c0_i32 = arith.constant 0 : i32
    %c0_i32_0 = arith.constant 0 : i32
    %c0_i32_1 = arith.constant 0 : i32
    return %c0_i32, %c0_i32_0 : i32, i32
  }
  func.func @transform_7(%arg0: i32, %arg1: i32) -> (i32, i32, i32) {
    %c0_i32 = arith.constant 0 : i32
    %c0_i32_0 = arith.constant 0 : i32
    return %arg1, %arg0, %c0_i32 : i32, i32, i32
  }
}

module attributes {stable_mosaic.version = 11 : i64} {
  func.func @_ssa_attn_proj_kernel(%arg0: i32, %arg1: i32, %arg2: memref<1x2x8x96xi8, #tpu.memory_space<vmem>>, %arg3: memref<1x2x8x32xf32, #tpu.memory_space<vmem>>, %arg4: memref<32x32xbf16, #tpu.memory_space<vmem>>, %arg5: memref<1x32xf32, #tpu.memory_space<vmem>>, %arg6: memref<1x32xf32, #tpu.memory_space<vmem>>, %arg7: memref<1x2x4x8x8xbf16, #tpu.memory_space<vmem>>, %arg8: memref<1x2x8x32xf32, #tpu.memory_space<vmem>>, %arg9: memref<16x32xf32, #tpu.memory_space<vmem>>, %arg10: memref<16x32xf32, #tpu.memory_space<vmem>>) attributes {dimension_semantics = [#tpu.dimension_semantics<parallel>, #tpu.dimension_semantics<arbitrary>], iteration_bounds = array<i64: 1, 4>, scalar_prefetch = 0 : i64, scratch_operands = 2 : i64, tpu.core_type = #tpu.core_type<tc>, window_params = [{transform_indices = @transform_0, window_bounds = array<i64: 1, 2, 8, 96>}, {transform_indices = @transform_1, window_bounds = array<i64: 1, 2, 8, 32>}, {pipeline_mode = #tpu.pipeline_mode<synchronous>, transform_indices = @transform_2, window_bounds = array<i64: 32, 32>}, {pipeline_mode = #tpu.pipeline_mode<synchronous>, transform_indices = @transform_3, window_bounds = array<i64: 1, 32>}, {pipeline_mode = #tpu.pipeline_mode<synchronous>, transform_indices = @transform_4, window_bounds = array<i64: 1, 32>}, {transform_indices = @transform_5, window_bounds = array<i64: 1, 2, 4, 8, 8>}, {transform_indices = @transform_6, window_bounds = array<i64: 1, 2, 8, 32>}]} {
    %c0_i32 = arith.constant 0 : i32
    %0 = arith.cmpi eq, %arg1, %c0_i32 : i32
    %1 = arith.extui %0 : i1 to i32
    %c0_i32_0 = arith.constant 0 : i32
    %2 = arith.cmpi ne, %1, %c0_i32_0 : i32
    scf.if %2 {
      %cst_97 = arith.constant 0.000000e+00 : f32
      %160 = vector.broadcast %cst_97 : f32 to vector<16x32xf32>
      %c0_98 = arith.constant 0 : index
      %c0_99 = arith.constant 0 : index
      %161 = vector.load %arg9[%c0_98, %c0_99] : memref<16x32xf32, #tpu.memory_space<vmem>>, vector<16x32xf32>
      tpu.vector_store %arg9[%c0_98, %c0_99], %160 {strides = array<i32>} : memref<16x32xf32, #tpu.memory_space<vmem>>, vector<16x32xf32>,
      %cst_100 = arith.constant 0.000000e+00 : f32
      %162 = vector.broadcast %cst_100 : f32 to vector<16x32xf32>
      %c0_101 = arith.constant 0 : index
      %c0_102 = arith.constant 0 : index
      %163 = vector.load %arg10[%c0_101, %c0_102] : memref<16x32xf32, #tpu.memory_space<vmem>>, vector<16x32xf32>
      tpu.vector_store %arg10[%c0_101, %c0_102], %162 {strides = array<i32>} : memref<16x32xf32, #tpu.memory_space<vmem>>, vector<16x32xf32>,
    } else {
    }
    %c0 = arith.constant 0 : index
    %c0_1 = arith.constant 0 : index
    %c0_2 = arith.constant 0 : index
    %c0_3 = arith.constant 0 : index
    %3 = vector.load %arg2[%c0, %c0_1, %c0_2, %c0_3] : memref<1x2x8x96xi8, #tpu.memory_space<vmem>>, vector<1x1x8x96xi8>
    %4 = vector.shape_cast %3 : vector<1x1x8x96xi8> to vector<8x96xi8>
    %5 = arith.sitofp %4 : vector<8x96xi8> to vector<8x96xf32>
    %6 = arith.truncf %5 : vector<8x96xf32> to vector<8x96xbf16>
    %7 = vector.extract_strided_slice %6 {offsets = [0, 0], sizes = [8, 8], strides = [1, 1]} : vector<8x96xbf16> to vector<8x8xbf16>
    %8 = vector.extract_strided_slice %6 {offsets = [0, 32], sizes = [8, 8], strides = [1, 1]} : vector<8x96xbf16> to vector<8x8xbf16>
    %9 = vector.extract_strided_slice %6 {offsets = [0, 64], sizes = [8, 8], strides = [1, 1]} : vector<8x96xbf16> to vector<8x8xbf16>
    %10 = tpu.transpose %8, [1, 0] : vector<8x8xbf16> -> vector<8x8xbf16>
    %cst = arith.constant dense<0.000000e+00> : vector<8x8xf32>
    %11 = tpu.matmul %7, %10, %cst {dimension_numbers = #tpu.dot_dimension_numbers<[1], [0], [0], [1], [0, 0, 1, 1], [], []>} : vector<8x8xbf16>, vector<8x8xbf16>, vector<8x8xf32> -> vector<8x8xf32>
    %cst_4 = arith.constant 1.250000e-01 : f32
    %12 = vector.broadcast %cst_4 : f32 to vector<8x8xf32>
    %13 = arith.mulf %11, %12 : vector<8x8xf32>
    %14 = arith.truncf %13 : vector<8x8xf32> to vector<8x8xbf16>
    %c0_5 = arith.constant 0 : index
    %c0_6 = arith.constant 0 : index
    %c0_7 = arith.constant 0 : index
    %c0_8 = arith.constant 0 : index
    %c0_9 = arith.constant 0 : index
    %15 = vector.load %arg7[%c0_5, %c0_6, %c0_7, %c0_8, %c0_9] : memref<1x2x4x8x8xbf16, #tpu.memory_space<vmem>>, vector<1x1x1x8x8xbf16>
    %16 = vector.shape_cast %15 : vector<1x1x1x8x8xbf16> to vector<8x8xbf16>
    %17 = vector.shape_cast %14 : vector<8x8xbf16> to vector<1x1x1x8x8xbf16>
    tpu.vector_store %arg7[%c0_5, %c0_6, %c0_7, %c0_8, %c0_9], %17 {strides = array<i32>} : memref<1x2x4x8x8xbf16, #tpu.memory_space<vmem>>, vector<1x1x1x8x8xbf16>,
    %18 = arith.truncf %13 : vector<8x8xf32> to vector<8x8xbf16>
    %cst_10 = arith.constant dense<0.000000e+00> : vector<8x8xf32>
    %19 = tpu.matmul %18, %9, %cst_10 {dimension_numbers = #tpu.dot_dimension_numbers<[1], [0], [0], [1], [0, 0, 1, 1], [], []>} : vector<8x8xbf16>, vector<8x8xbf16>, vector<8x8xf32> -> vector<8x8xf32>
    %20 = vector.extract_strided_slice %6 {offsets = [0, 8], sizes = [8, 8], strides = [1, 1]} : vector<8x96xbf16> to vector<8x8xbf16>
    %21 = vector.extract_strided_slice %6 {offsets = [0, 40], sizes = [8, 8], strides = [1, 1]} : vector<8x96xbf16> to vector<8x8xbf16>
    %22 = vector.extract_strided_slice %6 {offsets = [0, 72], sizes = [8, 8], strides = [1, 1]} : vector<8x96xbf16> to vector<8x8xbf16>
    %23 = tpu.transpose %21, [1, 0] : vector<8x8xbf16> -> vector<8x8xbf16>
    %cst_11 = arith.constant dense<0.000000e+00> : vector<8x8xf32>
    %24 = tpu.matmul %20, %23, %cst_11 {dimension_numbers = #tpu.dot_dimension_numbers<[1], [0], [0], [1], [0, 0, 1, 1], [], []>} : vector<8x8xbf16>, vector<8x8xbf16>, vector<8x8xf32> -> vector<8x8xf32>
    %cst_12 = arith.constant 1.250000e-01 : f32
    %25 = vector.broadcast %cst_12 : f32 to vector<8x8xf32>
    %26 = arith.mulf %24, %25 : vector<8x8xf32>
    %27 = arith.truncf %26 : vector<8x8xf32> to vector<8x8xbf16>
    %c0_13 = arith.constant 0 : index
    %c0_14 = arith.constant 0 : index
    %c1 = arith.constant 1 : index
    %c0_15 = arith.constant 0 : index
    %c0_16 = arith.constant 0 : index
    %28 = vector.load %arg7[%c0_13, %c0_14, %c1, %c0_15, %c0_16] : memref<1x2x4x8x8xbf16, #tpu.memory_space<vmem>>, vector<1x1x1x8x8xbf16>
    %29 = vector.shape_cast %28 : vector<1x1x1x8x8xbf16> to vector<8x8xbf16>
    %30 = vector.shape_cast %27 : vector<8x8xbf16> to vector<1x1x1x8x8xbf16>
    tpu.vector_store %arg7[%c0_13, %c0_14, %c1, %c0_15, %c0_16], %30 {strides = array<i32>} : memref<1x2x4x8x8xbf16, #tpu.memory_space<vmem>>, vector<1x1x1x8x8xbf16>,
    %31 = arith.truncf %26 : vector<8x8xf32> to vector<8x8xbf16>
    %cst_17 = arith.constant dense<0.000000e+00> : vector<8x8xf32>
    %32 = tpu.matmul %31, %22, %cst_17 {dimension_numbers = #tpu.dot_dimension_numbers<[1], [0], [0], [1], [0, 0, 1, 1], [], []>} : vector<8x8xbf16>, vector<8x8xbf16>, vector<8x8xf32> -> vector<8x8xf32>
    %33 = vector.extract_strided_slice %6 {offsets = [0, 16], sizes = [8, 8], strides = [1, 1]} : vector<8x96xbf16> to vector<8x8xbf16>
    %34 = vector.extract_strided_slice %6 {offsets = [0, 48], sizes = [8, 8], strides = [1, 1]} : vector<8x96xbf16> to vector<8x8xbf16>
    %35 = vector.extract_strided_slice %6 {offsets = [0, 80], sizes = [8, 8], strides = [1, 1]} : vector<8x96xbf16> to vector<8x8xbf16>
    %36 = tpu.transpose %34, [1, 0] : vector<8x8xbf16> -> vector<8x8xbf16>
    %cst_18 = arith.constant dense<0.000000e+00> : vector<8x8xf32>
    %37 = tpu.matmul %33, %36, %cst_18 {dimension_numbers = #tpu.dot_dimension_numbers<[1], [0], [0], [1], [0, 0, 1, 1], [], []>} : vector<8x8xbf16>, vector<8x8xbf16>, vector<8x8xf32> -> vector<8x8xf32>
    %cst_19 = arith.constant 1.250000e-01 : f32
    %38 = vector.broadcast %cst_19 : f32 to vector<8x8xf32>
    %39 = arith.mulf %37, %38 : vector<8x8xf32>
    %40 = arith.truncf %39 : vector<8x8xf32> to vector<8x8xbf16>
    %c0_20 = arith.constant 0 : index
    %c0_21 = arith.constant 0 : index
    %c2 = arith.constant 2 : index
    %c0_22 = arith.constant 0 : index
    %c0_23 = arith.constant 0 : index
    %41 = vector.load %arg7[%c0_20, %c0_21, %c2, %c0_22, %c0_23] : memref<1x2x4x8x8xbf16, #tpu.memory_space<vmem>>, vector<1x1x1x8x8xbf16>
    %42 = vector.shape_cast %41 : vector<1x1x1x8x8xbf16> to vector<8x8xbf16>
    %43 = vector.shape_cast %40 : vector<8x8xbf16> to vector<1x1x1x8x8xbf16>
    tpu.vector_store %arg7[%c0_20, %c0_21, %c2, %c0_22, %c0_23], %43 {strides = array<i32>} : memref<1x2x4x8x8xbf16, #tpu.memory_space<vmem>>, vector<1x1x1x8x8xbf16>,
    %44 = arith.truncf %39 : vector<8x8xf32> to vector<8x8xbf16>
    %cst_24 = arith.constant dense<0.000000e+00> : vector<8x8xf32>
    %45 = tpu.matmul %44, %35, %cst_24 {dimension_numbers = #tpu.dot_dimension_numbers<[1], [0], [0], [1], [0, 0, 1, 1], [], []>} : vector<8x8xbf16>, vector<8x8xbf16>, vector<8x8xf32> -> vector<8x8xf32>
    %46 = vector.extract_strided_slice %6 {offsets = [0, 24], sizes = [8, 8], strides = [1, 1]} : vector<8x96xbf16> to vector<8x8xbf16>
    %47 = vector.extract_strided_slice %6 {offsets = [0, 56], sizes = [8, 8], strides = [1, 1]} : vector<8x96xbf16> to vector<8x8xbf16>
    %48 = vector.extract_strided_slice %6 {offsets = [0, 88], sizes = [8, 8], strides = [1, 1]} : vector<8x96xbf16> to vector<8x8xbf16>
    %49 = tpu.transpose %47, [1, 0] : vector<8x8xbf16> -> vector<8x8xbf16>
    %cst_25 = arith.constant dense<0.000000e+00> : vector<8x8xf32>
    %50 = tpu.matmul %46, %49, %cst_25 {dimension_numbers = #tpu.dot_dimension_numbers<[1], [0], [0], [1], [0, 0, 1, 1], [], []>} : vector<8x8xbf16>, vector<8x8xbf16>, vector<8x8xf32> -> vector<8x8xf32>
    %cst_26 = arith.constant 1.250000e-01 : f32
    %51 = vector.broadcast %cst_26 : f32 to vector<8x8xf32>
    %52 = arith.mulf %50, %51 : vector<8x8xf32>
    %53 = arith.truncf %52 : vector<8x8xf32> to vector<8x8xbf16>
    %c0_27 = arith.constant 0 : index
    %c0_28 = arith.constant 0 : index
    %c3 = arith.constant 3 : index
    %c0_29 = arith.constant 0 : index
    %c0_30 = arith.constant 0 : index
    %54 = vector.load %arg7[%c0_27, %c0_28, %c3, %c0_29, %c0_30] : memref<1x2x4x8x8xbf16, #tpu.memory_space<vmem>>, vector<1x1x1x8x8xbf16>
    %55 = vector.shape_cast %54 : vector<1x1x1x8x8xbf16> to vector<8x8xbf16>
    %56 = vector.shape_cast %53 : vector<8x8xbf16> to vector<1x1x1x8x8xbf16>
    tpu.vector_store %arg7[%c0_27, %c0_28, %c3, %c0_29, %c0_30], %56 {strides = array<i32>} : memref<1x2x4x8x8xbf16, #tpu.memory_space<vmem>>, vector<1x1x1x8x8xbf16>,
    %57 = arith.truncf %52 : vector<8x8xf32> to vector<8x8xbf16>
    %cst_31 = arith.constant dense<0.000000e+00> : vector<8x8xf32>
    %58 = tpu.matmul %57, %48, %cst_31 {dimension_numbers = #tpu.dot_dimension_numbers<[1], [0], [0], [1], [0, 0, 1, 1], [], []>} : vector<8x8xbf16>, vector<8x8xbf16>, vector<8x8xf32> -> vector<8x8xf32>
    %59 = tpu.concatenate %19, %32, %45, %58 in 1 : vector<8x8xf32>, vector<8x8xf32>, vector<8x8xf32>, vector<8x8xf32> -> vector<8x32xf32>
    %c0_32 = arith.constant 0 : index
    %c1_33 = arith.constant 1 : index
    %c0_34 = arith.constant 0 : index
    %c0_35 = arith.constant 0 : index
    %60 = vector.load %arg2[%c0_32, %c1_33, %c0_34, %c0_35] : memref<1x2x8x96xi8, #tpu.memory_space<vmem>>, vector<1x1x8x96xi8>
    %61 = vector.shape_cast %60 : vector<1x1x8x96xi8> to vector<8x96xi8>
    %62 = arith.sitofp %61 : vector<8x96xi8> to vector<8x96xf32>
    %63 = arith.truncf %62 : vector<8x96xf32> to vector<8x96xbf16>
    %64 = vector.extract_strided_slice %63 {offsets = [0, 0], sizes = [8, 8], strides = [1, 1]} : vector<8x96xbf16> to vector<8x8xbf16>
    %65 = vector.extract_strided_slice %63 {offsets = [0, 32], sizes = [8, 8], strides = [1, 1]} : vector<8x96xbf16> to vector<8x8xbf16>
    %66 = vector.extract_strided_slice %63 {offsets = [0, 64], sizes = [8, 8], strides = [1, 1]} : vector<8x96xbf16> to vector<8x8xbf16>
    %67 = tpu.transpose %65, [1, 0] : vector<8x8xbf16> -> vector<8x8xbf16>
    %cst_36 = arith.constant dense<0.000000e+00> : vector<8x8xf32>
    %68 = tpu.matmul %64, %67, %cst_36 {dimension_numbers = #tpu.dot_dimension_numbers<[1], [0], [0], [1], [0, 0, 1, 1], [], []>} : vector<8x8xbf16>, vector<8x8xbf16>, vector<8x8xf32> -> vector<8x8xf32>
    %cst_37 = arith.constant 1.250000e-01 : f32
    %69 = vector.broadcast %cst_37 : f32 to vector<8x8xf32>
    %70 = arith.mulf %68, %69 : vector<8x8xf32>
    %71 = arith.truncf %70 : vector<8x8xf32> to vector<8x8xbf16>
    %c0_38 = arith.constant 0 : index
    %c1_39 = arith.constant 1 : index
    %c0_40 = arith.constant 0 : index
    %c0_41 = arith.constant 0 : index
    %c0_42 = arith.constant 0 : index
    %72 = vector.load %arg7[%c0_38, %c1_39, %c0_40, %c0_41, %c0_42] : memref<1x2x4x8x8xbf16, #tpu.memory_space<vmem>>, vector<1x1x1x8x8xbf16>
    %73 = vector.shape_cast %72 : vector<1x1x1x8x8xbf16> to vector<8x8xbf16>
    %74 = vector.shape_cast %71 : vector<8x8xbf16> to vector<1x1x1x8x8xbf16>
    tpu.vector_store %arg7[%c0_38, %c1_39, %c0_40, %c0_41, %c0_42], %74 {strides = array<i32>} : memref<1x2x4x8x8xbf16, #tpu.memory_space<vmem>>, vector<1x1x1x8x8xbf16>,
    %75 = arith.truncf %70 : vector<8x8xf32> to vector<8x8xbf16>
    %cst_43 = arith.constant dense<0.000000e+00> : vector<8x8xf32>
    %76 = tpu.matmul %75, %66, %cst_43 {dimension_numbers = #tpu.dot_dimension_numbers<[1], [0], [0], [1], [0, 0, 1, 1], [], []>} : vector<8x8xbf16>, vector<8x8xbf16>, vector<8x8xf32> -> vector<8x8xf32>
    %77 = vector.extract_strided_slice %63 {offsets = [0, 8], sizes = [8, 8], strides = [1, 1]} : vector<8x96xbf16> to vector<8x8xbf16>
    %78 = vector.extract_strided_slice %63 {offsets = [0, 40], sizes = [8, 8], strides = [1, 1]} : vector<8x96xbf16> to vector<8x8xbf16>
    %79 = vector.extract_strided_slice %63 {offsets = [0, 72], sizes = [8, 8], strides = [1, 1]} : vector<8x96xbf16> to vector<8x8xbf16>
    %80 = tpu.transpose %78, [1, 0] : vector<8x8xbf16> -> vector<8x8xbf16>
    %cst_44 = arith.constant dense<0.000000e+00> : vector<8x8xf32>
    %81 = tpu.matmul %77, %80, %cst_44 {dimension_numbers = #tpu.dot_dimension_numbers<[1], [0], [0], [1], [0, 0, 1, 1], [], []>} : vector<8x8xbf16>, vector<8x8xbf16>, vector<8x8xf32> -> vector<8x8xf32>
    %cst_45 = arith.constant 1.250000e-01 : f32
    %82 = vector.broadcast %cst_45 : f32 to vector<8x8xf32>
    %83 = arith.mulf %81, %82 : vector<8x8xf32>
    %84 = arith.truncf %83 : vector<8x8xf32> to vector<8x8xbf16>
    %c0_46 = arith.constant 0 : index
    %c1_47 = arith.constant 1 : index
    %c1_48 = arith.constant 1 : index
    %c0_49 = arith.constant 0 : index
    %c0_50 = arith.constant 0 : index
    %85 = vector.load %arg7[%c0_46, %c1_47, %c1_48, %c0_49, %c0_50] : memref<1x2x4x8x8xbf16, #tpu.memory_space<vmem>>, vector<1x1x1x8x8xbf16>
    %86 = vector.shape_cast %85 : vector<1x1x1x8x8xbf16> to vector<8x8xbf16>
    %87 = vector.shape_cast %84 : vector<8x8xbf16> to vector<1x1x1x8x8xbf16>
    tpu.vector_store %arg7[%c0_46, %c1_47, %c1_48, %c0_49, %c0_50], %87 {strides = array<i32>} : memref<1x2x4x8x8xbf16, #tpu.memory_space<vmem>>, vector<1x1x1x8x8xbf16>,
    %88 = arith.truncf %83 : vector<8x8xf32> to vector<8x8xbf16>
    %cst_51 = arith.constant dense<0.000000e+00> : vector<8x8xf32>
    %89 = tpu.matmul %88, %79, %cst_51 {dimension_numbers = #tpu.dot_dimension_numbers<[1], [0], [0], [1], [0, 0, 1, 1], [], []>} : vector<8x8xbf16>, vector<8x8xbf16>, vector<8x8xf32> -> vector<8x8xf32>
    %90 = vector.extract_strided_slice %63 {offsets = [0, 16], sizes = [8, 8], strides = [1, 1]} : vector<8x96xbf16> to vector<8x8xbf16>
    %91 = vector.extract_strided_slice %63 {offsets = [0, 48], sizes = [8, 8], strides = [1, 1]} : vector<8x96xbf16> to vector<8x8xbf16>
    %92 = vector.extract_strided_slice %63 {offsets = [0, 80], sizes = [8, 8], strides = [1, 1]} : vector<8x96xbf16> to vector<8x8xbf16>
    %93 = tpu.transpose %91, [1, 0] : vector<8x8xbf16> -> vector<8x8xbf16>
    %cst_52 = arith.constant dense<0.000000e+00> : vector<8x8xf32>
    %94 = tpu.matmul %90, %93, %cst_52 {dimension_numbers = #tpu.dot_dimension_numbers<[1], [0], [0], [1], [0, 0, 1, 1], [], []>} : vector<8x8xbf16>, vector<8x8xbf16>, vector<8x8xf32> -> vector<8x8xf32>
    %cst_53 = arith.constant 1.250000e-01 : f32
    %95 = vector.broadcast %cst_53 : f32 to vector<8x8xf32>
    %96 = arith.mulf %94, %95 : vector<8x8xf32>
    %97 = arith.truncf %96 : vector<8x8xf32> to vector<8x8xbf16>
    %c0_54 = arith.constant 0 : index
    %c1_55 = arith.constant 1 : index
    %c2_56 = arith.constant 2 : index
    %c0_57 = arith.constant 0 : index
    %c0_58 = arith.constant 0 : index
    %98 = vector.load %arg7[%c0_54, %c1_55, %c2_56, %c0_57, %c0_58] : memref<1x2x4x8x8xbf16, #tpu.memory_space<vmem>>, vector<1x1x1x8x8xbf16>
    %99 = vector.shape_cast %98 : vector<1x1x1x8x8xbf16> to vector<8x8xbf16>
    %100 = vector.shape_cast %97 : vector<8x8xbf16> to vector<1x1x1x8x8xbf16>
    tpu.vector_store %arg7[%c0_54, %c1_55, %c2_56, %c0_57, %c0_58], %100 {strides = array<i32>} : memref<1x2x4x8x8xbf16, #tpu.memory_space<vmem>>, vector<1x1x1x8x8xbf16>,
    %101 = arith.truncf %96 : vector<8x8xf32> to vector<8x8xbf16>
    %cst_59 = arith.constant dense<0.000000e+00> : vector<8x8xf32>
    %102 = tpu.matmul %101, %92, %cst_59 {dimension_numbers = #tpu.dot_dimension_numbers<[1], [0], [0], [1], [0, 0, 1, 1], [], []>} : vector<8x8xbf16>, vector<8x8xbf16>, vector<8x8xf32> -> vector<8x8xf32>
    %103 = vector.extract_strided_slice %63 {offsets = [0, 24], sizes = [8, 8], strides = [1, 1]} : vector<8x96xbf16> to vector<8x8xbf16>
    %104 = vector.extract_strided_slice %63 {offsets = [0, 56], sizes = [8, 8], strides = [1, 1]} : vector<8x96xbf16> to vector<8x8xbf16>
    %105 = vector.extract_strided_slice %63 {offsets = [0, 88], sizes = [8, 8], strides = [1, 1]} : vector<8x96xbf16> to vector<8x8xbf16>
    %106 = tpu.transpose %104, [1, 0] : vector<8x8xbf16> -> vector<8x8xbf16>
    %cst_60 = arith.constant dense<0.000000e+00> : vector<8x8xf32>
    %107 = tpu.matmul %103, %106, %cst_60 {dimension_numbers = #tpu.dot_dimension_numbers<[1], [0], [0], [1], [0, 0, 1, 1], [], []>} : vector<8x8xbf16>, vector<8x8xbf16>, vector<8x8xf32> -> vector<8x8xf32>
    %cst_61 = arith.constant 1.250000e-01 : f32
    %108 = vector.broadcast %cst_61 : f32 to vector<8x8xf32>
    %109 = arith.mulf %107, %108 : vector<8x8xf32>
    %110 = arith.truncf %109 : vector<8x8xf32> to vector<8x8xbf16>
    %c0_62 = arith.constant 0 : index
    %c1_63 = arith.constant 1 : index
    %c3_64 = arith.constant 3 : index
    %c0_65 = arith.constant 0 : index
    %c0_66 = arith.constant 0 : index
    %111 = vector.load %arg7[%c0_62, %c1_63, %c3_64, %c0_65, %c0_66] : memref<1x2x4x8x8xbf16, #tpu.memory_space<vmem>>, vector<1x1x1x8x8xbf16>
    %112 = vector.shape_cast %111 : vector<1x1x1x8x8xbf16> to vector<8x8xbf16>
    %113 = vector.shape_cast %110 : vector<8x8xbf16> to vector<1x1x1x8x8xbf16>
    tpu.vector_store %arg7[%c0_62, %c1_63, %c3_64, %c0_65, %c0_66], %113 {strides = array<i32>} : memref<1x2x4x8x8xbf16, #tpu.memory_space<vmem>>, vector<1x1x1x8x8xbf16>,
    %114 = arith.truncf %109 : vector<8x8xf32> to vector<8x8xbf16>
    %cst_67 = arith.constant dense<0.000000e+00> : vector<8x8xf32>
    %115 = tpu.matmul %114, %105, %cst_67 {dimension_numbers = #tpu.dot_dimension_numbers<[1], [0], [0], [1], [0, 0, 1, 1], [], []>} : vector<8x8xbf16>, vector<8x8xbf16>, vector<8x8xf32> -> vector<8x8xf32>
    %116 = tpu.concatenate %76, %89, %102, %115 in 1 : vector<8x8xf32>, vector<8x8xf32>, vector<8x8xf32>, vector<8x8xf32> -> vector<8x32xf32>
    %117 = tpu.concatenate %59, %116 in 0 : vector<8x32xf32>, vector<8x32xf32> -> vector<16x32xf32>
    %c0_68 = arith.constant 0 : index
    %c0_69 = arith.constant 0 : index
    %118 = vector.load %arg9[%c0_68, %c0_69] : memref<16x32xf32, #tpu.memory_space<vmem>>, vector<16x32xf32>
    %119 = arith.subf %117, %118 : vector<16x32xf32>
    %cst_70 = arith.constant 5.000000e-01 : f32
    %120 = vector.broadcast %cst_70 : f32 to vector<16x32xf32>
    %121 = arith.mulf %119, %120 : vector<16x32xf32>
    %122 = arith.addf %118, %121 : vector<16x32xf32>
    %cst_71 = arith.constant 5.000000e-01 : f32
    %123 = vector.broadcast %cst_71 : f32 to vector<16x32xf32>
    %124 = arith.cmpf oge, %122, %123 : vector<16x32xf32>
    %125 = arith.extui %124 : vector<16x32xi1> to vector<16x32xi32>
    %126 = arith.sitofp %125 : vector<16x32xi32> to vector<16x32xf32>
    %cst_72 = arith.constant 1.000000e+00 : f32
    %127 = vector.broadcast %cst_72 : f32 to vector<16x32xf32>
    %128 = arith.subf %127, %126 : vector<16x32xf32>
    %129 = arith.mulf %122, %128 : vector<16x32xf32>
    %c0_73 = arith.constant 0 : index
    %c0_74 = arith.constant 0 : index
    %130 = vector.load %arg9[%c0_73, %c0_74] : memref<16x32xf32, #tpu.memory_space<vmem>>, vector<16x32xf32>
    tpu.vector_store %arg9[%c0_73, %c0_74], %129 {strides = array<i32>} : memref<16x32xf32, #tpu.memory_space<vmem>>, vector<16x32xf32>,
    %131 = arith.truncf %126 : vector<16x32xf32> to vector<16x32xbf16>
    %c0_75 = arith.constant 0 : index
    %c0_76 = arith.constant 0 : index
    %132 = vector.load %arg4[%c0_75, %c0_76] : memref<32x32xbf16, #tpu.memory_space<vmem>>, vector<32x32xbf16>
    %cst_77 = arith.constant dense<0.000000e+00> : vector<16x32xf32>
    %133 = tpu.matmul %131, %132, %cst_77 {dimension_numbers = #tpu.dot_dimension_numbers<[1], [0], [0], [1], [0, 0, 1, 1], [], []>} : vector<16x32xbf16>, vector<32x32xbf16>, vector<16x32xf32> -> vector<16x32xf32>
    %c0_78 = arith.constant 0 : index
    %c0_79 = arith.constant 0 : index
    %134 = vector.load %arg5[%c0_78, %c0_79] : memref<1x32xf32, #tpu.memory_space<vmem>>, vector<1x32xf32>
    %135 = vector.broadcast %134 : vector<1x32xf32> to vector<16x32xf32>
    %136 = arith.mulf %133, %135 : vector<16x32xf32>
    %c0_80 = arith.constant 0 : index
    %c0_81 = arith.constant 0 : index
    %137 = vector.load %arg6[%c0_80, %c0_81] : memref<1x32xf32, #tpu.memory_space<vmem>>, vector<1x32xf32>
    %138 = vector.broadcast %137 : vector<1x32xf32> to vector<16x32xf32>
    %139 = arith.addf %136, %138 : vector<16x32xf32>
    %c0_82 = arith.constant 0 : index
    %c0_83 = arith.constant 0 : index
    %140 = vector.load %arg10[%c0_82, %c0_83] : memref<16x32xf32, #tpu.memory_space<vmem>>, vector<16x32xf32>
    %141 = arith.subf %139, %140 : vector<16x32xf32>
    %cst_84 = arith.constant 5.000000e-01 : f32
    %142 = vector.broadcast %cst_84 : f32 to vector<16x32xf32>
    %143 = arith.mulf %141, %142 : vector<16x32xf32>
    %144 = arith.addf %140, %143 : vector<16x32xf32>
    %cst_85 = arith.constant 1.000000e+00 : f32
    %145 = vector.broadcast %cst_85 : f32 to vector<16x32xf32>
    %146 = arith.cmpf oge, %144, %145 : vector<16x32xf32>
    %147 = arith.extui %146 : vector<16x32xi1> to vector<16x32xi32>
    %148 = arith.sitofp %147 : vector<16x32xi32> to vector<16x32xf32>
    %cst_86 = arith.constant 1.000000e+00 : f32
    %149 = vector.broadcast %cst_86 : f32 to vector<16x32xf32>
    %150 = arith.subf %149, %148 : vector<16x32xf32>
    %151 = arith.mulf %144, %150 : vector<16x32xf32>
    %c0_87 = arith.constant 0 : index
    %c0_88 = arith.constant 0 : index
    %152 = vector.load %arg10[%c0_87, %c0_88] : memref<16x32xf32, #tpu.memory_space<vmem>>, vector<16x32xf32>
    tpu.vector_store %arg10[%c0_87, %c0_88], %151 {strides = array<i32>} : memref<16x32xf32, #tpu.memory_space<vmem>>, vector<16x32xf32>,
    %c0_89 = arith.constant 0 : index
    %c0_90 = arith.constant 0 : index
    %c0_91 = arith.constant 0 : index
    %c0_92 = arith.constant 0 : index
    %153 = vector.load %arg3[%c0_89, %c0_90, %c0_91, %c0_92] : memref<1x2x8x32xf32, #tpu.memory_space<vmem>>, vector<1x2x8x32xf32>
    %154 = vector.shape_cast %153 : vector<1x2x8x32xf32> to vector<2x8x32xf32>
    %155 = vector.shape_cast %148 : vector<16x32xf32> to vector<2x8x32xf32>
    %156 = arith.addf %154, %155 : vector<2x8x32xf32>
    %c0_93 = arith.constant 0 : index
    %c0_94 = arith.constant 0 : index
    %c0_95 = arith.constant 0 : index
    %c0_96 = arith.constant 0 : index
    %157 = vector.load %arg8[%c0_93, %c0_94, %c0_95, %c0_96] : memref<1x2x8x32xf32, #tpu.memory_space<vmem>>, vector<1x2x8x32xf32>
    %158 = vector.shape_cast %157 : vector<1x2x8x32xf32> to vector<2x8x32xf32>
    %159 = vector.shape_cast %156 : vector<2x8x32xf32> to vector<1x2x8x32xf32>
    tpu.vector_store %arg8[%c0_93, %c0_94, %c0_95, %c0_96], %159 {strides = array<i32>} : memref<1x2x8x32xf32, #tpu.memory_space<vmem>>, vector<1x2x8x32xf32>,
    return
  }
  func.func @transform_0(%arg0: i32, %arg1: i32) -> (i32, i32, i32, i32) {
    %c0_i32 = arith.constant 0 : i32
    %c0_i32_0 = arith.constant 0 : i32
    %c0_i32_1 = arith.constant 0 : i32
    return %arg1, %arg0, %c0_i32, %c0_i32_0 : i32, i32, i32, i32
  }
  func.func @transform_1(%arg0: i32, %arg1: i32) -> (i32, i32, i32, i32) {
    %c0_i32 = arith.constant 0 : i32
    %c0_i32_0 = arith.constant 0 : i32
    %c0_i32_1 = arith.constant 0 : i32
    return %arg1, %arg0, %c0_i32, %c0_i32_0 : i32, i32, i32, i32
  }
  func.func @transform_2(%arg0: i32, %arg1: i32) -> (i32, i32) {
    %c0_i32 = arith.constant 0 : i32
    %c0_i32_0 = arith.constant 0 : i32
    %c0_i32_1 = arith.constant 0 : i32
    return %c0_i32, %c0_i32_0 : i32, i32
  }
  func.func @transform_3(%arg0: i32, %arg1: i32) -> (i32, i32) {
    %c0_i32 = arith.constant 0 : i32
    %c0_i32_0 = arith.constant 0 : i32
    %c0_i32_1 = arith.constant 0 : i32
    return %c0_i32, %c0_i32_0 : i32, i32
  }
  func.func @transform_4(%arg0: i32, %arg1: i32) -> (i32, i32) {
    %c0_i32 = arith.constant 0 : i32
    %c0_i32_0 = arith.constant 0 : i32
    %c0_i32_1 = arith.constant 0 : i32
    return %c0_i32, %c0_i32_0 : i32, i32
  }
  func.func @transform_5(%arg0: i32, %arg1: i32) -> (i32, i32, i32, i32, i32) {
    %c0_i32 = arith.constant 0 : i32
    %c0_i32_0 = arith.constant 0 : i32
    %c0_i32_1 = arith.constant 0 : i32
    %c0_i32_2 = arith.constant 0 : i32
    return %arg1, %arg0, %c0_i32, %c0_i32_0, %c0_i32_1 : i32, i32, i32, i32, i32
  }
  func.func @transform_6(%arg0: i32, %arg1: i32) -> (i32, i32, i32, i32) {
    %c0_i32 = arith.constant 0 : i32
    %c0_i32_0 = arith.constant 0 : i32
    %c0_i32_1 = arith.constant 0 : i32
    return %arg1, %arg0, %c0_i32, %c0_i32_0 : i32, i32, i32, i32
  }
}

</mosaic_0001>

<llo_original>
// kernel: block_forward.3
$region0: #{block_forward.3}
  #allocation0 [shape = 'u32[]', space=smem, size = 0x4, offset = 0x4, fixed_abs, tag = 'smem constant byte address 0x4 - core index']
  #allocation1 [shape = 'u32[144,128]{1,0:T(1,128)}', space=vmem, size = 0x12000, scoped, tag = 'internal scratch']
  #allocation2 [shape = 'f32[16,96]{1,0:T(8,128)}', space=vmem, size = 0x2000, scoped, tag = 'scratch operand']
  %s0 = inlined_call_operand.hbm [shape: f32[4,16,32], index: 0, kind: input, shape index: {}]
  %s1 = inlined_call_operand.vmem [shape: bf16[32,96], index: 1, kind: input, shape index: {}]
  %s2 = inlined_call_operand.vmem [shape: f32[1,96], index: 2, kind: input, shape index: {}]
  %s3 = inlined_call_operand.vmem [shape: f32[1,96], index: 3, kind: input, shape index: {}]
  %s4 = inlined_call_operand.vmem [shape: s8[4,16,96], index: 4, kind: output, shape index: {}]
  %s5 = sld [smem:[#allocation0]]
  $region57: #{block_forward.3} parent=0
    _
  %s7 = ssub.s32 1, %s5
  %s8 = scalar_select 0, %s7, %s5
  $region1: #{block_forward.3} parent=0
    #allocation3 [shape = 'u8[16384]{0}', space=vmem, size = 0x4000, scoped, tag = 'input window, operand 0']
    #allocation4 [shape = 's32[2]{0}', space=sflag, size = 0x8, scoped, tag = 'scoped memory for block_forward.3']
    %9 = vsyncpa [#allocation4], 0
    %s10 = scalar_lea.sflag [#allocation4], 1
    %11 = vsyncpa %s10, 0
    loop: start=0, step=1, limit=6
    $region2: #{block_forward.3} parent=1 // loop_pre_header
      _
    $region3: #{block_forward.3} parent=1 // loop_header
      %s13 = sphi 0, %s17
      %p14 = scmp.ge.s32.totalorder %s13, 6
      %s20 = sphi 0, %s32
      %s21 = sphi 0, %s28
      %s22 = sphi 0, %s20
      %s23 = sphi 0, %s21
      %s24 = sphi 0, %s22
      %s25 = sphi 0, %s23
      %s37 = sphi 0, %s39
      %s40 = sphi 0, %s37
      %s41 = sphi 0, %s40
      %s57 = sphi 0, %s41
      %s61 = sphi 0, %s61
      %s63 = sphi 0, %s61
      %s64 = sphi 0, %s63
      %s78 = sphi 0, %s64
      %s82 = sphi 0, %s82
      %s84 = sphi 0, %s82
      %s85 = sphi 0, %s84
      %s99 = sphi 0, %s85
      %s103 = sphi 0, %s103
      %s105 = sphi 0, %s103
      %s106 = sphi 0, %s105
      %s120 = sphi 0, %s106
      %s128 = sphi 0, %s130
      %s131 = sphi 0, %s128
      %s132 = sphi 0, %s131
      %s148 = sphi 0, %s132
    $region4: #{block_forward.3} parent=1 // loop_header_branch
      %16 = sbr.rel (%p14) target = $region8
    $region5: #{block_forward.3} parent=1 // loop_body
      %s18 = ssub.s32 %s13, 1
      %s19 = ssub.s32 %s13, 2
      %s26 = sadd.s32 1, %s21
      %p27 = scmp.ge.s32.totalorder %s26, 4
      %s28 = scalar_select %p27, 0, %s26
      %s29 = sadd.s32 1, %s20
      %s30 = scalar_select %p27, %s29, %s20
      %p31 = scmp.ge.s32.totalorder %s30, 1
      %s32 = scalar_select %p31, 0, %s30
      %s33 = ssub.s32 %s21, %s28
      %s34 = ssub.s32 %s20, %s32
      %s35 = sor.u32 %s33, %s34
      %p36 = scmp.eq.s32.totalorder %s35, 0
      %s38 = sadd.s32 %s37, 1
      %s39 = scalar_select %p36, %s37, %s38
      %p42 = pneg %p36
      %p43 = scmp.eq.s32.totalorder %s13, 3
      %p44 = por %p42, %p43
      %p45 = scmp.ne.s32.totalorder %s37, %s40
      %p46 = scmp.eq.s32.totalorder %s13, 0
      %p47 = por %p45, %p46
      %p48 = scmp.ne.s32.totalorder %s37, %s40
      %p49 = scmp.eq.s32.totalorder %s18, 3
      %p50 = por %p48, %p49
      %p51 = scmp.ne.s32.totalorder %s40, %s41
      %p52 = scmp.eq.s32.totalorder %s18, 0
      %p53 = por %p51, %p52
      %p54 = scmp.ne.s32.totalorder %s40, %s41
      %p55 = scmp.eq.s32.totalorder %s19, 3
      %p56 = por %p54, %p55
      %p58 = scmp.ne.s32.totalorder %s41, %s57
      %p59 = scmp.eq.s32.totalorder %s19, 0
      %p60 = por %p58, %p59
      %s62 = sadd.s32 %s61, 1
      %p65 = scmp.eq.s32.totalorder %s13, 3
      %p66 = scmp.ne.s32.totalorder %s61, %s63
      %p67 = scmp.eq.s32.totalorder %s13, 0
      %p68 = por %p66, %p67
      %p69 = scmp.ne.s32.totalorder %s61, %s63
      %p70 = scmp.eq.s32.totalorder %s18, 3
      %p71 = por %p69, %p70
      %p72 = scmp.ne.s32.totalorder %s63, %s64
      %p73 = scmp.eq.s32.totalorder %s18, 0
      %p74 = por %p72, %p73
      %p75 = scmp.ne.s32.totalorder %s63, %s64
      %p76 = scmp.eq.s32.totalorder %s19, 3
      %p77 = por %p75, %p76
      %p79 = scmp.ne.s32.totalorder %s64, %s78
      %p80 = scmp.eq.s32.totalorder %s19, 0
      %p81 = por %p79, %p80
      %s83 = sadd.s32 %s82, 1
      %p86 = scmp.eq.s32.totalorder %s13, 3
      %p87 = scmp.ne.s32.totalorder %s82, %s84
      %p88 = scmp.eq.s32.totalorder %s13, 0
      %p89 = por %p87, %p88
      %p90 = scmp.ne.s32.totalorder %s82, %s84
      %p91 = scmp.eq.s32.totalorder %s18, 3
      %p92 = por %p90, %p91
      %p93 = scmp.ne.s32.totalorder %s84, %s85
      %p94 = scmp.eq.s32.totalorder %s18, 0
      %p95 = por %p93, %p94
      %p96 = scmp.ne.s32.totalorder %s84, %s85
      %p97 = scmp.eq.s32.totalorder %s19, 3
      %p98 = por %p96, %p97
      %p100 = scmp.ne.s32.totalorder %s85, %s99
      %p101 = scmp.eq.s32.totalorder %s19, 0
      %p102 = por %p100, %p101
      %s104 = sadd.s32 %s103, 1
      %p107 = scmp.eq.s32.totalorder %s13, 3
      %p108 = scmp.ne.s32.totalorder %s103, %s105
      %p109 = scmp.eq.s32.totalorder %s13, 0
      %p110 = por %p108, %p109
      %p111 = scmp.ne.s32.totalorder %s103, %s105
      %p112 = scmp.eq.s32.totalorder %s18, 3
      %p113 = por %p111, %p112
      %p114 = scmp.ne.s32.totalorder %s105, %s106
      %p115 = scmp.eq.s32.totalorder %s18, 0
      %p116 = por %p114, %p115
      %p117 = scmp.ne.s32.totalorder %s105, %s106
      %p118 = scmp.eq.s32.totalorder %s19, 3
      %p119 = por %p117, %p118
      %p121 = scmp.ne.s32.totalorder %s106, %s120
      %p122 = scmp.eq.s32.totalorder %s19, 0
      %p123 = por %p121, %p122
      %s124 = ssub.s32 %s21, %s28
      %s125 = ssub.s32 %s20, %s32
      %s126 = sor.u32 %s124, %s125
      %p127 = scmp.eq.s32.totalorder %s126, 0
      %s129 = sadd.s32 %s128, 1
      %s130 = scalar_select %p127, %s128, %s129
      %p133 = pneg %p127
      %p134 = scmp.eq.s32.totalorder %s13, 3
      %p135 = por %p133, %p134
      %p136 = scmp.ne.s32.totalorder %s128, %s131
      %p137 = scmp.eq.s32.totalorder %s13, 0
      %p138 = por %p136, %p137
      %p139 = scmp.ne.s32.totalorder %s128, %s131
      %p140 = scmp.eq.s32.totalorder %s18, 3
      %p141 = por %p139, %p140
      %p142 = scmp.ne.s32.totalorder %s131, %s132
      %p143 = scmp.eq.s32.totalorder %s18, 0
      %p144 = por %p142, %p143
      %p145 = scmp.ne.s32.totalorder %s131, %s132
      %p146 = scmp.eq.s32.totalorder %s19, 3
      %p147 = por %p145, %p146
      %p149 = scmp.ne.s32.totalorder %s132, %s148
      %p150 = scmp.eq.s32.totalorder %s19, 0
      %p151 = por %p149, %p150
      %p152 = scmp.le.s32.totalorder 1, %s13
      %p153 = scmp.lt.s32.totalorder %s13, 5
      %p154 = pnand %p152, %p153
      %p155 = pneg %p154
      // Predicated region
      $region9: #{block_forward.3} parent=5 // pred_check
        _
      $region10: #{block_forward.3} parent=5 // pred_check_branch
        %157 = sbr.rel (%p154) target = $region12
      $region11: #{block_forward.3} parent=5 // pred_region
        %s158 = ssub.s32 %s13, 1
        // Predicated region
        $region13: #{block_forward.3} parent=11 // pred_check
          %p159 = pneg %p74
        $region14: #{block_forward.3} parent=11 // pred_check_branch
          %161 = sbr.rel (%p159) target = $region16
        $region15: #{block_forward.3} parent=11 // pred_region
          _
        $region16: #{block_forward.3} parent=11 // pred_fallthru
          _
        // Predicated region
        $region17: #{block_forward.3} parent=11 // pred_check
          %p162 = pneg %p95
        $region18: #{block_forward.3} parent=11 // pred_check_branch
          %164 = sbr.rel (%p162) target = $region20
        $region19: #{block_forward.3} parent=11 // pred_region
          _
        $region20: #{block_forward.3} parent=11 // pred_fallthru
          _
        // Predicated region
        $region21: #{block_forward.3} parent=11 // pred_check
          %p165 = pneg %p116
        $region22: #{block_forward.3} parent=11 // pred_check_branch
          %167 = sbr.rel (%p165) target = $region24
        $region23: #{block_forward.3} parent=11 // pred_region
          _
        $region24: #{block_forward.3} parent=11 // pred_fallthru
          _
      $region12: #{block_forward.3} parent=5 // pred_fallthru
        _
      %p168 = scmp.lt.s32.totalorder %s13, 4
      // Predicated region
      $region25: #{block_forward.3} parent=5 // pred_check
        %p169 = pneg %p168
      $region26: #{block_forward.3} parent=5 // pred_check_branch
        %171 = sbr.rel (%p169) target = $region28
      $region27: #{block_forward.3} parent=5 // pred_region
        // Predicated region
        $region29: #{block_forward.3} parent=27 // pred_check
          %p172 = pneg %p47
        $region30: #{block_forward.3} parent=27 // pred_check_branch
          %174 = sbr.rel (%p172) target = $region32
        $region31: #{block_forward.3} parent=27 // pred_region
          %s175 = sand.u32 %s37, 1
          %s176 = scalar_lea.sflag [#allocation4], %s175
          %s177 = sand.u32 %s37, 1
          %s178 = smul.addr %s177, 16
          %s179 = scalar_lea.vmem [#allocation3], %s178
          %s180 = smul.u32 2, %s20
          %s182 = ssub.s32 256, 256
          %183 = vsyncadd %s176, %s182
          %s184 = smul.addr %s21, 2
          %s185 = sadd.s32 %s180, %s184
          %s186 = smul.addr %s185, 128
          %s187 = scalar_lea.hbm %s0, %s186
          %s188 = sshll.u32 %s179, 4
          %s189 = int_to_ptr.vmem [resolvable:$true] %s188
          %194 = dma.hbm_to_vmem [thread:$0]  %s187, 256, %s189, %s176, 128, 128, 8
        $region32: #{block_forward.3} parent=27 // pred_fallthru
          _
      $region28: #{block_forward.3} parent=5 // pred_fallthru
        _
      %p195 = scmp.le.s32.totalorder 1, %s13
      %p196 = scmp.lt.s32.totalorder %s13, 5
      %p197 = pnand %p195, %p196
      %p198 = pneg %p197
      // Predicated region
      $region33: #{block_forward.3} parent=5 // pred_check
        _
      $region34: #{block_forward.3} parent=5 // pred_check_branch
        %200 = sbr.rel (%p197) target = $region36
      $region35: #{block_forward.3} parent=5 // pred_region
        %s201 = ssub.s32 %s13, 1
        %s202 = sand.u32 %s40, 1
        %s203 = scalar_lea.sflag [#allocation4], %s202
        %s204 = sand.u32 %s40, 1
        %s205 = smul.addr %s204, 16
        %s206 = scalar_lea.vmem [#allocation3], %s205
        // Predicated region
        $region37: #{block_forward.3} parent=35 // pred_check
          %p207 = pneg %p53
        $region38: #{block_forward.3} parent=35 // pred_check_branch
          %209 = sbr.rel (%p207) target = $region40
        $region39: #{block_forward.3} parent=35 // pred_region
          %210 = dma.done %s203, 256
        $region40: #{block_forward.3} parent=35 // pred_fallthru
          _
        %s211 = sand.u32 %s40, 1
        %s212 = scalar_lea.sflag [#allocation4], %s211
        %s213 = sand.u32 %s40, 1
        %s214 = smul.addr %s213, 16
        %s215 = scalar_lea.vmem [#allocation3], %s214
        %p216 = pneg %p53
        %p217 = pneg %p50
        %p218 = pneg %p74
        %p219 = pneg %p71
        %p220 = pneg %p95
        %p221 = pneg %p92
        %p222 = pneg %p116
        %p223 = pneg %p113
        %p224 = pneg %p144
        %p225 = pneg %p141
        %s226 = smul.u32 2, %s22
        %p227 = scmp.lt.s32.totalorder %s23, 3
        %s228 = scalar_select %p227, %s23, 3
        %p229 = scmp.lt.s32.totalorder %s226, 1
        %s230 = scalar_select %p229, %s226, 1
        %s231 = smul.addr %s228, 2
        %s232 = sadd.s32 %s230, %s231
        %s233 = smul.addr %s232, 2
        %s234 = scalar_lea.vmem %s4, %s233
        %s235 = smul.u32 2, %s22
        %s236 = smul.u32 2, %s22
        %p237 = scmp.lt.s32.totalorder %s23, 3
        %s238 = scalar_select %p237, %s23, 3
        %p239 = scmp.lt.s32.totalorder %s236, 1
        %s240 = scalar_select %p239, %s236, 1
        %s241 = smul.addr %s238, 2
        %s242 = sadd.s32 %s240, %s241
        %s243 = smul.addr %s242, 2
        %s244 = scalar_lea.vmem %s4, %s243
        %s245 = smul.u32 2, %s22
        %p247 = scmp.eq.s32.totalorder %s23, 0
        // Predicated region
        $region41: #{block_forward.3} parent=35 // pred_check
          %p248 = pneg %p247
        $region42: #{block_forward.3} parent=35 // pred_check_branch
          %250 = sbr.rel (%p248) target = $region44
        $region43: #{block_forward.3} parent=35 // pred_region
          %vm251 = vcmask 785408
          %252 = vst.msk [vmem:[#allocation2] sm:$0xff] %vm251, 0.0
          %253 = vst.msk [vmem:[#allocation2 + $0x8] sm:$0xff] %vm251, 0.0
        $region44: #{block_forward.3} parent=35 // pred_fallthru
          _
        %v254 = vld [vmem:[%s206] sm:$0xff]
        %v255 = vld [vmem:[%s206 + $0x8] sm:$0xff]
        %v256 = vpack.c.bf16 %v255, %v254
        %v257 = vld [vmem:[%s1] sm:$0xf]
        %v258 = vld [vmem:[%s1 + $0x4] sm:$0xf]
        %v259 = vld [vmem:[%s1 + $0x8] sm:$0xf]
        %v260 = vld [vmem:[%s1 + $0xc] sm:$0xf]
        %v265 = vunpack.c.l.b16 %v257
        %v266 = vunpack.c.l.b16 %v258
        %v267 = vunpack.c.l.b16 %v259
        %v268 = vunpack.c.l.b16 %v260
        %v269 = vpack.c.b16 %v266, %v265
        %v270 = vpack.c.b16 %v268, %v267
        %vm273 = vcmask 261120
        %v275 = vsel %vm273, %v256, 0
        %277 = vmatprep.subr.bf16.mxu0 0
        %278 = vmatpush1.bf16.msra.mxu0 %v269
        %279 = vmatprep.subr.bf16.mxu0 0
        %280 = vmatpush1.bf16.msra.mxu0 %v270
        %281 = vmatprep.subr.bf16.mxu0 0
        %282 = vmatpush1.bf16.msra.mxu0 0
        %283 = vmatprep.subr.bf16.mxu0 0
        %284 = vmatpush1.bf16.msra.mxu0 0
        %285 = vmatprep.subr.bf16.mxu0 0
        %286 = vmatpush1.bf16.msra.mxu0 0
        %287 = vmatprep.subr.bf16.mxu0 0
        %288 = vmatpush1.bf16.msra.mxu0 0
        %289 = vmatprep.subr.bf16.mxu0 0
        %290 = vmatpush1.bf16.msra.mxu0 0
        %291 = vmatprep.subr.bf16.mxu0 0
        %292 = vmatpush1.bf16.msra.mxu0 0
        %293 = vmatprep.subr.bf16.mxu0 0
        %294 = vmatpush1.bf16.msra.mxu0 0
        %295 = vmatprep.subr.bf16.mxu0 0
        %296 = vmatpush1.bf16.msra.mxu0 0
        %297 = vmatprep.subr.bf16.mxu0 0
        %298 = vmatpush1.bf16.msra.mxu0 0
        %299 = vmatprep.subr.bf16.mxu0 0
        %300 = vmatpush1.bf16.msra.mxu0 0
        %301 = vmatprep.subr.bf16.mxu0 0
        %302 = vmatpush1.bf16.msra.mxu0 0
        %303 = vmatprep.subr.bf16.mxu0 0
        %304 = vmatpush1.bf16.msra.mxu0 0
        %305 = vmatprep.subr.bf16.mxu0 0
        %306 = vmatpush1.bf16.msra.mxu0 0
        %307 = vmatprep.subr.bf16.mxu0 0
        %308 = vmatpush1.bf16.msra.mxu0 0
        %309 = vmatprep.mubr.bf16.mxu0 0
        %310 = vmatmul.mubr.bf16.gmra.mrb[0].mxu0 %v275
        %v311 = vpop.f32.mrb[0].mxu0
        %v312 = vadd.f32 0.0, %v311
        %v313 = vpop.f32.mrb[0].mxu0
        %v314 = vpop.f32.mrb[0].mxu0
        %v315 = vadd.f32 0.0, %v314
        %v316 = vpop.f32.mrb[0].mxu0
        %317 = vdwg.mxu0
        %v318 = vld [vmem:[%s2] sm:$0x1]
        %v320 = vlaneseq
        %v321 = vshrl.u32 %v320, 7
        %v322 = vsub.s32 0, %v321
        %v323 = vrot.slane %v318, %v322
        %v325 = vmul.f32 %v312, %v323
        %v326 = vmul.f32 %v315, %v323
        %v327 = vld [vmem:[%s3] sm:$0x1]
        %v329 = vlaneseq
        %v330 = vshrl.u32 %v329, 7
        %v331 = vsub.s32 0, %v330
        %v332 = vrot.slane %v327, %v331
        %v334 = vadd.f32 %v325, %v332
        %v335 = vadd.f32 %v326, %v332
        %v336 = vld [vmem:[#allocation2] sm:$0xff]
        %v337 = vld [vmem:[#allocation2 + $0x8] sm:$0xff]
        %v338 = vsub.f32 %v334, %v336
        %v339 = vsub.f32 %v335, %v337
        %v340 = vmul.f32 %v338, 0.5
        %v341 = vmul.f32 %v339, 0.5
        %v342 = vadd.f32 %v336, %v340
        %v343 = vadd.f32 %v337, %v341
        %vm344 = vcmp.ge.f32.partialorder %v342, 1.0
        %vm345 = vcmp.ge.f32.partialorder %v343, 1.0
        %v346 = vsel %vm344, 1, 0
        %v347 = vsel %vm345, 1, 0
        %v348 = vcvt.s32.f32 %v346
        %v349 = vcvt.s32.f32 %v347
        %v350 = vtrunc.f32 %v348
        %v351 = vtrunc.f32 %v349
        %v352 = vpack.c.f32.eXmY %v350, %v351, 312
        %v356 = vpack.c.b8 %v352, %v352
        %v358 = vunpack.c.0.s8 %v356
        %v359 = vunpack.c.1.s8 %v356
        %v360 = vpack.c.b16 %v358, %v358
        %v361 = vpack.c.b8 %v360, %v360
        %v362 = vpack.c.b16 %v359, %v359
        %v363 = vpack.c.b8 %v362, %v362
        %vm364 = vcmask 779264
        %365 = vst.msk [vmem:[%s244] sm:$0x3] %vm364, %v361
        %366 = vst.msk [vmem:[%s244 + $0x2] sm:$0x3] %vm364, %v363
        %v367 = vsub.f32 1.0, %v348
        %v368 = vsub.f32 1.0, %v349
        %v369 = vmul.f32 %v342, %v367
        %v370 = vmul.f32 %v343, %v368
        %vm371 = vcmask 785408
        %372 = vst.msk [vmem:[#allocation2] sm:$0xff] %vm371, %v369
        %373 = vst.msk [vmem:[#allocation2 + $0x8] sm:$0xff] %vm371, %v370
        %s374 = smul.u32 2, %s22
        %p375 = scmp.lt.s32.totalorder %s23, 3
        %s376 = scalar_select %p375, %s23, 3
        %p377 = scmp.lt.s32.totalorder %s374, 1
        %s378 = scalar_select %p377, %s374, 1
        %s379 = smul.addr %s376, 2
        %s380 = sadd.s32 %s378, %s379
        %s381 = smul.addr %s380, 2
        %s382 = scalar_lea.vmem %s4, %s381
        // Predicated region
        $region45: #{block_forward.3} parent=35 // pred_check
          %p383 = pneg %p141
        $region46: #{block_forward.3} parent=35 // pred_check_branch
          %385 = sbr.rel (%p383) target = $region48
        $region47: #{block_forward.3} parent=35 // pred_region
          %s386 = smul.u32 2, %s22
        $region48: #{block_forward.3} parent=35 // pred_fallthru
          _
      $region36: #{block_forward.3} parent=5 // pred_fallthru
        _
      %p387 = scmp.le.s32.totalorder 2, %s13
      // Predicated region
      $region49: #{block_forward.3} parent=5 // pred_check
        %p388 = pneg %p387
      $region50: #{block_forward.3} parent=5 // pred_check_branch
        %390 = sbr.rel (%p388) target = $region52
      $region51: #{block_forward.3} parent=5 // pred_region
        %s391 = ssub.s32 %s13, 2
        // Predicated region
        $region53: #{block_forward.3} parent=51 // pred_check
          %p392 = pneg %p147
        $region54: #{block_forward.3} parent=51 // pred_check_branch
          %394 = sbr.rel (%p392) target = $region56
        $region55: #{block_forward.3} parent=51 // pred_region
          %s395 = smul.u32 2, %s24
          %p396 = scmp.lt.s32.totalorder %s25, 3
          %s397 = scalar_select %p396, %s25, 3
          %p398 = scmp.lt.s32.totalorder %s395, 1
          %s399 = scalar_select %p398, %s395, 1
          %s400 = smul.addr %s397, 2
          %s401 = sadd.s32 %s399, %s400
          %s402 = smul.addr %s401, 2
          %s403 = scalar_lea.vmem %s4, %s402
        $region56: #{block_forward.3} parent=51 // pred_fallthru
          _
      $region52: #{block_forward.3} parent=5 // pred_fallthru
        _
    $region6: #{block_forward.3} parent=1 // loop_footer
      %s17 = sadd.s32 1, %s13
    $region7: #{block_forward.3} parent=1 // loop_footer_branch
      %12 = sbr.rel target = $region3
    $region8: #{block_forward.3} parent=1 // loop_exit
      _
    %404 = vsyncpa [#allocation4], 1
    %s405 = scalar_lea.sflag [#allocation4], 1
    %406 = vsyncpa %s405, 1

// kernel: block_forward.5
$region0: #{block_forward.5}
  #allocation0 [shape = 'u32[]', space=smem, size = 0x4, offset = 0x4, fixed_abs, tag = 'smem constant byte address 0x4 - core index']
  #allocation1 [shape = 'u32[144,128]{1,0:T(1,128)}', space=vmem, size = 0x12000, scoped, tag = 'internal scratch']
  #allocation2 [shape = 'f32[16,128]{1,0:T(8,128)}', space=vmem, size = 0x2000, scoped, tag = 'scratch operand']
  #allocation3 [shape = 'f32[16,32]{1,0:T(8,128)}', space=vmem, size = 0x2000, scoped, tag = 'scratch operand']
  %s0 = inlined_call_operand.vmem [shape: f32[4,16,32], index: 0, kind: input, shape index: {}]
  %s1 = inlined_call_operand.vmem [shape: bf16[32,128], index: 1, kind: input, shape index: {}]
  %s2 = inlined_call_operand.vmem [shape: f32[1,128], index: 2, kind: input, shape index: {}]
  %s3 = inlined_call_operand.vmem [shape: f32[1,128], index: 3, kind: input, shape index: {}]
  %s4 = inlined_call_operand.vmem [shape: bf16[128,32], index: 4, kind: input, shape index: {}]
  %s5 = inlined_call_operand.vmem [shape: f32[1,32], index: 5, kind: input, shape index: {}]
  %s6 = inlined_call_operand.vmem [shape: f32[1,32], index: 6, kind: input, shape index: {}]
  %s7 = inlined_call_operand.hbm [shape: f32[4,16,32], index: 7, kind: output, shape index: {}]
  %s8 = sld [smem:[#allocation0]]
  $region65: #{block_forward.5} parent=0
    _
  %s10 = ssub.s32 1, %s8
  %s11 = scalar_select 0, %s10, %s8
  $region1: #{block_forward.5} parent=0
    #allocation4 [shape = 'u8[16384]{0}', space=vmem, size = 0x4000, scoped, tag = 'output window, operand 0']
    #allocation5 [shape = 's32[2]{0}', space=sflag, size = 0x8, scoped, tag = 'scoped memory for block_forward.5']
    %12 = vsyncpa [#allocation5], 0
    %s13 = scalar_lea.sflag [#allocation5], 1
    %14 = vsyncpa %s13, 0
    loop: start=0, step=1, limit=6
    $region2: #{block_forward.5} parent=1 // loop_pre_header
      _
    $region3: #{block_forward.5} parent=1 // loop_header
      %s16 = sphi 0, %s20
      %p17 = scmp.ge.s32.totalorder %s16, 6
      %s23 = sphi 0, %s35
      %s24 = sphi 0, %s31
      %s25 = sphi 0, %s23
      %s26 = sphi 0, %s24
      %s27 = sphi 0, %s25
      %s28 = sphi 0, %s26
      %s40 = sphi 0, %s42
      %s43 = sphi 0, %s40
      %s44 = sphi 0, %s43
      %s60 = sphi 0, %s44
      %s64 = sphi 0, %s64
      %s66 = sphi 0, %s64
      %s67 = sphi 0, %s66
      %s81 = sphi 0, %s67
      %s85 = sphi 0, %s85
      %s87 = sphi 0, %s85
      %s88 = sphi 0, %s87
      %s102 = sphi 0, %s88
      %s106 = sphi 0, %s106
      %s108 = sphi 0, %s106
      %s109 = sphi 0, %s108
      %s123 = sphi 0, %s109
      %s127 = sphi 0, %s127
      %s129 = sphi 0, %s127
      %s130 = sphi 0, %s129
      %s144 = sphi 0, %s130
      %s148 = sphi 0, %s148
      %s150 = sphi 0, %s148
      %s151 = sphi 0, %s150
      %s165 = sphi 0, %s151
      %s169 = sphi 0, %s169
      %s171 = sphi 0, %s169
      %s172 = sphi 0, %s171
      %s186 = sphi 0, %s172
      %s194 = sphi 0, %s196
      %s197 = sphi 0, %s194
      %s198 = sphi 0, %s197
      %s214 = sphi 0, %s198
    $region4: #{block_forward.5} parent=1 // loop_header_branch
      %19 = sbr.rel (%p17) target = $region8
    $region5: #{block_forward.5} parent=1 // loop_body
      %s21 = ssub.s32 %s16, 1
      %s22 = ssub.s32 %s16, 2
      %s29 = sadd.s32 1, %s24
      %p30 = scmp.ge.s32.totalorder %s29, 4
      %s31 = scalar_select %p30, 0, %s29
      %s32 = sadd.s32 1, %s23
      %s33 = scalar_select %p30, %s32, %s23
      %p34 = scmp.ge.s32.totalorder %s33, 1
      %s35 = scalar_select %p34, 0, %s33
      %s36 = ssub.s32 %s24, %s31
      %s37 = ssub.s32 %s23, %s35
      %s38 = sor.u32 %s36, %s37
      %p39 = scmp.eq.s32.totalorder %s38, 0
      %s41 = sadd.s32 %s40, 1
      %s42 = scalar_select %p39, %s40, %s41
      %p45 = pneg %p39
      %p46 = scmp.eq.s32.totalorder %s16, 3
      %p47 = por %p45, %p46
      %p48 = scmp.ne.s32.totalorder %s40, %s43
      %p49 = scmp.eq.s32.totalorder %s16, 0
      %p50 = por %p48, %p49
      %p51 = scmp.ne.s32.totalorder %s40, %s43
      %p52 = scmp.eq.s32.totalorder %s21, 3
      %p53 = por %p51, %p52
      %p54 = scmp.ne.s32.totalorder %s43, %s44
      %p55 = scmp.eq.s32.totalorder %s21, 0
      %p56 = por %p54, %p55
      %p57 = scmp.ne.s32.totalorder %s43, %s44
      %p58 = scmp.eq.s32.totalorder %s22, 3
      %p59 = por %p57, %p58
      %p61 = scmp.ne.s32.totalorder %s44, %s60
      %p62 = scmp.eq.s32.totalorder %s22, 0
      %p63 = por %p61, %p62
      %s65 = sadd.s32 %s64, 1
      %p68 = scmp.eq.s32.totalorder %s16, 3
      %p69 = scmp.ne.s32.totalorder %s64, %s66
      %p70 = scmp.eq.s32.totalorder %s16, 0
      %p71 = por %p69, %p70
      %p72 = scmp.ne.s32.totalorder %s64, %s66
      %p73 = scmp.eq.s32.totalorder %s21, 3
      %p74 = por %p72, %p73
      %p75 = scmp.ne.s32.totalorder %s66, %s67
      %p76 = scmp.eq.s32.totalorder %s21, 0
      %p77 = por %p75, %p76
      %p78 = scmp.ne.s32.totalorder %s66, %s67
      %p79 = scmp.eq.s32.totalorder %s22, 3
      %p80 = por %p78, %p79
      %p82 = scmp.ne.s32.totalorder %s67, %s81
      %p83 = scmp.eq.s32.totalorder %s22, 0
      %p84 = por %p82, %p83
      %s86 = sadd.s32 %s85, 1
      %p89 = scmp.eq.s32.totalorder %s16, 3
      %p90 = scmp.ne.s32.totalorder %s85, %s87
      %p91 = scmp.eq.s32.totalorder %s16, 0
      %p92 = por %p90, %p91
      %p93 = scmp.ne.s32.totalorder %s85, %s87
      %p94 = scmp.eq.s32.totalorder %s21, 3
      %p95 = por %p93, %p94
      %p96 = scmp.ne.s32.totalorder %s87, %s88
      %p97 = scmp.eq.s32.totalorder %s21, 0
      %p98 = por %p96, %p97
      %p99 = scmp.ne.s32.totalorder %s87, %s88
      %p100 = scmp.eq.s32.totalorder %s22, 3
      %p101 = por %p99, %p100
      %p103 = scmp.ne.s32.totalorder %s88, %s102
      %p104 = scmp.eq.s32.totalorder %s22, 0
      %p105 = por %p103, %p104
      %s107 = sadd.s32 %s106, 1
      %p110 = scmp.eq.s32.totalorder %s16, 3
      %p111 = scmp.ne.s32.totalorder %s106, %s108
      %p112 = scmp.eq.s32.totalorder %s16, 0
      %p113 = por %p111, %p112
      %p114 = scmp.ne.s32.totalorder %s106, %s108
      %p115 = scmp.eq.s32.totalorder %s21, 3
      %p116 = por %p114, %p115
      %p117 = scmp.ne.s32.totalorder %s108, %s109
      %p118 = scmp.eq.s32.totalorder %s21, 0
      %p119 = por %p117, %p118
      %p120 = scmp.ne.s32.totalorder %s108, %s109
      %p121 = scmp.eq.s32.totalorder %s22, 3
      %p122 = por %p120, %p121
      %p124 = scmp.ne.s32.totalorder %s109, %s123
      %p125 = scmp.eq.s32.totalorder %s22, 0
      %p126 = por %p124, %p125
      %s128 = sadd.s32 %s127, 1
      %p131 = scmp.eq.s32.totalorder %s16, 3
      %p132 = scmp.ne.s32.totalorder %s127, %s129
      %p133 = scmp.eq.s32.totalorder %s16, 0
      %p134 = por %p132, %p133
      %p135 = scmp.ne.s32.totalorder %s127, %s129
      %p136 = scmp.eq.s32.totalorder %s21, 3
      %p137 = por %p135, %p136
      %p138 = scmp.ne.s32.totalorder %s129, %s130
      %p139 = scmp.eq.s32.totalorder %s21, 0
      %p140 = por %p138, %p139
      %p141 = scmp.ne.s32.totalorder %s129, %s130
      %p142 = scmp.eq.s32.totalorder %s22, 3
      %p143 = por %p141, %p142
      %p145 = scmp.ne.s32.totalorder %s130, %s144
      %p146 = scmp.eq.s32.totalorder %s22, 0
      %p147 = por %p145, %p146
      %s149 = sadd.s32 %s148, 1
      %p152 = scmp.eq.s32.totalorder %s16, 3
      %p153 = scmp.ne.s32.totalorder %s148, %s150
      %p154 = scmp.eq.s32.totalorder %s16, 0
      %p155 = por %p153, %p154
      %p156 = scmp.ne.s32.totalorder %s148, %s150
      %p157 = scmp.eq.s32.totalorder %s21, 3
      %p158 = por %p156, %p157
      %p159 = scmp.ne.s32.totalorder %s150, %s151
      %p160 = scmp.eq.s32.totalorder %s21, 0
      %p161 = por %p159, %p160
      %p162 = scmp.ne.s32.totalorder %s150, %s151
      %p163 = scmp.eq.s32.totalorder %s22, 3
      %p164 = por %p162, %p163
      %p166 = scmp.ne.s32.totalorder %s151, %s165
      %p167 = scmp.eq.s32.totalorder %s22, 0
      %p168 = por %p166, %p167
      %s170 = sadd.s32 %s169, 1
      %p173 = scmp.eq.s32.totalorder %s16, 3
      %p174 = scmp.ne.s32.totalorder %s169, %s171
      %p175 = scmp.eq.s32.totalorder %s16, 0
      %p176 = por %p174, %p175
      %p177 = scmp.ne.s32.totalorder %s169, %s171
      %p178 = scmp.eq.s32.totalorder %s21, 3
      %p179 = por %p177, %p178
      %p180 = scmp.ne.s32.totalorder %s171, %s172
      %p181 = scmp.eq.s32.totalorder %s21, 0
      %p182 = por %p180, %p181
      %p183 = scmp.ne.s32.totalorder %s171, %s172
      %p184 = scmp.eq.s32.totalorder %s22, 3
      %p185 = por %p183, %p184
      %p187 = scmp.ne.s32.totalorder %s172, %s186
      %p188 = scmp.eq.s32.totalorder %s22, 0
      %p189 = por %p187, %p188
      %s190 = ssub.s32 %s24, %s31
      %s191 = ssub.s32 %s23, %s35
      %s192 = sor.u32 %s190, %s191
      %p193 = scmp.eq.s32.totalorder %s192, 0
      %s195 = sadd.s32 %s194, 1
      %s196 = scalar_select %p193, %s194, %s195
      %p199 = pneg %p193
      %p200 = scmp.eq.s32.totalorder %s16, 3
      %p201 = por %p199, %p200
      %p202 = scmp.ne.s32.totalorder %s194, %s197
      %p203 = scmp.eq.s32.totalorder %s16, 0
      %p204 = por %p202, %p203
      %p205 = scmp.ne.s32.totalorder %s194, %s197
      %p206 = scmp.eq.s32.totalorder %s21, 3
      %p207 = por %p205, %p206
      %p208 = scmp.ne.s32.totalorder %s197, %s198
      %p209 = scmp.eq.s32.totalorder %s21, 0
      %p210 = por %p208, %p209
      %p211 = scmp.ne.s32.totalorder %s197, %s198
      %p212 = scmp.eq.s32.totalorder %s22, 3
      %p213 = por %p211, %p212
      %p215 = scmp.ne.s32.totalorder %s198, %s214
      %p216 = scmp.eq.s32.totalorder %s22, 0
      %p217 = por %p215, %p216
      %p218 = scmp.le.s32.totalorder 1, %s16
      %p219 = scmp.lt.s32.totalorder %s16, 5
      %p220 = pnand %p218, %p219
      %p221 = pneg %p220
      // Predicated region
      $region9: #{block_forward.5} parent=5 // pred_check
        _
      $region10: #{block_forward.5} parent=5 // pred_check_branch
        %223 = sbr.rel (%p220) target = $region12
      $region11: #{block_forward.5} parent=5 // pred_region
        %s224 = ssub.s32 %s16, 1
        // Predicated region
        $region13: #{block_forward.5} parent=11 // pred_check
          %p225 = pneg %p77
        $region14: #{block_forward.5} parent=11 // pred_check_branch
          %227 = sbr.rel (%p225) target = $region16
        $region15: #{block_forward.5} parent=11 // pred_region
          _
        $region16: #{block_forward.5} parent=11 // pred_fallthru
          _
        // Predicated region
        $region17: #{block_forward.5} parent=11 // pred_check
          %p228 = pneg %p98
        $region18: #{block_forward.5} parent=11 // pred_check_branch
          %230 = sbr.rel (%p228) target = $region20
        $region19: #{block_forward.5} parent=11 // pred_region
          _
        $region20: #{block_forward.5} parent=11 // pred_fallthru
          _
        // Predicated region
        $region21: #{block_forward.5} parent=11 // pred_check
          %p231 = pneg %p119
        $region22: #{block_forward.5} parent=11 // pred_check_branch
          %233 = sbr.rel (%p231) target = $region24
        $region23: #{block_forward.5} parent=11 // pred_region
          _
        $region24: #{block_forward.5} parent=11 // pred_fallthru
          _
        // Predicated region
        $region25: #{block_forward.5} parent=11 // pred_check
          %p234 = pneg %p140
        $region26: #{block_forward.5} parent=11 // pred_check_branch
          %236 = sbr.rel (%p234) target = $region28
        $region27: #{block_forward.5} parent=11 // pred_region
          _
        $region28: #{block_forward.5} parent=11 // pred_fallthru
          _
        // Predicated region
        $region29: #{block_forward.5} parent=11 // pred_check
          %p237 = pneg %p161
        $region30: #{block_forward.5} parent=11 // pred_check_branch
          %239 = sbr.rel (%p237) target = $region32
        $region31: #{block_forward.5} parent=11 // pred_region
          _
        $region32: #{block_forward.5} parent=11 // pred_fallthru
          _
        // Predicated region
        $region33: #{block_forward.5} parent=11 // pred_check
          %p240 = pneg %p182
        $region34: #{block_forward.5} parent=11 // pred_check_branch
          %242 = sbr.rel (%p240) target = $region36
        $region35: #{block_forward.5} parent=11 // pred_region
          _
        $region36: #{block_forward.5} parent=11 // pred_fallthru
          _
      $region12: #{block_forward.5} parent=5 // pred_fallthru
        _
      %p243 = scmp.lt.s32.totalorder %s16, 4
      // Predicated region
      $region37: #{block_forward.5} parent=5 // pred_check
        %p244 = pneg %p243
      $region38: #{block_forward.5} parent=5 // pred_check_branch
        %246 = sbr.rel (%p244) target = $region40
      $region39: #{block_forward.5} parent=5 // pred_region
        // Predicated region
        $region41: #{block_forward.5} parent=39 // pred_check
          %p247 = pneg %p50
        $region42: #{block_forward.5} parent=39 // pred_check_branch
          %249 = sbr.rel (%p247) target = $region44
        $region43: #{block_forward.5} parent=39 // pred_region
          %s250 = smul.u32 2, %s23
          %p251 = scmp.lt.s32.totalorder %s24, 3
          %s252 = scalar_select %p251, %s24, 3
          %p253 = scmp.lt.s32.totalorder %s250, 1
          %s254 = scalar_select %p253, %s250, 1
          %s255 = smul.addr %s252, 2
          %s256 = sadd.s32 %s254, %s255
          %s257 = smul.addr %s256, 8
          %s258 = scalar_lea.vmem %s0, %s257
          %s259 = smul.u32 2, %s23
        $region44: #{block_forward.5} parent=39 // pred_fallthru
          _
      $region40: #{block_forward.5} parent=5 // pred_fallthru
        _
      %p260 = scmp.le.s32.totalorder 1, %s16
      %p261 = scmp.lt.s32.totalorder %s16, 5
      %p262 = pnand %p260, %p261
      %p263 = pneg %p262
      // Predicated region
      $region45: #{block_forward.5} parent=5 // pred_check
        _
      $region46: #{block_forward.5} parent=5 // pred_check_branch
        %265 = sbr.rel (%p262) target = $region48
      $region47: #{block_forward.5} parent=5 // pred_region
        %s266 = ssub.s32 %s16, 1
        %s267 = smul.u32 2, %s25
        %p268 = scmp.lt.s32.totalorder %s26, 3
        %s269 = scalar_select %p268, %s26, 3
        %p270 = scmp.lt.s32.totalorder %s267, 1
        %s271 = scalar_select %p270, %s267, 1
        %s272 = smul.addr %s269, 2
        %s273 = sadd.s32 %s271, %s272
        %s274 = smul.addr %s273, 8
        %s275 = scalar_lea.vmem %s0, %s274
        %p276 = pneg %p56
        %p277 = pneg %p53
        %p278 = pneg %p77
        %p279 = pneg %p74
        %p280 = pneg %p98
        %p281 = pneg %p95
        %p282 = pneg %p119
        %p283 = pneg %p116
        %p284 = pneg %p140
        %p285 = pneg %p137
        %p286 = pneg %p161
        %p287 = pneg %p158
        %p288 = pneg %p182
        %p289 = pneg %p179
        %p290 = pneg %p210
        %p291 = pneg %p207
        %s292 = sand.u32 %s197, 1
        %s293 = scalar_lea.sflag [#allocation5], %s292
        %s294 = sand.u32 %s197, 1
        %s295 = smul.addr %s294, 16
        %s296 = scalar_lea.vmem [#allocation4], %s295
        %s297 = smul.u32 2, %s25
        %p298 = scmp.lt.s32.totalorder %s26, 3
        %s299 = scalar_select %p298, %s26, 3
        %p300 = scmp.lt.s32.totalorder %s297, 1
        %s301 = scalar_select %p300, %s297, 1
        %s302 = smul.addr %s299, 2
        %s303 = sadd.s32 %s301, %s302
        %s304 = smul.addr %s303, 8
        %s305 = scalar_lea.vmem %s0, %s304
        %s306 = smul.u32 2, %s25
        %s307 = smul.u32 2, %s25
        %p309 = scmp.eq.s32.totalorder %s26, 0
        // Predicated region
        $region49: #{block_forward.5} parent=47 // pred_check
          %p310 = pneg %p309
        $region50: #{block_forward.5} parent=47 // pred_check_branch
          %312 = sbr.rel (%p310) target = $region52
        $region51: #{block_forward.5} parent=47 // pred_region
          %313 = vst [vmem:[#allocation2] sm:$0xff] 0.0
          %314 = vst [vmem:[#allocation2 + $0x8] sm:$0xff] 0.0
          %vm315 = vcmask 261120
          %316 = vst.msk [vmem:[#allocation3] sm:$0xff] %vm315, 0.0
          %317 = vst.msk [vmem:[#allocation3 + $0x8] sm:$0xff] %vm315, 0.0
        $region52: #{block_forward.5} parent=47 // pred_fallthru
          _
        %v318 = vld [vmem:[%s305] sm:$0xff]
        %v319 = vld [vmem:[%s305 + $0x8] sm:$0xff]
        %v320 = vpack.c.bf16 %v319, %v318
        %v321 = vld [vmem:[%s1] sm:$0xf]
        %v322 = vld [vmem:[%s1 + $0x4] sm:$0xf]
        %v323 = vld [vmem:[%s1 + $0x8] sm:$0xf]
        %v324 = vld [vmem:[%s1 + $0xc] sm:$0xf]
        %v329 = vunpack.c.l.b16 %v321
        %v330 = vunpack.c.l.b16 %v322
        %v331 = vunpack.c.l.b16 %v323
        %v332 = vunpack.c.l.b16 %v324
        %v333 = vpack.c.b16 %v330, %v329
        %v334 = vpack.c.b16 %v332, %v331
        %vm337 = vcmask 261120
        %v339 = vsel %vm337, %v320, 0
        %341 = vmatprep.subr.bf16.mxu0 0
        %342 = vmatpush1.bf16.msra.mxu0 %v333
        %343 = vmatprep.subr.bf16.mxu0 0
        %344 = vmatpush1.bf16.msra.mxu0 %v334
        %345 = vmatprep.subr.bf16.mxu0 0
        %346 = vmatpush1.bf16.msra.mxu0 0
        %347 = vmatprep.subr.bf16.mxu0 0
        %348 = vmatpush1.bf16.msra.mxu0 0
        %349 = vmatprep.subr.bf16.mxu0 0
        %350 = vmatpush1.bf16.msra.mxu0 0
        %351 = vmatprep.subr.bf16.mxu0 0
        %352 = vmatpush1.bf16.msra.mxu0 0
        %353 = vmatprep.subr.bf16.mxu0 0
        %354 = vmatpush1.bf16.msra.mxu0 0
        %355 = vmatprep.subr.bf16.mxu0 0
        %356 = vmatpush1.bf16.msra.mxu0 0
        %357 = vmatprep.subr.bf16.mxu0 0
        %358 = vmatpush1.bf16.msra.mxu0 0
        %359 = vmatprep.subr.bf16.mxu0 0
        %360 = vmatpush1.bf16.msra.mxu0 0
        %361 = vmatprep.subr.bf16.mxu0 0
        %362 = vmatpush1.bf16.msra.mxu0 0
        %363 = vmatprep.subr.bf16.mxu0 0
        %364 = vmatpush1.bf16.msra.mxu0 0
        %365 = vmatprep.subr.bf16.mxu0 0
        %366 = vmatpush1.bf16.msra.mxu0 0
        %367 = vmatprep.subr.bf16.mxu0 0
        %368 = vmatpush1.bf16.msra.mxu0 0
        %369 = vmatprep.subr.bf16.mxu0 0
        %370 = vmatpush1.bf16.msra.mxu0 0
        %371 = vmatprep.subr.bf16.mxu0 0
        %372 = vmatpush1.bf16.msra.mxu0 0
        %373 = vmatprep.mubr.bf16.mxu0 0
        %374 = vmatmul.mubr.bf16.gmra.mrb[0].mxu0 %v339
        %v375 = vpop.f32.mrb[0].mxu0
        %v376 = vadd.f32 0.0, %v375
        %v377 = vpop.f32.mrb[0].mxu0
        %v378 = vpop.f32.mrb[0].mxu0
        %v379 = vadd.f32 0.0, %v378
        %v380 = vpop.f32.mrb[0].mxu0
        %381 = vdwg.mxu0
        %v382 = vld [vmem:[%s2] sm:$0x1]
        %v384 = vlaneseq
        %v385 = vshrl.u32 %v384, 7
        %v386 = vsub.s32 0, %v385
        %v387 = vrot.slane %v382, %v386
        %v389 = vmul.f32 %v376, %v387
        %v390 = vmul.f32 %v379, %v387
        %v391 = vld [vmem:[%s3] sm:$0x1]
        %v393 = vlaneseq
        %v394 = vshrl.u32 %v393, 7
        %v395 = vsub.s32 0, %v394
        %v396 = vrot.slane %v391, %v395
        %v398 = vadd.f32 %v389, %v396
        %v399 = vadd.f32 %v390, %v396
        %v400 = vld [vmem:[#allocation2] sm:$0xff]
        %v401 = vld [vmem:[#allocation2 + $0x8] sm:$0xff]
        %v402 = vsub.f32 %v398, %v400
        %v403 = vsub.f32 %v399, %v401
        %v404 = vmul.f32 %v402, 0.5
        %v405 = vmul.f32 %v403, 0.5
        %v406 = vadd.f32 %v400, %v404
        %v407 = vadd.f32 %v401, %v405
        %vm408 = vcmp.ge.f32.partialorder %v406, 1.0
        %vm409 = vcmp.ge.f32.partialorder %v407, 1.0
        %v410 = vsel %vm408, 1, 0
        %v411 = vsel %vm409, 1, 0
        %v412 = vcvt.s32.f32 %v410
        %v413 = vcvt.s32.f32 %v411
        %v414 = vsub.f32 1.0, %v412
        %v415 = vsub.f32 1.0, %v413
        %v416 = vmul.f32 %v406, %v414
        %v417 = vmul.f32 %v407, %v415
        %418 = vst [vmem:[#allocation2] sm:$0xff] %v416
        %419 = vst [vmem:[#allocation2 + $0x8] sm:$0xff] %v417
        %v420 = vpack.c.bf16 %v413, %v412
        %v421 = vld [vmem:[%s4] sm:$0xf]
        %v422 = vld [vmem:[%s4 + $0x4] sm:$0xf]
        %v423 = vld [vmem:[%s4 + $0x8] sm:$0xf]
        %v424 = vld [vmem:[%s4 + $0xc] sm:$0xf]
        %v425 = vld [vmem:[%s4 + $0x10] sm:$0xf]
        %v426 = vld [vmem:[%s4 + $0x14] sm:$0xf]
        %v427 = vld [vmem:[%s4 + $0x18] sm:$0xf]
        %v428 = vld [vmem:[%s4 + $0x1c] sm:$0xf]
        %v429 = vld [vmem:[%s4 + $0x20] sm:$0xf]
        %v430 = vld [vmem:[%s4 + $0x24] sm:$0xf]
        %v431 = vld [vmem:[%s4 + $0x28] sm:$0xf]
        %v432 = vld [vmem:[%s4 + $0x2c] sm:$0xf]
        %v433 = vld [vmem:[%s4 + $0x30] sm:$0xf]
        %v434 = vld [vmem:[%s4 + $0x34] sm:$0xf]
        %v435 = vld [vmem:[%s4 + $0x38] sm:$0xf]
        %v436 = vld [vmem:[%s4 + $0x3c] sm:$0xf]
        %v453 = vunpack.c.l.b16 %v421
        %v454 = vunpack.c.l.b16 %v422
        %v455 = vunpack.c.l.b16 %v423
        %v456 = vunpack.c.l.b16 %v424
        %v457 = vunpack.c.l.b16 %v425
        %v458 = vunpack.c.l.b16 %v426
        %v459 = vunpack.c.l.b16 %v427
        %v460 = vunpack.c.l.b16 %v428
        %v461 = vunpack.c.l.b16 %v429
        %v462 = vunpack.c.l.b16 %v430
        %v463 = vunpack.c.l.b16 %v431
        %v464 = vunpack.c.l.b16 %v432
        %v465 = vunpack.c.l.b16 %v433
        %v466 = vunpack.c.l.b16 %v434
        %v467 = vunpack.c.l.b16 %v435
        %v468 = vunpack.c.l.b16 %v436
        %v469 = vpack.c.b16 %v454, %v453
        %v470 = vpack.c.b16 %v456, %v455
        %v471 = vpack.c.b16 %v458, %v457
        %v472 = vpack.c.b16 %v460, %v459
        %v473 = vpack.c.b16 %v462, %v461
        %v474 = vpack.c.b16 %v464, %v463
        %v475 = vpack.c.b16 %v466, %v465
        %v476 = vpack.c.b16 %v468, %v467
        %485 = vmatprep.subr.bf16.mxu0 0
        %486 = vmatpush1.bf16.msra.mxu0 %v469
        %487 = vmatprep.subr.bf16.mxu0 0
        %488 = vmatpush1.bf16.msra.mxu0 %v470
        %489 = vmatprep.subr.bf16.mxu0 0
        %490 = vmatpush1.bf16.msra.mxu0 %v471
        %491 = vmatprep.subr.bf16.mxu0 0
        %492 = vmatpush1.bf16.msra.mxu0 %v472
        %493 = vmatprep.subr.bf16.mxu0 0
        %494 = vmatpush1.bf16.msra.mxu0 %v473
        %495 = vmatprep.subr.bf16.mxu0 0
        %496 = vmatpush1.bf16.msra.mxu0 %v474
        %497 = vmatprep.subr.bf16.mxu0 0
        %498 = vmatpush1.bf16.msra.mxu0 %v475
        %499 = vmatprep.subr.bf16.mxu0 0
        %500 = vmatpush1.bf16.msra.mxu0 %v476
        %501 = vmatprep.subr.bf16.mxu0 0
        %502 = vmatpush1.bf16.msra.mxu0 0
        %503 = vmatprep.subr.bf16.mxu0 0
        %504 = vmatpush1.bf16.msra.mxu0 0
        %505 = vmatprep.subr.bf16.mxu0 0
        %506 = vmatpush1.bf16.msra.mxu0 0
        %507 = vmatprep.subr.bf16.mxu0 0
        %508 = vmatpush1.bf16.msra.mxu0 0
        %509 = vmatprep.subr.bf16.mxu0 0
        %510 = vmatpush1.bf16.msra.mxu0 0
        %511 = vmatprep.subr.bf16.mxu0 0
        %512 = vmatpush1.bf16.msra.mxu0 0
        %513 = vmatprep.subr.bf16.mxu0 0
        %514 = vmatpush1.bf16.msra.mxu0 0
        %515 = vmatprep.subr.bf16.mxu0 0
        %516 = vmatpush1.bf16.msra.mxu0 0
        %517 = vmatprep.mubr.bf16.mxu0 0
        %518 = vmatmul.mubr.bf16.gmra.mrb[0].mxu0 %v420
        %v519 = vpop.f32.mrb[0].mxu0
        %v520 = vadd.f32 0.0, %v519
        %v521 = vpop.f32.mrb[0].mxu0
        %v522 = vpop.f32.mrb[0].mxu0
        %v523 = vadd.f32 0.0, %v522
        %v524 = vpop.f32.mrb[0].mxu0
        %525 = vdwg.mxu0
        %v526 = vld [vmem:[%s5] sm:$0x1]
        %v528 = vlaneseq
        %v529 = vshrl.u32 %v528, 7
        %v530 = vsub.s32 0, %v529
        %v531 = vrot.slane %v526, %v530
        %v533 = vmul.f32 %v520, %v531
        %v534 = vmul.f32 %v523, %v531
        %v535 = vld [vmem:[%s6] sm:$0x1]
        %v537 = vlaneseq
        %v538 = vshrl.u32 %v537, 7
        %v539 = vsub.s32 0, %v538
        %v540 = vrot.slane %v535, %v539
        %v542 = vadd.f32 %v533, %v540
        %v543 = vadd.f32 %v534, %v540
        %v544 = vld [vmem:[#allocation3] sm:$0xff]
        %v545 = vld [vmem:[#allocation3 + $0x8] sm:$0xff]
        %v546 = vsub.f32 %v542, %v544
        %v547 = vsub.f32 %v543, %v545
        %v548 = vmul.f32 %v546, 0.5
        %v549 = vmul.f32 %v547, 0.5
        %v550 = vadd.f32 %v544, %v548
        %v551 = vadd.f32 %v545, %v549
        %vm552 = vcmp.ge.f32.partialorder %v550, 1.0
        %vm553 = vcmp.ge.f32.partialorder %v551, 1.0
        %v554 = vsel %vm552, 1, 0
        %v555 = vsel %vm553, 1, 0
        %v556 = vcvt.s32.f32 %v554
        %v557 = vcvt.s32.f32 %v555
        %v558 = vsub.f32 1.0, %v556
        %v559 = vsub.f32 1.0, %v557
        %v560 = vmul.f32 %v550, %v558
        %v561 = vmul.f32 %v551, %v559
        %562 = vst.msk [vmem:[#allocation3] sm:$0xff] %vm337, %v560
        %563 = vst.msk [vmem:[#allocation3 + $0x8] sm:$0xff] %vm337, %v561
        %v564 = vadd.f32 %v318, %v556
        %v565 = vadd.f32 %v319, %v557
        %566 = vst.msk [vmem:[%s296] sm:$0xff] %vm337, %v564
        %567 = vst.msk [vmem:[%s296 + $0x8] sm:$0xff] %vm337, %v565
        %s568 = sand.u32 %s197, 1
        %s569 = scalar_lea.sflag [#allocation5], %s568
        %s570 = sand.u32 %s197, 1
        %s571 = smul.addr %s570, 16
        %s572 = scalar_lea.vmem [#allocation4], %s571
        // Predicated region
        $region53: #{block_forward.5} parent=47 // pred_check
          %p573 = pneg %p207
        $region54: #{block_forward.5} parent=47 // pred_check_branch
          %575 = sbr.rel (%p573) target = $region56
        $region55: #{block_forward.5} parent=47 // pred_region
          %s576 = smul.u32 2, %s25
          %s578 = ssub.s32 256, 256
          %579 = vsyncadd %s569, %s578
          %s580 = smul.addr %s26, 2
          %s581 = sadd.s32 %s576, %s580
          %s582 = smul.addr %s581, 128
          %s583 = scalar_lea.hbm %s7, %s582
          %s584 = sshll.u32 %s572, 4
          %s585 = int_to_ptr.vmem [resolvable:$true] %s584
          %590 = dma.vmem_to_hbm [thread:$0]  %s585, 256, %s583, %s569, 128, 128, 8
        $region56: #{block_forward.5} parent=47 // pred_fallthru
          _
      $region48: #{block_forward.5} parent=5 // pred_fallthru
        _
      %p591 = scmp.le.s32.totalorder 2, %s16
      // Predicated region
      $region57: #{block_forward.5} parent=5 // pred_check
        %p592 = pneg %p591
      $region58: #{block_forward.5} parent=5 // pred_check_branch
        %594 = sbr.rel (%p592) target = $region60
      $region59: #{block_forward.5} parent=5 // pred_region
        %s595 = ssub.s32 %s16, 2
        // Predicated region
        $region61: #{block_forward.5} parent=59 // pred_check
          %p596 = pneg %p213
        $region62: #{block_forward.5} parent=59 // pred_check_branch
          %598 = sbr.rel (%p596) target = $region64
        $region63: #{block_forward.5} parent=59 // pred_region
          %s599 = sand.u32 %s198, 1
          %s600 = scalar_lea.sflag [#allocation5], %s599
          %s601 = sand.u32 %s198, 1
          %s602 = smul.addr %s601, 16
          %s603 = scalar_lea.vmem [#allocation4], %s602
          %604 = dma.done %s600, 256
        $region64: #{block_forward.5} parent=59 // pred_fallthru
          _
      $region60: #{block_forward.5} parent=5 // pred_fallthru
        _
    $region6: #{block_forward.5} parent=1 // loop_footer
      %s20 = sadd.s32 1, %s16
    $region7: #{block_forward.5} parent=1 // loop_footer_branch
      %15 = sbr.rel target = $region3
    $region8: #{block_forward.5} parent=1 // loop_exit
      _
    %605 = vsyncpa [#allocation5], 1
    %s606 = scalar_lea.sflag [#allocation5], 1
    %607 = vsyncpa %s606, 1

// kernel: block_forward.4
$region0: #{block_forward.4}
  #allocation0 [shape = 'u32[]', space=smem, size = 0x4, offset = 0x4, fixed_abs, tag = 'smem constant byte address 0x4 - core index']
  #allocation1 [shape = 'u32[144,128]{1,0:T(1,128)}', space=vmem, size = 0x12000, scoped, tag = 'internal scratch']
  #allocation2 [shape = 'f32[16,32]{1,0:T(8,128)}', space=vmem, size = 0x2000, scoped, tag = 'scratch operand']
  #allocation3 [shape = 'f32[16,32]{1,0:T(8,128)}', space=vmem, size = 0x2000, scoped, tag = 'scratch operand']
  %s0 = inlined_call_operand.vmem [shape: s8[4,2,8,96], index: 0, kind: input, shape index: {}]
  %s1 = inlined_call_operand.vmem [shape: f32[4,2,8,32], index: 1, kind: input, shape index: {}]
  %s2 = inlined_call_operand.vmem [shape: bf16[32,32], index: 2, kind: input, shape index: {}]
  %s3 = inlined_call_operand.vmem [shape: f32[1,32], index: 3, kind: input, shape index: {}]
  %s4 = inlined_call_operand.vmem [shape: f32[1,32], index: 4, kind: input, shape index: {}]
  %s5 = inlined_call_operand.hbm [shape: bf16[4,2,4,8,8], index: 5, kind: output, shape index: {0}]
  %s6 = inlined_call_operand.vmem [shape: f32[4,2,8,32], index: 6, kind: output, shape index: {1}]
  %7 = xla_tuple %s5, %s6
  %s8 = sld [smem:[#allocation0]]
  $region65: #{block_forward.4} parent=0
    _
  %s10 = ssub.s32 1, %s8
  %s11 = scalar_select 0, %s10, %s8
  $region1: #{block_forward.4} parent=0
    #allocation4 [shape = 'u8[32768]{0}', space=vmem, size = 0x8000, scoped, tag = 'output window, operand 0']
    #allocation5 [shape = 's32[2]{0}', space=sflag, size = 0x8, scoped, tag = 'scoped memory for block_forward.4']
    %12 = vsyncpa [#allocation5], 0
    %s13 = scalar_lea.sflag [#allocation5], 1
    %14 = vsyncpa %s13, 0
    loop: start=0, step=1, limit=6
    $region2: #{block_forward.4} parent=1 // loop_pre_header
      _
    $region3: #{block_forward.4} parent=1 // loop_header
      %s16 = sphi 0, %s20
      %p17 = scmp.ge.s32.totalorder %s16, 6
      %s23 = sphi 0, %s35
      %s24 = sphi 0, %s31
      %s25 = sphi 0, %s23
      %s26 = sphi 0, %s24
      %s27 = sphi 0, %s25
      %s28 = sphi 0, %s26
      %s40 = sphi 0, %s42
      %s43 = sphi 0, %s40
      %s44 = sphi 0, %s43
      %s60 = sphi 0, %s44
      %s68 = sphi 0, %s70
      %s71 = sphi 0, %s68
      %s72 = sphi 0, %s71
      %s88 = sphi 0, %s72
      %s92 = sphi 0, %s92
      %s94 = sphi 0, %s92
      %s95 = sphi 0, %s94
      %s109 = sphi 0, %s95
      %s113 = sphi 0, %s113
      %s115 = sphi 0, %s113
      %s116 = sphi 0, %s115
      %s130 = sphi 0, %s116
      %s134 = sphi 0, %s134
      %s136 = sphi 0, %s134
      %s137 = sphi 0, %s136
      %s151 = sphi 0, %s137
      %s159 = sphi 0, %s161
      %s162 = sphi 0, %s159
      %s163 = sphi 0, %s162
      %s179 = sphi 0, %s163
      %s187 = sphi 0, %s189
      %s190 = sphi 0, %s187
      %s191 = sphi 0, %s190
      %s207 = sphi 0, %s191
    $region4: #{block_forward.4} parent=1 // loop_header_branch
      %19 = sbr.rel (%p17) target = $region8
    $region5: #{block_forward.4} parent=1 // loop_body
      %s21 = ssub.s32 %s16, 1
      %s22 = ssub.s32 %s16, 2
      %s29 = sadd.s32 1, %s24
      %p30 = scmp.ge.s32.totalorder %s29, 4
      %s31 = scalar_select %p30, 0, %s29
      %s32 = sadd.s32 1, %s23
      %s33 = scalar_select %p30, %s32, %s23
      %p34 = scmp.ge.s32.totalorder %s33, 1
      %s35 = scalar_select %p34, 0, %s33
      %s36 = ssub.s32 %s24, %s31
      %s37 = ssub.s32 %s23, %s35
      %s38 = sor.u32 %s36, %s37
      %p39 = scmp.eq.s32.totalorder %s38, 0
      %s41 = sadd.s32 %s40, 1
      %s42 = scalar_select %p39, %s40, %s41
      %p45 = pneg %p39
      %p46 = scmp.eq.s32.totalorder %s16, 3
      %p47 = por %p45, %p46
      %p48 = scmp.ne.s32.totalorder %s40, %s43
      %p49 = scmp.eq.s32.totalorder %s16, 0
      %p50 = por %p48, %p49
      %p51 = scmp.ne.s32.totalorder %s40, %s43
      %p52 = scmp.eq.s32.totalorder %s21, 3
      %p53 = por %p51, %p52
      %p54 = scmp.ne.s32.totalorder %s43, %s44
      %p55 = scmp.eq.s32.totalorder %s21, 0
      %p56 = por %p54, %p55
      %p57 = scmp.ne.s32.totalorder %s43, %s44
      %p58 = scmp.eq.s32.totalorder %s22, 3
      %p59 = por %p57, %p58
      %p61 = scmp.ne.s32.totalorder %s44, %s60
      %p62 = scmp.eq.s32.totalorder %s22, 0
      %p63 = por %p61, %p62
      %s64 = ssub.s32 %s24, %s31
      %s65 = ssub.s32 %s23, %s35
      %s66 = sor.u32 %s64, %s65
      %p67 = scmp.eq.s32.totalorder %s66, 0
      %s69 = sadd.s32 %s68, 1
      %s70 = scalar_select %p67, %s68, %s69
      %p73 = pneg %p67
      %p74 = scmp.eq.s32.totalorder %s16, 3
      %p75 = por %p73, %p74
      %p76 = scmp.ne.s32.totalorder %s68, %s71
      %p77 = scmp.eq.s32.totalorder %s16, 0
      %p78 = por %p76, %p77
      %p79 = scmp.ne.s32.totalorder %s68, %s71
      %p80 = scmp.eq.s32.totalorder %s21, 3
      %p81 = por %p79, %p80
      %p82 = scmp.ne.s32.totalorder %s71, %s72
      %p83 = scmp.eq.s32.totalorder %s21, 0
      %p84 = por %p82, %p83
      %p85 = scmp.ne.s32.totalorder %s71, %s72
      %p86 = scmp.eq.s32.totalorder %s22, 3
      %p87 = por %p85, %p86
      %p89 = scmp.ne.s32.totalorder %s72, %s88
      %p90 = scmp.eq.s32.totalorder %s22, 0
      %p91 = por %p89, %p90
      %s93 = sadd.s32 %s92, 1
      %p96 = scmp.eq.s32.totalorder %s16, 3
      %p97 = scmp.ne.s32.totalorder %s92, %s94
      %p98 = scmp.eq.s32.totalorder %s16, 0
      %p99 = por %p97, %p98
      %p100 = scmp.ne.s32.totalorder %s92, %s94
      %p101 = scmp.eq.s32.totalorder %s21, 3
      %p102 = por %p100, %p101
      %p103 = scmp.ne.s32.totalorder %s94, %s95
      %p104 = scmp.eq.s32.totalorder %s21, 0
      %p105 = por %p103, %p104
      %p106 = scmp.ne.s32.totalorder %s94, %s95
      %p107 = scmp.eq.s32.totalorder %s22, 3
      %p108 = por %p106, %p107
      %p110 = scmp.ne.s32.totalorder %s95, %s109
      %p111 = scmp.eq.s32.totalorder %s22, 0
      %p112 = por %p110, %p111
      %s114 = sadd.s32 %s113, 1
      %p117 = scmp.eq.s32.totalorder %s16, 3
      %p118 = scmp.ne.s32.totalorder %s113, %s115
      %p119 = scmp.eq.s32.totalorder %s16, 0
      %p120 = por %p118, %p119
      %p121 = scmp.ne.s32.totalorder %s113, %s115
      %p122 = scmp.eq.s32.totalorder %s21, 3
      %p123 = por %p121, %p122
      %p124 = scmp.ne.s32.totalorder %s115, %s116
      %p125 = scmp.eq.s32.totalorder %s21, 0
      %p126 = por %p124, %p125
      %p127 = scmp.ne.s32.totalorder %s115, %s116
      %p128 = scmp.eq.s32.totalorder %s22, 3
      %p129 = por %p127, %p128
      %p131 = scmp.ne.s32.totalorder %s116, %s130
      %p132 = scmp.eq.s32.totalorder %s22, 0
      %p133 = por %p131, %p132
      %s135 = sadd.s32 %s134, 1
      %p138 = scmp.eq.s32.totalorder %s16, 3
      %p139 = scmp.ne.s32.totalorder %s134, %s136
      %p140 = scmp.eq.s32.totalorder %s16, 0
      %p141 = por %p139, %p140
      %p142 = scmp.ne.s32.totalorder %s134, %s136
      %p143 = scmp.eq.s32.totalorder %s21, 3
      %p144 = por %p142, %p143
      %p145 = scmp.ne.s32.totalorder %s136, %s137
      %p146 = scmp.eq.s32.totalorder %s21, 0
      %p147 = por %p145, %p146
      %p148 = scmp.ne.s32.totalorder %s136, %s137
      %p149 = scmp.eq.s32.totalorder %s22, 3
      %p150 = por %p148, %p149
      %p152 = scmp.ne.s32.totalorder %s137, %s151
      %p153 = scmp.eq.s32.totalorder %s22, 0
      %p154 = por %p152, %p153
      %s155 = ssub.s32 %s24, %s31
      %s156 = ssub.s32 %s23, %s35
      %s157 = sor.u32 %s155, %s156
      %p158 = scmp.eq.s32.totalorder %s157, 0
      %s160 = sadd.s32 %s159, 1
      %s161 = scalar_select %p158, %s159, %s160
      %p164 = pneg %p158
      %p165 = scmp.eq.s32.totalorder %s16, 3
      %p166 = por %p164, %p165
      %p167 = scmp.ne.s32.totalorder %s159, %s162
      %p168 = scmp.eq.s32.totalorder %s16, 0
      %p169 = por %p167, %p168
      %p170 = scmp.ne.s32.totalorder %s159, %s162
      %p171 = scmp.eq.s32.totalorder %s21, 3
      %p172 = por %p170, %p171
      %p173 = scmp.ne.s32.totalorder %s162, %s163
      %p174 = scmp.eq.s32.totalorder %s21, 0
      %p175 = por %p173, %p174
      %p176 = scmp.ne.s32.totalorder %s162, %s163
      %p177 = scmp.eq.s32.totalorder %s22, 3
      %p178 = por %p176, %p177
      %p180 = scmp.ne.s32.totalorder %s163, %s179
      %p181 = scmp.eq.s32.totalorder %s22, 0
      %p182 = por %p180, %p181
      %s183 = ssub.s32 %s24, %s31
      %s184 = ssub.s32 %s23, %s35
      %s185 = sor.u32 %s183, %s184
      %p186 = scmp.eq.s32.totalorder %s185, 0
      %s188 = sadd.s32 %s187, 1
      %s189 = scalar_select %p186, %s187, %s188
      %p192 = pneg %p186
      %p193 = scmp.eq.s32.totalorder %s16, 3
      %p194 = por %p192, %p193
      %p195 = scmp.ne.s32.totalorder %s187, %s190
      %p196 = scmp.eq.s32.totalorder %s16, 0
      %p197 = por %p195, %p196
      %p198 = scmp.ne.s32.totalorder %s187, %s190
      %p199 = scmp.eq.s32.totalorder %s21, 3
      %p200 = por %p198, %p199
      %p201 = scmp.ne.s32.totalorder %s190, %s191
      %p202 = scmp.eq.s32.totalorder %s21, 0
      %p203 = por %p201, %p202
      %p204 = scmp.ne.s32.totalorder %s190, %s191
      %p205 = scmp.eq.s32.totalorder %s22, 3
      %p206 = por %p204, %p205
      %p208 = scmp.ne.s32.totalorder %s191, %s207
      %p209 = scmp.eq.s32.totalorder %s22, 0
      %p210 = por %p208, %p209
      %p211 = scmp.le.s32.totalorder 1, %s16
      %p212 = scmp.lt.s32.totalorder %s16, 5
      %p213 = pnand %p211, %p212
      %p214 = pneg %p213
      // Predicated region
      $region9: #{block_forward.4} parent=5 // pred_check
        _
      $region10: #{block_forward.4} parent=5 // pred_check_branch
        %216 = sbr.rel (%p213) target = $region12
      $region11: #{block_forward.4} parent=5 // pred_region
        %s217 = ssub.s32 %s16, 1
        // Predicated region
        $region13: #{block_forward.4} parent=11 // pred_check
          %p218 = pneg %p105
        $region14: #{block_forward.4} parent=11 // pred_check_branch
          %220 = sbr.rel (%p218) target = $region16
        $region15: #{block_forward.4} parent=11 // pred_region
          _
        $region16: #{block_forward.4} parent=11 // pred_fallthru
          _
        // Predicated region
        $region17: #{block_forward.4} parent=11 // pred_check
          %p221 = pneg %p126
        $region18: #{block_forward.4} parent=11 // pred_check_branch
          %223 = sbr.rel (%p221) target = $region20
        $region19: #{block_forward.4} parent=11 // pred_region
          _
        $region20: #{block_forward.4} parent=11 // pred_fallthru
          _
        // Predicated region
        $region21: #{block_forward.4} parent=11 // pred_check
          %p224 = pneg %p147
        $region22: #{block_forward.4} parent=11 // pred_check_branch
          %226 = sbr.rel (%p224) target = $region24
        $region23: #{block_forward.4} parent=11 // pred_region
          _
        $region24: #{block_forward.4} parent=11 // pred_fallthru
          _
      $region12: #{block_forward.4} parent=5 // pred_fallthru
        _
      %p227 = scmp.lt.s32.totalorder %s16, 4
      // Predicated region
      $region25: #{block_forward.4} parent=5 // pred_check
        %p228 = pneg %p227
      $region26: #{block_forward.4} parent=5 // pred_check_branch
        %230 = sbr.rel (%p228) target = $region28
      $region27: #{block_forward.4} parent=5 // pred_region
        // Predicated region
        $region29: #{block_forward.4} parent=27 // pred_check
          %p231 = pneg %p50
        $region30: #{block_forward.4} parent=27 // pred_check_branch
          %233 = sbr.rel (%p231) target = $region32
        $region31: #{block_forward.4} parent=27 // pred_region
          %s234 = smul.u32 2, %s23
          %p235 = scmp.lt.s32.totalorder %s24, 3
          %s236 = scalar_select %p235, %s24, 3
          %p237 = scmp.lt.s32.totalorder %s234, 1
          %s238 = scalar_select %p237, %s234, 1
          %s239 = smul.addr %s236, 2
          %s240 = sadd.s32 %s238, %s239
          %s241 = smul.addr %s240, 2
          %s242 = scalar_lea.vmem %s0, %s241
          %s243 = smul.u32 2, %s23
        $region32: #{block_forward.4} parent=27 // pred_fallthru
          _
        // Predicated region
        $region33: #{block_forward.4} parent=27 // pred_check
          %p244 = pneg %p78
        $region34: #{block_forward.4} parent=27 // pred_check_branch
          %246 = sbr.rel (%p244) target = $region36
        $region35: #{block_forward.4} parent=27 // pred_region
          %s247 = smul.u32 2, %s23
          %p248 = scmp.lt.s32.totalorder %s24, 3
          %s249 = scalar_select %p248, %s24, 3
          %p250 = scmp.lt.s32.totalorder %s247, 1
          %s251 = scalar_select %p250, %s247, 1
          %s252 = smul.addr %s249, 2
          %s253 = sadd.s32 %s251, %s252
          %s254 = smul.addr %s253, 8
          %s255 = scalar_lea.vmem %s1, %s254
          %s256 = smul.u32 2, %s23
        $region36: #{block_forward.4} parent=27 // pred_fallthru
          _
      $region28: #{block_forward.4} parent=5 // pred_fallthru
        _
      %p257 = scmp.le.s32.totalorder 1, %s16
      %p258 = scmp.lt.s32.totalorder %s16, 5
      %p259 = pnand %p257, %p258
      %p260 = pneg %p259
      // Predicated region
      $region37: #{block_forward.4} parent=5 // pred_check
        _
      $region38: #{block_forward.4} parent=5 // pred_check_branch
        %262 = sbr.rel (%p259) target = $region40
      $region39: #{block_forward.4} parent=5 // pred_region
        %s263 = ssub.s32 %s16, 1
        %s264 = smul.u32 2, %s25
        %p265 = scmp.lt.s32.totalorder %s26, 3
        %s266 = scalar_select %p265, %s26, 3
        %p267 = scmp.lt.s32.totalorder %s264, 1
        %s268 = scalar_select %p267, %s264, 1
        %s269 = smul.addr %s266, 2
        %s270 = sadd.s32 %s268, %s269
        %s271 = smul.addr %s270, 2
        %s272 = scalar_lea.vmem %s0, %s271
        %p273 = pneg %p56
        %p274 = pneg %p53
        %s275 = smul.u32 2, %s25
        %p276 = scmp.lt.s32.totalorder %s26, 3
        %s277 = scalar_select %p276, %s26, 3
        %p278 = scmp.lt.s32.totalorder %s275, 1
        %s279 = scalar_select %p278, %s275, 1
        %s280 = smul.addr %s277, 2
        %s281 = sadd.s32 %s279, %s280
        %s282 = smul.addr %s281, 8
        %s283 = scalar_lea.vmem %s1, %s282
        %p284 = pneg %p84
        %p285 = pneg %p81
        %p286 = pneg %p105
        %p287 = pneg %p102
        %p288 = pneg %p126
        %p289 = pneg %p123
        %p290 = pneg %p147
        %p291 = pneg %p144
        %p292 = pneg %p175
        %p293 = pneg %p172
        %s294 = sand.u32 %s162, 1
        %s295 = scalar_lea.sflag [#allocation5], %s294
        %s296 = sand.u32 %s162, 1
        %s297 = smul.addr %s296, 32
        %s298 = scalar_lea.vmem [#allocation4], %s297
        %p299 = pneg %p203
        %p300 = pneg %p200
        %s301 = smul.u32 2, %s25
        %p302 = scmp.lt.s32.totalorder %s26, 3
        %s303 = scalar_select %p302, %s26, 3
        %p304 = scmp.lt.s32.totalorder %s301, 1
        %s305 = scalar_select %p304, %s301, 1
        %s306 = smul.addr %s303, 2
        %s307 = sadd.s32 %s305, %s306
        %s308 = smul.addr %s307, 8
        %s309 = scalar_lea.vmem %s6, %s308
        %s310 = smul.u32 2, %s25
        %p311 = scmp.lt.s32.totalorder %s26, 3
        %s312 = scalar_select %p311, %s26, 3
        %p313 = scmp.lt.s32.totalorder %s310, 1
        %s314 = scalar_select %p313, %s310, 1
        %s315 = smul.addr %s312, 2
        %s316 = sadd.s32 %s314, %s315
        %s317 = smul.addr %s316, 2
        %s318 = scalar_lea.vmem %s0, %s317
        %s319 = smul.u32 2, %s25
        %s320 = smul.u32 2, %s25
        %p321 = scmp.lt.s32.totalorder %s26, 3
        %s322 = scalar_select %p321, %s26, 3
        %p323 = scmp.lt.s32.totalorder %s320, 1
        %s324 = scalar_select %p323, %s320, 1
        %s325 = smul.addr %s322, 2
        %s326 = sadd.s32 %s324, %s325
        %s327 = smul.addr %s326, 8
        %s328 = scalar_lea.vmem %s1, %s327
        %s329 = smul.u32 2, %s25
        %s330 = smul.u32 2, %s25
        %s331 = smul.u32 2, %s25
        %p332 = scmp.lt.s32.totalorder %s26, 3
        %s333 = scalar_select %p332, %s26, 3
        %p334 = scmp.lt.s32.totalorder %s331, 1
        %s335 = scalar_select %p334, %s331, 1
        %s336 = smul.addr %s333, 2
        %s337 = sadd.s32 %s335, %s336
        %s338 = smul.addr %s337, 8
        %s339 = scalar_lea.vmem %s6, %s338
        %s340 = smul.u32 2, %s25
        %p342 = scmp.eq.s32.totalorder %s26, 0
        // Predicated region
        $region41: #{block_forward.4} parent=39 // pred_check
          %p343 = pneg %p342
        $region42: #{block_forward.4} parent=39 // pred_check_branch
          %345 = sbr.rel (%p343) target = $region44
        $region43: #{block_forward.4} parent=39 // pred_region
          %vm346 = vcmask 261120
          %347 = vst.msk [vmem:[#allocation2] sm:$0xff] %vm346, 0.0
          %348 = vst.msk [vmem:[#allocation2 + $0x8] sm:$0xff] %vm346, 0.0
          %349 = vst.msk [vmem:[#allocation3] sm:$0xff] %vm346, 0.0
          %350 = vst.msk [vmem:[#allocation3 + $0x8] sm:$0xff] %vm346, 0.0
        $region44: #{block_forward.4} parent=39 // pred_fallthru
          _
        %v351 = vld [vmem:[%s318] sm:$0x3]
        %v352 = vunpack.c.l.s8.bf16 %v351
        %v354 = vunpack.c.l.b16 %v352
        %v355 = vpack.c.b16 %v354, %v354
        %356 = vrot.lane.b32.xlu0 %v355, 96
        %v357 = vpop.permute.xlu0 %356
        %vm358 = vcmask 64512
        %v360 = vsel %vm358, %v352, 0
        %v363 = vsel %vm358, %v357, 0
        %365 = vmatprep.subr.bf16.mxu0 0
        %366 = vmatpush1.bf16.xpose.msra.mxu0 %v363
        %367 = vmatprep.subr.bf16.mxu0 0
        %368 = vmatpush1.bf16.xpose.msra.mxu0 0
        %369 = vmatprep.subr.bf16.mxu0 0
        %370 = vmatpush1.bf16.xpose.msra.mxu0 0
        %371 = vmatprep.subr.bf16.mxu0 0
        %372 = vmatpush1.bf16.xpose.msra.mxu0 0
        %373 = vmatprep.subr.bf16.mxu0 0
        %374 = vmatpush1.bf16.xpose.msra.mxu0 0
        %375 = vmatprep.subr.bf16.mxu0 0
        %376 = vmatpush1.bf16.xpose.msra.mxu0 0
        %377 = vmatprep.subr.bf16.mxu0 0
        %378 = vmatpush1.bf16.xpose.msra.mxu0 0
        %379 = vmatprep.subr.bf16.mxu0 0
        %380 = vmatpush1.bf16.xpose.msra.mxu0 0
        %381 = vmatprep.subr.bf16.mxu0 0
        %382 = vmatpush1.bf16.xpose.msra.mxu0 0
        %383 = vmatprep.subr.bf16.mxu0 0
        %384 = vmatpush1.bf16.xpose.msra.mxu0 0
        %385 = vmatprep.subr.bf16.mxu0 0
        %386 = vmatpush1.bf16.xpose.msra.mxu0 0
        %387 = vmatprep.subr.bf16.mxu0 0
        %388 = vmatpush1.bf16.xpose.msra.mxu0 0
        %389 = vmatprep.subr.bf16.mxu0 0
        %390 = vmatpush1.bf16.xpose.msra.mxu0 0
        %391 = vmatprep.subr.bf16.mxu0 0
        %392 = vmatpush1.bf16.xpose.msra.mxu0 0
        %393 = vmatprep.subr.bf16.mxu0 0
        %394 = vmatpush1.bf16.xpose.msra.mxu0 0
        %395 = vmatprep.subr.bf16.mxu0 0
        %396 = vmatpush1.bf16.xpose.msra.mxu0 0
        %397 = vmatprep.mubr.bf16.mxu0 0
        %398 = vmatmul.mubr.bf16.gmra.mrb[0].mxu0 %v360
        %v399 = vpop.f32.mrb[0].mxu0
        %v400 = vadd.f32 0.0, %v399
        %v401 = vpop.f32.mrb[0].mxu0
        %v402 = vpop.f32.mrb[0].mxu0
        %v403 = vpop.f32.mrb[0].mxu0
        %404 = vdwg.mxu0
        %v405 = vmul.f32 %v400, 0.125
        %v406 = vpack.c.bf16 %v405, %v405
        %vm407 = vcmask 60416
        %408 = vst.msk [vmem:[%s298] sm:$0xf] %vm407, %v406
        %409 = vrot.lane.b32.xlu0 %v355, 64
        %v410 = vpop.permute.xlu0 %409
        %v412 = vsel %vm358, %v406, 0
        %vm414 = vcmask 1043456
        %v416 = vsel %vm414, %v410, 0
        %418 = vmatprep.subr.bf16.mxu0 0
        %419 = vmatpush1.bf16.msra.mxu0 %v416
        %420 = vmatprep.subr.bf16.mxu0 0
        %421 = vmatpush1.bf16.msra.mxu0 0
        %422 = vmatprep.subr.bf16.mxu0 0
        %423 = vmatpush1.bf16.msra.mxu0 0
        %424 = vmatprep.subr.bf16.mxu0 0
        %425 = vmatpush1.bf16.msra.mxu0 0
        %426 = vmatprep.subr.bf16.mxu0 0
        %427 = vmatpush1.bf16.msra.mxu0 0
        %428 = vmatprep.subr.bf16.mxu0 0
        %429 = vmatpush1.bf16.msra.mxu0 0
        %430 = vmatprep.subr.bf16.mxu0 0
        %431 = vmatpush1.bf16.msra.mxu0 0
        %432 = vmatprep.subr.bf16.mxu0 0
        %433 = vmatpush1.bf16.msra.mxu0 0
        %434 = vmatprep.subr.bf16.mxu0 0
        %435 = vmatpush1.bf16.msra.mxu0 0
        %436 = vmatprep.subr.bf16.mxu0 0
        %437 = vmatpush1.bf16.msra.mxu0 0
        %438 = vmatprep.subr.bf16.mxu0 0
        %439 = vmatpush1.bf16.msra.mxu0 0
        %440 = vmatprep.subr.bf16.mxu0 0
        %441 = vmatpush1.bf16.msra.mxu0 0
        %442 = vmatprep.subr.bf16.mxu0 0
        %443 = vmatpush1.bf16.msra.mxu0 0
        %444 = vmatprep.subr.bf16.mxu0 0
        %445 = vmatpush1.bf16.msra.mxu0 0
        %446 = vmatprep.subr.bf16.mxu0 0
        %447 = vmatpush1.bf16.msra.mxu0 0
        %448 = vmatprep.subr.bf16.mxu0 0
        %449 = vmatpush1.bf16.msra.mxu0 0
        %450 = vmatprep.mubr.bf16.mxu0 0
        %451 = vmatmul.mubr.bf16.gmra.mrb[0].mxu0 %v412
        %v452 = vpop.f32.mrb[0].mxu0
        %v453 = vadd.f32 0.0, %v452
        %v454 = vpop.f32.mrb[0].mxu0
        %v455 = vpop.f32.mrb[0].mxu0
        %v456 = vpop.f32.mrb[0].mxu0
        %457 = vdwg.mxu0
        %458 = vrot.lane.b32.xlu0 %v355, 120
        %v459 = vpop.permute.xlu0 %458
        %460 = vrot.lane.b32.xlu0 %v355, 88
        %v461 = vpop.permute.xlu0 %460
        %v463 = vsel %vm358, %v459, 0
        %v466 = vsel %vm358, %v461, 0
        %468 = vmatprep.subr.bf16.mxu0 0
        %469 = vmatpush1.bf16.xpose.msra.mxu0 %v466
        %470 = vmatprep.subr.bf16.mxu0 0
        %471 = vmatpush1.bf16.xpose.msra.mxu0 0
        %472 = vmatprep.subr.bf16.mxu0 0
        %473 = vmatpush1.bf16.xpose.msra.mxu0 0
        %474 = vmatprep.subr.bf16.mxu0 0
        %475 = vmatpush1.bf16.xpose.msra.mxu0 0
        %476 = vmatprep.subr.bf16.mxu0 0
        %477 = vmatpush1.bf16.xpose.msra.mxu0 0
        %478 = vmatprep.subr.bf16.mxu0 0
        %479 = vmatpush1.bf16.xpose.msra.mxu0 0
        %480 = vmatprep.subr.bf16.mxu0 0
        %481 = vmatpush1.bf16.xpose.msra.mxu0 0
        %482 = vmatprep.subr.bf16.mxu0 0
        %483 = vmatpush1.bf16.xpose.msra.mxu0 0
        %484 = vmatprep.subr.bf16.mxu0 0
        %485 = vmatpush1.bf16.xpose.msra.mxu0 0
        %486 = vmatprep.subr.bf16.mxu0 0
        %487 = vmatpush1.bf16.xpose.msra.mxu0 0
        %488 = vmatprep.subr.bf16.mxu0 0
        %489 = vmatpush1.bf16.xpose.msra.mxu0 0
        %490 = vmatprep.subr.bf16.mxu0 0
        %491 = vmatpush1.bf16.xpose.msra.mxu0 0
        %492 = vmatprep.subr.bf16.mxu0 0
        %493 = vmatpush1.bf16.xpose.msra.mxu0 0
        %494 = vmatprep.subr.bf16.mxu0 0
        %495 = vmatpush1.bf16.xpose.msra.mxu0 0
        %496 = vmatprep.subr.bf16.mxu0 0
        %497 = vmatpush1.bf16.xpose.msra.mxu0 0
        %498 = vmatprep.subr.bf16.mxu0 0
        %499 = vmatpush1.bf16.xpose.msra.mxu0 0
        %500 = vmatprep.mubr.bf16.mxu0 0
        %501 = vmatmul.mubr.bf16.gmra.mrb[0].mxu0 %v463
        %v502 = vpop.f32.mrb[0].mxu0
        %v503 = vadd.f32 0.0, %v502
        %v504 = vpop.f32.mrb[0].mxu0
        %v505 = vpop.f32.mrb[0].mxu0
        %v506 = vpop.f32.mrb[0].mxu0
        %507 = vdwg.mxu0
        %v508 = vmul.f32 %v503, 0.125
        %v509 = vpack.c.bf16 %v508, %v508
        %s510 = scalar_lea.vmem %s298, 4 [#allocation4]
        %511 = vst.msk [vmem:[%s510] sm:$0xf] %vm407, %v509
        %512 = vrot.lane.b32.xlu0 %v355, 56
        %v513 = vpop.permute.xlu0 %512
        %v515 = vsel %vm358, %v509, 0
        %v518 = vsel %vm414, %v513, 0
        %520 = vmatprep.subr.bf16.mxu0 0
        %521 = vmatpush1.bf16.msra.mxu0 %v518
        %522 = vmatprep.subr.bf16.mxu0 0
        %523 = vmatpush1.bf16.msra.mxu0 0
        %524 = vmatprep.subr.bf16.mxu0 0
        %525 = vmatpush1.bf16.msra.mxu0 0
        %526 = vmatprep.subr.bf16.mxu0 0
        %527 = vmatpush1.bf16.msra.mxu0 0
        %528 = vmatprep.subr.bf16.mxu0 0
        %529 = vmatpush1.bf16.msra.mxu0 0
        %530 = vmatprep.subr.bf16.mxu0 0
        %531 = vmatpush1.bf16.msra.mxu0 0
        %532 = vmatprep.subr.bf16.mxu0 0
        %533 = vmatpush1.bf16.msra.mxu0 0
        %534 = vmatprep.subr.bf16.mxu0 0
        %535 = vmatpush1.bf16.msra.mxu0 0
        %536 = vmatprep.subr.bf16.mxu0 0
        %537 = vmatpush1.bf16.msra.mxu0 0
        %538 = vmatprep.subr.bf16.mxu0 0
        %539 = vmatpush1.bf16.msra.mxu0 0
        %540 = vmatprep.subr.bf16.mxu0 0
        %541 = vmatpush1.bf16.msra.mxu0 0
        %542 = vmatprep.subr.bf16.mxu0 0
        %543 = vmatpush1.bf16.msra.mxu0 0
        %544 = vmatprep.subr.bf16.mxu0 0
        %545 = vmatpush1.bf16.msra.mxu0 0
        %546 = vmatprep.subr.bf16.mxu0 0
        %547 = vmatpush1.bf16.msra.mxu0 0
        %548 = vmatprep.subr.bf16.mxu0 0
        %549 = vmatpush1.bf16.msra.mxu0 0
        %550 = vmatprep.subr.bf16.mxu0 0
        %551 = vmatpush1.bf16.msra.mxu0 0
        %552 = vmatprep.mubr.bf16.mxu0 0
        %553 = vmatmul.mubr.bf16.gmra.mrb[0].mxu0 %v515
        %v554 = vpop.f32.mrb[0].mxu0
        %v555 = vadd.f32 0.0, %v554
        %v556 = vpop.f32.mrb[0].mxu0
        %v557 = vpop.f32.mrb[0].mxu0
        %v558 = vpop.f32.mrb[0].mxu0
        %559 = vdwg.mxu0
        %560 = vrot.lane.b32.xlu0 %v355, 112
        %v561 = vpop.permute.xlu0 %560
        %562 = vrot.lane.b32.xlu0 %v355, 80
        %v563 = vpop.permute.xlu0 %562
        %v565 = vsel %vm358, %v561, 0
        %v568 = vsel %vm358, %v563, 0
        %570 = vmatprep.subr.bf16.mxu0 0
        %571 = vmatpush1.bf16.xpose.msra.mxu0 %v568
        %572 = vmatprep.subr.bf16.mxu0 0
        %573 = vmatpush1.bf16.xpose.msra.mxu0 0
        %574 = vmatprep.subr.bf16.mxu0 0
        %575 = vmatpush1.bf16.xpose.msra.mxu0 0
        %576 = vmatprep.subr.bf16.mxu0 0
        %577 = vmatpush1.bf16.xpose.msra.mxu0 0
        %578 = vmatprep.subr.bf16.mxu0 0
        %579 = vmatpush1.bf16.xpose.msra.mxu0 0
        %580 = vmatprep.subr.bf16.mxu0 0
        %581 = vmatpush1.bf16.xpose.msra.mxu0 0
        %582 = vmatprep.subr.bf16.mxu0 0
        %583 = vmatpush1.bf16.xpose.msra.mxu0 0
        %584 = vmatprep.subr.bf16.mxu0 0
        %585 = vmatpush1.bf16.xpose.msra.mxu0 0
        %586 = vmatprep.subr.bf16.mxu0 0
        %587 = vmatpush1.bf16.xpose.msra.mxu0 0
        %588 = vmatprep.subr.bf16.mxu0 0
        %589 = vmatpush1.bf16.xpose.msra.mxu0 0
        %590 = vmatprep.subr.bf16.mxu0 0
        %591 = vmatpush1.bf16.xpose.msra.mxu0 0
        %592 = vmatprep.subr.bf16.mxu0 0
        %593 = vmatpush1.bf16.xpose.msra.mxu0 0
        %594 = vmatprep.subr.bf16.mxu0 0
        %595 = vmatpush1.bf16.xpose.msra.mxu0 0
        %596 = vmatprep.subr.bf16.mxu0 0
        %597 = vmatpush1.bf16.xpose.msra.mxu0 0
        %598 = vmatprep.subr.bf16.mxu0 0
        %599 = vmatpush1.bf16.xpose.msra.mxu0 0
        %600 = vmatprep.subr.bf16.mxu0 0
        %601 = vmatpush1.bf16.xpose.msra.mxu0 0
        %602 = vmatprep.mubr.bf16.mxu0 0
        %603 = vmatmul.mubr.bf16.gmra.mrb[0].mxu0 %v565
        %v604 = vpop.f32.mrb[0].mxu0
        %v605 = vadd.f32 0.0, %v604
        %v606 = vpop.f32.mrb[0].mxu0
        %v607 = vpop.f32.mrb[0].mxu0
        %v608 = vpop.f32.mrb[0].mxu0
        %609 = vdwg.mxu0
        %v610 = vmul.f32 %v605, 0.125
        %v611 = vpack.c.bf16 %v610, %v610
        %s612 = scalar_lea.vmem %s298, 8 [#allocation4]
        %613 = vst.msk [vmem:[%s612] sm:$0xf] %vm407, %v611
        %614 = vrot.lane.b32.xlu0 %v355, 48
        %v615 = vpop.permute.xlu0 %614
        %v617 = vsel %vm358, %v611, 0
        %v620 = vsel %vm414, %v615, 0
        %622 = vmatprep.subr.bf16.mxu0 0
        %623 = vmatpush1.bf16.msra.mxu0 %v620
        %624 = vmatprep.subr.bf16.mxu0 0
        %625 = vmatpush1.bf16.msra.mxu0 0
        %626 = vmatprep.subr.bf16.mxu0 0
        %627 = vmatpush1.bf16.msra.mxu0 0
        %628 = vmatprep.subr.bf16.mxu0 0
        %629 = vmatpush1.bf16.msra.mxu0 0
        %630 = vmatprep.subr.bf16.mxu0 0
        %631 = vmatpush1.bf16.msra.mxu0 0
        %632 = vmatprep.subr.bf16.mxu0 0
        %633 = vmatpush1.bf16.msra.mxu0 0
        %634 = vmatprep.subr.bf16.mxu0 0
        %635 = vmatpush1.bf16.msra.mxu0 0
        %636 = vmatprep.subr.bf16.mxu0 0
        %637 = vmatpush1.bf16.msra.mxu0 0
        %638 = vmatprep.subr.bf16.mxu0 0
        %639 = vmatpush1.bf16.msra.mxu0 0
        %640 = vmatprep.subr.bf16.mxu0 0
        %641 = vmatpush1.bf16.msra.mxu0 0
        %642 = vmatprep.subr.bf16.mxu0 0
        %643 = vmatpush1.bf16.msra.mxu0 0
        %644 = vmatprep.subr.bf16.mxu0 0
        %645 = vmatpush1.bf16.msra.mxu0 0
        %646 = vmatprep.subr.bf16.mxu0 0
        %647 = vmatpush1.bf16.msra.mxu0 0
        %648 = vmatprep.subr.bf16.mxu0 0
        %649 = vmatpush1.bf16.msra.mxu0 0
        %650 = vmatprep.subr.bf16.mxu0 0
        %651 = vmatpush1.bf16.msra.mxu0 0
        %652 = vmatprep.subr.bf16.mxu0 0
        %653 = vmatpush1.bf16.msra.mxu0 0
        %654 = vmatprep.mubr.bf16.mxu0 0
        %655 = vmatmul.mubr.bf16.gmra.mrb[0].mxu0 %v617
        %v656 = vpop.f32.mrb[0].mxu0
        %v657 = vadd.f32 0.0, %v656
        %v658 = vpop.f32.mrb[0].mxu0
        %v659 = vpop.f32.mrb[0].mxu0
        %v660 = vpop.f32.mrb[0].mxu0
        %661 = vdwg.mxu0
        %662 = vrot.lane.b32.xlu0 %v355, 104
        %v663 = vpop.permute.xlu0 %662
        %664 = vrot.lane.b32.xlu0 %v355, 72
        %v665 = vpop.permute.xlu0 %664
        %v667 = vsel %vm358, %v663, 0
        %v670 = vsel %vm358, %v665, 0
        %672 = vmatprep.subr.bf16.mxu0 0
        %673 = vmatpush1.bf16.xpose.msra.mxu0 %v670
        %674 = vmatprep.subr.bf16.mxu0 0
        %675 = vmatpush1.bf16.xpose.msra.mxu0 0
        %676 = vmatprep.subr.bf16.mxu0 0
        %677 = vmatpush1.bf16.xpose.msra.mxu0 0
        %678 = vmatprep.subr.bf16.mxu0 0
        %679 = vmatpush1.bf16.xpose.msra.mxu0 0
        %680 = vmatprep.subr.bf16.mxu0 0
        %681 = vmatpush1.bf16.xpose.msra.mxu0 0
        %682 = vmatprep.subr.bf16.mxu0 0
        %683 = vmatpush1.bf16.xpose.msra.mxu0 0
        %684 = vmatprep.subr.bf16.mxu0 0
        %685 = vmatpush1.bf16.xpose.msra.mxu0 0
        %686 = vmatprep.subr.bf16.mxu0 0
        %687 = vmatpush1.bf16.xpose.msra.mxu0 0
        %688 = vmatprep.subr.bf16.mxu0 0
        %689 = vmatpush1.bf16.xpose.msra.mxu0 0
        %690 = vmatprep.subr.bf16.mxu0 0
        %691 = vmatpush1.bf16.xpose.msra.mxu0 0
        %692 = vmatprep.subr.bf16.mxu0 0
        %693 = vmatpush1.bf16.xpose.msra.mxu0 0
        %694 = vmatprep.subr.bf16.mxu0 0
        %695 = vmatpush1.bf16.xpose.msra.mxu0 0
        %696 = vmatprep.subr.bf16.mxu0 0
        %697 = vmatpush1.bf16.xpose.msra.mxu0 0
        %698 = vmatprep.subr.bf16.mxu0 0
        %699 = vmatpush1.bf16.xpose.msra.mxu0 0
        %700 = vmatprep.subr.bf16.mxu0 0
        %701 = vmatpush1.bf16.xpose.msra.mxu0 0
        %702 = vmatprep.subr.bf16.mxu0 0
        %703 = vmatpush1.bf16.xpose.msra.mxu0 0
        %704 = vmatprep.mubr.bf16.mxu0 0
        %705 = vmatmul.mubr.bf16.gmra.mrb[0].mxu0 %v667
        %v706 = vpop.f32.mrb[0].mxu0
        %v707 = vadd.f32 0.0, %v706
        %v708 = vpop.f32.mrb[0].mxu0
        %v709 = vpop.f32.mrb[0].mxu0
        %v710 = vpop.f32.mrb[0].mxu0
        %711 = vdwg.mxu0
        %v712 = vmul.f32 %v707, 0.125
        %v713 = vpack.c.bf16 %v712, %v712
        %s714 = scalar_lea.vmem %s298, 12 [#allocation4]
        %715 = vst.msk [vmem:[%s714] sm:$0xf] %vm407, %v713
        %716 = vrot.lane.b32.xlu0 %v355, 40
        %v717 = vpop.permute.xlu0 %716
        %v719 = vsel %vm358, %v713, 0
        %v722 = vsel %vm414, %v717, 0
        %724 = vmatprep.subr.bf16.mxu0 0
        %725 = vmatpush1.bf16.msra.mxu0 %v722
        %726 = vmatprep.subr.bf16.mxu0 0
        %727 = vmatpush1.bf16.msra.mxu0 0
        %728 = vmatprep.subr.bf16.mxu0 0
        %729 = vmatpush1.bf16.msra.mxu0 0
        %730 = vmatprep.subr.bf16.mxu0 0
        %731 = vmatpush1.bf16.msra.mxu0 0
        %732 = vmatprep.subr.bf16.mxu0 0
        %733 = vmatpush1.bf16.msra.mxu0 0
        %734 = vmatprep.subr.bf16.mxu0 0
        %735 = vmatpush1.bf16.msra.mxu0 0
        %736 = vmatprep.subr.bf16.mxu0 0
        %737 = vmatpush1.bf16.msra.mxu0 0
        %738 = vmatprep.subr.bf16.mxu0 0
        %739 = vmatpush1.bf16.msra.mxu0 0
        %740 = vmatprep.subr.bf16.mxu0 0
        %741 = vmatpush1.bf16.msra.mxu0 0
        %742 = vmatprep.subr.bf16.mxu0 0
        %743 = vmatpush1.bf16.msra.mxu0 0
        %744 = vmatprep.subr.bf16.mxu0 0
        %745 = vmatpush1.bf16.msra.mxu0 0
        %746 = vmatprep.subr.bf16.mxu0 0
        %747 = vmatpush1.bf16.msra.mxu0 0
        %748 = vmatprep.subr.bf16.mxu0 0
        %749 = vmatpush1.bf16.msra.mxu0 0
        %750 = vmatprep.subr.bf16.mxu0 0
        %751 = vmatpush1.bf16.msra.mxu0 0
        %752 = vmatprep.subr.bf16.mxu0 0
        %753 = vmatpush1.bf16.msra.mxu0 0
        %754 = vmatprep.subr.bf16.mxu0 0
        %755 = vmatpush1.bf16.msra.mxu0 0
        %756 = vmatprep.mubr.bf16.mxu0 0
        %757 = vmatmul.mubr.bf16.gmra.mrb[0].mxu0 %v719
        %v758 = vpop.f32.mrb[0].mxu0
        %v759 = vadd.f32 0.0, %v758
        %v760 = vpop.f32.mrb[0].mxu0
        %v761 = vpop.f32.mrb[0].mxu0
        %v762 = vpop.f32.mrb[0].mxu0
        %763 = vdwg.mxu0
        %765 = vrot.lane.b32.xlu0 %v555, 8
        %v766 = vpop.permute.xlu0 %765
        %769 = vrot.lane.b32.xlu0 %v657, 16
        %v770 = vpop.permute.xlu0 %769
        %773 = vrot.lane.b32.xlu0 %v759, 24
        %v774 = vpop.permute.xlu0 %773
        %v776 = vsel %vm358, %v453, %v766
        %vm777 = vcmask 130048
        %v778 = vsel %vm777, %v776, %v770
        %vm779 = vcmask 195584
        %v780 = vsel %vm779, %v778, %v774
        %s781 = scalar_lea.vmem %s318, 2
        %v782 = vld [vmem:[%s781] sm:$0x3]
        %v783 = vunpack.c.l.s8.bf16 %v782
        %v785 = vunpack.c.l.b16 %v783
        %v786 = vpack.c.b16 %v785, %v785
        %787 = vrot.lane.b32.xlu0 %v786, 96
        %v788 = vpop.permute.xlu0 %787
        %v790 = vsel %vm358, %v783, 0
        %v793 = vsel %vm358, %v788, 0
        %795 = vmatprep.subr.bf16.mxu0 0
        %796 = vmatpush1.bf16.xpose.msra.mxu0 %v793
        %797 = vmatprep.subr.bf16.mxu0 0
        %798 = vmatpush1.bf16.xpose.msra.mxu0 0
        %799 = vmatprep.subr.bf16.mxu0 0
        %800 = vmatpush1.bf16.xpose.msra.mxu0 0
        %801 = vmatprep.subr.bf16.mxu0 0
        %802 = vmatpush1.bf16.xpose.msra.mxu0 0
        %803 = vmatprep.subr.bf16.mxu0 0
        %804 = vmatpush1.bf16.xpose.msra.mxu0 0
        %805 = vmatprep.subr.bf16.mxu0 0
        %806 = vmatpush1.bf16.xpose.msra.mxu0 0
        %807 = vmatprep.subr.bf16.mxu0 0
        %808 = vmatpush1.bf16.xpose.msra.mxu0 0
        %809 = vmatprep.subr.bf16.mxu0 0
        %810 = vmatpush1.bf16.xpose.msra.mxu0 0
        %811 = vmatprep.subr.bf16.mxu0 0
        %812 = vmatpush1.bf16.xpose.msra.mxu0 0
        %813 = vmatprep.subr.bf16.mxu0 0
        %814 = vmatpush1.bf16.xpose.msra.mxu0 0
        %815 = vmatprep.subr.bf16.mxu0 0
        %816 = vmatpush1.bf16.xpose.msra.mxu0 0
        %817 = vmatprep.subr.bf16.mxu0 0
        %818 = vmatpush1.bf16.xpose.msra.mxu0 0
        %819 = vmatprep.subr.bf16.mxu0 0
        %820 = vmatpush1.bf16.xpose.msra.mxu0 0
        %821 = vmatprep.subr.bf16.mxu0 0
        %822 = vmatpush1.bf16.xpose.msra.mxu0 0
        %823 = vmatprep.subr.bf16.mxu0 0
        %824 = vmatpush1.bf16.xpose.msra.mxu0 0
        %825 = vmatprep.subr.bf16.mxu0 0
        %826 = vmatpush1.bf16.xpose.msra.mxu0 0
        %827 = vmatprep.mubr.bf16.mxu0 0
        %828 = vmatmul.mubr.bf16.gmra.mrb[0].mxu0 %v790
        %v829 = vpop.f32.mrb[0].mxu0
        %v830 = vadd.f32 0.0, %v829
        %v831 = vpop.f32.mrb[0].mxu0
        %v832 = vpop.f32.mrb[0].mxu0
        %v833 = vpop.f32.mrb[0].mxu0
        %834 = vdwg.mxu0
        %v835 = vmul.f32 %v830, 0.125
        %v836 = vpack.c.bf16 %v835, %v835
        %s837 = scalar_lea.vmem %s298, 16 [#allocation4]
        %838 = vst.msk [vmem:[%s837] sm:$0xf] %vm407, %v836
        %839 = vrot.lane.b32.xlu0 %v786, 64
        %v840 = vpop.permute.xlu0 %839
        %v842 = vsel %vm358, %v836, 0
        %v845 = vsel %vm414, %v840, 0
        %847 = vmatprep.subr.bf16.mxu0 0
        %848 = vmatpush1.bf16.msra.mxu0 %v845
        %849 = vmatprep.subr.bf16.mxu0 0
        %850 = vmatpush1.bf16.msra.mxu0 0
        %851 = vmatprep.subr.bf16.mxu0 0
        %852 = vmatpush1.bf16.msra.mxu0 0
        %853 = vmatprep.subr.bf16.mxu0 0
        %854 = vmatpush1.bf16.msra.mxu0 0
        %855 = vmatprep.subr.bf16.mxu0 0
        %856 = vmatpush1.bf16.msra.mxu0 0
        %857 = vmatprep.subr.bf16.mxu0 0
        %858 = vmatpush1.bf16.msra.mxu0 0
        %859 = vmatprep.subr.bf16.mxu0 0
        %860 = vmatpush1.bf16.msra.mxu0 0
        %861 = vmatprep.subr.bf16.mxu0 0
        %862 = vmatpush1.bf16.msra.mxu0 0
        %863 = vmatprep.subr.bf16.mxu0 0
        %864 = vmatpush1.bf16.msra.mxu0 0
        %865 = vmatprep.subr.bf16.mxu0 0
        %866 = vmatpush1.bf16.msra.mxu0 0
        %867 = vmatprep.subr.bf16.mxu0 0
        %868 = vmatpush1.bf16.msra.mxu0 0
        %869 = vmatprep.subr.bf16.mxu0 0
        %870 = vmatpush1.bf16.msra.mxu0 0
        %871 = vmatprep.subr.bf16.mxu0 0
        %872 = vmatpush1.bf16.msra.mxu0 0
        %873 = vmatprep.subr.bf16.mxu0 0
        %874 = vmatpush1.bf16.msra.mxu0 0
        %875 = vmatprep.subr.bf16.mxu0 0
        %876 = vmatpush1.bf16.msra.mxu0 0
        %877 = vmatprep.subr.bf16.mxu0 0
        %878 = vmatpush1.bf16.msra.mxu0 0
        %879 = vmatprep.mubr.bf16.mxu0 0
        %880 = vmatmul.mubr.bf16.gmra.mrb[0].mxu0 %v842
        %v881 = vpop.f32.mrb[0].mxu0
        %v882 = vadd.f32 0.0, %v881
        %v883 = vpop.f32.mrb[0].mxu0
        %v884 = vpop.f32.mrb[0].mxu0
        %v885 = vpop.f32.mrb[0].mxu0
        %886 = vdwg.mxu0
        %887 = vrot.lane.b32.xlu0 %v786, 120
        %v888 = vpop.permute.xlu0 %887
        %889 = vrot.lane.b32.xlu0 %v786, 88
        %v890 = vpop.permute.xlu0 %889
        %v892 = vsel %vm358, %v888, 0
        %v895 = vsel %vm358, %v890, 0
        %897 = vmatprep.subr.bf16.mxu0 0
        %898 = vmatpush1.bf16.xpose.msra.mxu0 %v895
        %899 = vmatprep.subr.bf16.mxu0 0
        %900 = vmatpush1.bf16.xpose.msra.mxu0 0
        %901 = vmatprep.subr.bf16.mxu0 0
        %902 = vmatpush1.bf16.xpose.msra.mxu0 0
        %903 = vmatprep.subr.bf16.mxu0 0
        %904 = vmatpush1.bf16.xpose.msra.mxu0 0
        %905 = vmatprep.subr.bf16.mxu0 0
        %906 = vmatpush1.bf16.xpose.msra.mxu0 0
        %907 = vmatprep.subr.bf16.mxu0 0
        %908 = vmatpush1.bf16.xpose.msra.mxu0 0
        %909 = vmatprep.subr.bf16.mxu0 0
        %910 = vmatpush1.bf16.xpose.msra.mxu0 0
        %911 = vmatprep.subr.bf16.mxu0 0
        %912 = vmatpush1.bf16.xpose.msra.mxu0 0
        %913 = vmatprep.subr.bf16.mxu0 0
        %914 = vmatpush1.bf16.xpose.msra.mxu0 0
        %915 = vmatprep.subr.bf16.mxu0 0
        %916 = vmatpush1.bf16.xpose.msra.mxu0 0
        %917 = vmatprep.subr.bf16.mxu0 0
        %918 = vmatpush1.bf16.xpose.msra.mxu0 0
        %919 = vmatprep.subr.bf16.mxu0 0
        %920 = vmatpush1.bf16.xpose.msra.mxu0 0
        %921 = vmatprep.subr.bf16.mxu0 0
        %922 = vmatpush1.bf16.xpose.msra.mxu0 0
        %923 = vmatprep.subr.bf16.mxu0 0
        %924 = vmatpush1.bf16.xpose.msra.mxu0 0
        %925 = vmatprep.subr.bf16.mxu0 0
        %926 = vmatpush1.bf16.xpose.msra.mxu0 0
        %927 = vmatprep.subr.bf16.mxu0 0
        %928 = vmatpush1.bf16.xpose.msra.mxu0 0
        %929 = vmatprep.mubr.bf16.mxu0 0
        %930 = vmatmul.mubr.bf16.gmra.mrb[0].mxu0 %v892
        %v931 = vpop.f32.mrb[0].mxu0
        %v932 = vadd.f32 0.0, %v931
        %v933 = vpop.f32.mrb[0].mxu0
        %v934 = vpop.f32.mrb[0].mxu0
        %v935 = vpop.f32.mrb[0].mxu0
        %936 = vdwg.mxu0
        %v937 = vmul.f32 %v932, 0.125
        %v938 = vpack.c.bf16 %v937, %v937
        %s939 = scalar_lea.vmem %s298, 20 [#allocation4]
        %940 = vst.msk [vmem:[%s939] sm:$0xf] %vm407, %v938
        %941 = vrot.lane.b32.xlu0 %v786, 56
        %v942 = vpop.permute.xlu0 %941
        %v944 = vsel %vm358, %v938, 0
        %v947 = vsel %vm414, %v942, 0
        %949 = vmatprep.subr.bf16.mxu0 0
        %950 = vmatpush1.bf16.msra.mxu0 %v947
        %951 = vmatprep.subr.bf16.mxu0 0
        %952 = vmatpush1.bf16.msra.mxu0 0
        %953 = vmatprep.subr.bf16.mxu0 0
        %954 = vmatpush1.bf16.msra.mxu0 0
        %955 = vmatprep.subr.bf16.mxu0 0
        %956 = vmatpush1.bf16.msra.mxu0 0
        %957 = vmatprep.subr.bf16.mxu0 0
        %958 = vmatpush1.bf16.msra.mxu0 0
        %959 = vmatprep.subr.bf16.mxu0 0
        %960 = vmatpush1.bf16.msra.mxu0 0
        %961 = vmatprep.subr.bf16.mxu0 0
        %962 = vmatpush1.bf16.msra.mxu0 0
        %963 = vmatprep.subr.bf16.mxu0 0
        %964 = vmatpush1.bf16.msra.mxu0 0
        %965 = vmatprep.subr.bf16.mxu0 0
        %966 = vmatpush1.bf16.msra.mxu0 0
        %967 = vmatprep.subr.bf16.mxu0 0
        %968 = vmatpush1.bf16.msra.mxu0 0
        %969 = vmatprep.subr.bf16.mxu0 0
        %970 = vmatpush1.bf16.msra.mxu0 0
        %971 = vmatprep.subr.bf16.mxu0 0
        %972 = vmatpush1.bf16.msra.mxu0 0
        %973 = vmatprep.subr.bf16.mxu0 0
        %974 = vmatpush1.bf16.msra.mxu0 0
        %975 = vmatprep.subr.bf16.mxu0 0
        %976 = vmatpush1.bf16.msra.mxu0 0
        %977 = vmatprep.subr.bf16.mxu0 0
        %978 = vmatpush1.bf16.msra.mxu0 0
        %979 = vmatprep.subr.bf16.mxu0 0
        %980 = vmatpush1.bf16.msra.mxu0 0
        %981 = vmatprep.mubr.bf16.mxu0 0
        %982 = vmatmul.mubr.bf16.gmra.mrb[0].mxu0 %v944
        %v983 = vpop.f32.mrb[0].mxu0
        %v984 = vadd.f32 0.0, %v983
        %v985 = vpop.f32.mrb[0].mxu0
        %v986 = vpop.f32.mrb[0].mxu0
        %v987 = vpop.f32.mrb[0].mxu0
        %988 = vdwg.mxu0
        %989 = vrot.lane.b32.xlu0 %v786, 112
        %v990 = vpop.permute.xlu0 %989
        %991 = vrot.lane.b32.xlu0 %v786, 80
        %v992 = vpop.permute.xlu0 %991
        %v994 = vsel %vm358, %v990, 0
        %v997 = vsel %vm358, %v992, 0
        %999 = vmatprep.subr.bf16.mxu0 0
        %1000 = vmatpush1.bf16.xpose.msra.mxu0 %v997
        %1001 = vmatprep.subr.bf16.mxu0 0
        %1002 = vmatpush1.bf16.xpose.msra.mxu0 0
        %1003 = vmatprep.subr.bf16.mxu0 0
        %1004 = vmatpush1.bf16.xpose.msra.mxu0 0
        %1005 = vmatprep.subr.bf16.mxu0 0
        %1006 = vmatpush1.bf16.xpose.msra.mxu0 0
        %1007 = vmatprep.subr.bf16.mxu0 0
        %1008 = vmatpush1.bf16.xpose.msra.mxu0 0
        %1009 = vmatprep.subr.bf16.mxu0 0
        %1010 = vmatpush1.bf16.xpose.msra.mxu0 0
        %1011 = vmatprep.subr.bf16.mxu0 0
        %1012 = vmatpush1.bf16.xpose.msra.mxu0 0
        %1013 = vmatprep.subr.bf16.mxu0 0
        %1014 = vmatpush1.bf16.xpose.msra.mxu0 0
        %1015 = vmatprep.subr.bf16.mxu0 0
        %1016 = vmatpush1.bf16.xpose.msra.mxu0 0
        %1017 = vmatprep.subr.bf16.mxu0 0
        %1018 = vmatpush1.bf16.xpose.msra.mxu0 0
        %1019 = vmatprep.subr.bf16.mxu0 0
        %1020 = vmatpush1.bf16.xpose.msra.mxu0 0
        %1021 = vmatprep.subr.bf16.mxu0 0
        %1022 = vmatpush1.bf16.xpose.msra.mxu0 0
        %1023 = vmatprep.subr.bf16.mxu0 0
        %1024 = vmatpush1.bf16.xpose.msra.mxu0 0
        %1025 = vmatprep.subr.bf16.mxu0 0
        %1026 = vmatpush1.bf16.xpose.msra.mxu0 0
        %1027 = vmatprep.subr.bf16.mxu0 0
        %1028 = vmatpush1.bf16.xpose.msra.mxu0 0
        %1029 = vmatprep.subr.bf16.mxu0 0
        %1030 = vmatpush1.bf16.xpose.msra.mxu0 0
        %1031 = vmatprep.mubr.bf16.mxu0 0
        %1032 = vmatmul.mubr.bf16.gmra.mrb[0].mxu0 %v994
        %v1033 = vpop.f32.mrb[0].mxu0
        %v1034 = vadd.f32 0.0, %v1033
        %v1035 = vpop.f32.mrb[0].mxu0
        %v1036 = vpop.f32.mrb[0].mxu0
        %v1037 = vpop.f32.mrb[0].mxu0
        %1038 = vdwg.mxu0
        %v1039 = vmul.f32 %v1034, 0.125
        %v1040 = vpack.c.bf16 %v1039, %v1039
        %s1041 = scalar_lea.vmem %s298, 24 [#allocation4]
        %1042 = vst.msk [vmem:[%s1041] sm:$0xf] %vm407, %v1040
        %1043 = vrot.lane.b32.xlu0 %v786, 48
        %v1044 = vpop.permute.xlu0 %1043
        %v1046 = vsel %vm358, %v1040, 0
        %v1049 = vsel %vm414, %v1044, 0
        %1051 = vmatprep.subr.bf16.mxu0 0
        %1052 = vmatpush1.bf16.msra.mxu0 %v1049
        %1053 = vmatprep.subr.bf16.mxu0 0
        %1054 = vmatpush1.bf16.msra.mxu0 0
        %1055 = vmatprep.subr.bf16.mxu0 0
        %1056 = vmatpush1.bf16.msra.mxu0 0
        %1057 = vmatprep.subr.bf16.mxu0 0
        %1058 = vmatpush1.bf16.msra.mxu0 0
        %1059 = vmatprep.subr.bf16.mxu0 0
        %1060 = vmatpush1.bf16.msra.mxu0 0
        %1061 = vmatprep.subr.bf16.mxu0 0
        %1062 = vmatpush1.bf16.msra.mxu0 0
        %1063 = vmatprep.subr.bf16.mxu0 0
        %1064 = vmatpush1.bf16.msra.mxu0 0
        %1065 = vmatprep.subr.bf16.mxu0 0
        %1066 = vmatpush1.bf16.msra.mxu0 0
        %1067 = vmatprep.subr.bf16.mxu0 0
        %1068 = vmatpush1.bf16.msra.mxu0 0
        %1069 = vmatprep.subr.bf16.mxu0 0
        %1070 = vmatpush1.bf16.msra.mxu0 0
        %1071 = vmatprep.subr.bf16.mxu0 0
        %1072 = vmatpush1.bf16.msra.mxu0 0
        %1073 = vmatprep.subr.bf16.mxu0 0
        %1074 = vmatpush1.bf16.msra.mxu0 0
        %1075 = vmatprep.subr.bf16.mxu0 0
        %1076 = vmatpush1.bf16.msra.mxu0 0
        %1077 = vmatprep.subr.bf16.mxu0 0
        %1078 = vmatpush1.bf16.msra.mxu0 0
        %1079 = vmatprep.subr.bf16.mxu0 0
        %1080 = vmatpush1.bf16.msra.mxu0 0
        %1081 = vmatprep.subr.bf16.mxu0 0
        %1082 = vmatpush1.bf16.msra.mxu0 0
        %1083 = vmatprep.mubr.bf16.mxu0 0
        %1084 = vmatmul.mubr.bf16.gmra.mrb[0].mxu0 %v1046
        %v1085 = vpop.f32.mrb[0].mxu0
        %v1086 = vadd.f32 0.0, %v1085
        %v1087 = vpop.f32.mrb[0].mxu0
        %v1088 = vpop.f32.mrb[0].mxu0
        %v1089 = vpop.f32.mrb[0].mxu0
        %1090 = vdwg.mxu0
        %1091 = vrot.lane.b32.xlu0 %v786, 104
        %v1092 = vpop.permute.xlu0 %1091
        %1093 = vrot.lane.b32.xlu0 %v786, 72
        %v1094 = vpop.permute.xlu0 %1093
        %v1096 = vsel %vm358, %v1092, 0
        %v1099 = vsel %vm358, %v1094, 0
        %1101 = vmatprep.subr.bf16.mxu0 0
        %1102 = vmatpush1.bf16.xpose.msra.mxu0 %v1099
        %1103 = vmatprep.subr.bf16.mxu0 0
        %1104 = vmatpush1.bf16.xpose.msra.mxu0 0
        %1105 = vmatprep.subr.bf16.mxu0 0
        %1106 = vmatpush1.bf16.xpose.msra.mxu0 0
        %1107 = vmatprep.subr.bf16.mxu0 0
        %1108 = vmatpush1.bf16.xpose.msra.mxu0 0
        %1109 = vmatprep.subr.bf16.mxu0 0
        %1110 = vmatpush1.bf16.xpose.msra.mxu0 0
        %1111 = vmatprep.subr.bf16.mxu0 0
        %1112 = vmatpush1.bf16.xpose.msra.mxu0 0
        %1113 = vmatprep.subr.bf16.mxu0 0
        %1114 = vmatpush1.bf16.xpose.msra.mxu0 0
        %1115 = vmatprep.subr.bf16.mxu0 0
        %1116 = vmatpush1.bf16.xpose.msra.mxu0 0
        %1117 = vmatprep.subr.bf16.mxu0 0
        %1118 = vmatpush1.bf16.xpose.msra.mxu0 0
        %1119 = vmatprep.subr.bf16.mxu0 0
        %1120 = vmatpush1.bf16.xpose.msra.mxu0 0
        %1121 = vmatprep.subr.bf16.mxu0 0
        %1122 = vmatpush1.bf16.xpose.msra.mxu0 0
        %1123 = vmatprep.subr.bf16.mxu0 0
        %1124 = vmatpush1.bf16.xpose.msra.mxu0 0
        %1125 = vmatprep.subr.bf16.mxu0 0
        %1126 = vmatpush1.bf16.xpose.msra.mxu0 0
        %1127 = vmatprep.subr.bf16.mxu0 0
        %1128 = vmatpush1.bf16.xpose.msra.mxu0 0
        %1129 = vmatprep.subr.bf16.mxu0 0
        %1130 = vmatpush1.bf16.xpose.msra.mxu0 0
        %1131 = vmatprep.subr.bf16.mxu0 0
        %1132 = vmatpush1.bf16.xpose.msra.mxu0 0
        %1133 = vmatprep.mubr.bf16.mxu0 0
        %1134 = vmatmul.mubr.bf16.gmra.mrb[0].mxu0 %v1096
        %v1135 = vpop.f32.mrb[0].mxu0
        %v1136 = vadd.f32 0.0, %v1135
        %v1137 = vpop.f32.mrb[0].mxu0
        %v1138 = vpop.f32.mrb[0].mxu0
        %v1139 = vpop.f32.mrb[0].mxu0
        %1140 = vdwg.mxu0
        %v1141 = vmul.f32 %v1136, 0.125
        %v1142 = vpack.c.bf16 %v1141, %v1141
        %s1143 = scalar_lea.vmem %s298, 28 [#allocation4]
        %1144 = vst.msk [vmem:[%s1143] sm:$0xf] %vm407, %v1142
        %1145 = vrot.lane.b32.xlu0 %v786, 40
        %v1146 = vpop.permute.xlu0 %1145
        %v1148 = vsel %vm358, %v1142, 0
        %v1151 = vsel %vm414, %v1146, 0
        %1153 = vmatprep.subr.bf16.mxu0 0
        %1154 = vmatpush1.bf16.msra.mxu0 %v1151
        %1155 = vmatprep.subr.bf16.mxu0 0
        %1156 = vmatpush1.bf16.msra.mxu0 0
        %1157 = vmatprep.subr.bf16.mxu0 0
        %1158 = vmatpush1.bf16.msra.mxu0 0
        %1159 = vmatprep.subr.bf16.mxu0 0
        %1160 = vmatpush1.bf16.msra.mxu0 0
        %1161 = vmatprep.subr.bf16.mxu0 0
        %1162 = vmatpush1.bf16.msra.mxu0 0
        %1163 = vmatprep.subr.bf16.mxu0 0
        %1164 = vmatpush1.bf16.msra.mxu0 0
        %1165 = vmatprep.subr.bf16.mxu0 0
        %1166 = vmatpush1.bf16.msra.mxu0 0
        %1167 = vmatprep.subr.bf16.mxu0 0
        %1168 = vmatpush1.bf16.msra.mxu0 0
        %1169 = vmatprep.subr.bf16.mxu0 0
        %1170 = vmatpush1.bf16.msra.mxu0 0
        %1171 = vmatprep.subr.bf16.mxu0 0
        %1172 = vmatpush1.bf16.msra.mxu0 0
        %1173 = vmatprep.subr.bf16.mxu0 0
        %1174 = vmatpush1.bf16.msra.mxu0 0
        %1175 = vmatprep.subr.bf16.mxu0 0
        %1176 = vmatpush1.bf16.msra.mxu0 0
        %1177 = vmatprep.subr.bf16.mxu0 0
        %1178 = vmatpush1.bf16.msra.mxu0 0
        %1179 = vmatprep.subr.bf16.mxu0 0
        %1180 = vmatpush1.bf16.msra.mxu0 0
        %1181 = vmatprep.subr.bf16.mxu0 0
        %1182 = vmatpush1.bf16.msra.mxu0 0
        %1183 = vmatprep.subr.bf16.mxu0 0
        %1184 = vmatpush1.bf16.msra.mxu0 0
        %1185 = vmatprep.mubr.bf16.mxu0 0
        %1186 = vmatmul.mubr.bf16.gmra.mrb[0].mxu0 %v1148
        %v1187 = vpop.f32.mrb[0].mxu0
        %v1188 = vadd.f32 0.0, %v1187
        %v1189 = vpop.f32.mrb[0].mxu0
        %v1190 = vpop.f32.mrb[0].mxu0
        %v1191 = vpop.f32.mrb[0].mxu0
        %1192 = vdwg.mxu0
        %1194 = vrot.lane.b32.xlu0 %v984, 8
        %v1195 = vpop.permute.xlu0 %1194
        %1198 = vrot.lane.b32.xlu0 %v1086, 16
        %v1199 = vpop.permute.xlu0 %1198
        %1202 = vrot.lane.b32.xlu0 %v1188, 24
        %v1203 = vpop.permute.xlu0 %1202
        %v1205 = vsel %vm358, %v882, %v1195
        %v1206 = vsel %vm777, %v1205, %v1199
        %v1207 = vsel %vm779, %v1206, %v1203
        %v1208 = vld [vmem:[#allocation2] sm:$0xff]
        %v1209 = vld [vmem:[#allocation2 + $0x8] sm:$0xff]
        %v1210 = vsub.f32 %v780, %v1208
        %v1211 = vsub.f32 %v1207, %v1209
        %v1212 = vmul.f32 %v1210, 0.5
        %v1213 = vmul.f32 %v1211, 0.5
        %v1214 = vadd.f32 %v1208, %v1212
        %v1215 = vadd.f32 %v1209, %v1213
        %vm1216 = vcmp.ge.f32.partialorder %v1214, 0.5
        %vm1217 = vcmp.ge.f32.partialorder %v1215, 0.5
        %v1218 = vsel %vm1216, 1, 0
        %v1219 = vsel %vm1217, 1, 0
        %v1220 = vcvt.s32.f32 %v1218
        %v1221 = vcvt.s32.f32 %v1219
        %v1222 = vsub.f32 1.0, %v1220
        %v1223 = vsub.f32 1.0, %v1221
        %v1224 = vmul.f32 %v1214, %v1222
        %v1225 = vmul.f32 %v1215, %v1223
        %vm1226 = vcmask 261120
        %1227 = vst.msk [vmem:[#allocation2] sm:$0xff] %vm1226, %v1224
        %1228 = vst.msk [vmem:[#allocation2 + $0x8] sm:$0xff] %vm1226, %v1225
        %v1229 = vpack.c.bf16 %v1221, %v1220
        %v1230 = vld [vmem:[%s2] sm:$0xf]
        %v1231 = vld [vmem:[%s2 + $0x4] sm:$0xf]
        %v1232 = vld [vmem:[%s2 + $0x8] sm:$0xf]
        %v1233 = vld [vmem:[%s2 + $0xc] sm:$0xf]
        %v1238 = vunpack.c.l.b16 %v1230
        %v1239 = vunpack.c.l.b16 %v1231
        %v1240 = vunpack.c.l.b16 %v1232
        %v1241 = vunpack.c.l.b16 %v1233
        %v1242 = vpack.c.b16 %v1239, %v1238
        %v1243 = vpack.c.b16 %v1241, %v1240
        %v1247 = vsel %vm1226, %v1229, 0
        %1249 = vmatprep.subr.bf16.mxu0 0
        %1250 = vmatpush1.bf16.msra.mxu0 %v1242
        %1251 = vmatprep.subr.bf16.mxu0 0
        %1252 = vmatpush1.bf16.msra.mxu0 %v1243
        %1253 = vmatprep.subr.bf16.mxu0 0
        %1254 = vmatpush1.bf16.msra.mxu0 0
        %1255 = vmatprep.subr.bf16.mxu0 0
        %1256 = vmatpush1.bf16.msra.mxu0 0
        %1257 = vmatprep.subr.bf16.mxu0 0
        %1258 = vmatpush1.bf16.msra.mxu0 0
        %1259 = vmatprep.subr.bf16.mxu0 0
        %1260 = vmatpush1.bf16.msra.mxu0 0
        %1261 = vmatprep.subr.bf16.mxu0 0
        %1262 = vmatpush1.bf16.msra.mxu0 0
        %1263 = vmatprep.subr.bf16.mxu0 0
        %1264 = vmatpush1.bf16.msra.mxu0 0
        %1265 = vmatprep.subr.bf16.mxu0 0
        %1266 = vmatpush1.bf16.msra.mxu0 0
        %1267 = vmatprep.subr.bf16.mxu0 0
        %1268 = vmatpush1.bf16.msra.mxu0 0
        %1269 = vmatprep.subr.bf16.mxu0 0
        %1270 = vmatpush1.bf16.msra.mxu0 0
        %1271 = vmatprep.subr.bf16.mxu0 0
        %1272 = vmatpush1.bf16.msra.mxu0 0
        %1273 = vmatprep.subr.bf16.mxu0 0
        %1274 = vmatpush1.bf16.msra.mxu0 0
        %1275 = vmatprep.subr.bf16.mxu0 0
        %1276 = vmatpush1.bf16.msra.mxu0 0
        %1277 = vmatprep.subr.bf16.mxu0 0
        %1278 = vmatpush1.bf16.msra.mxu0 0
        %1279 = vmatprep.subr.bf16.mxu0 0
        %1280 = vmatpush1.bf16.msra.mxu0 0
        %1281 = vmatprep.mubr.bf16.mxu0 0
        %1282 = vmatmul.mubr.bf16.gmra.mrb[0].mxu0 %v1247
        %v1283 = vpop.f32.mrb[0].mxu0
        %v1284 = vadd.f32 0.0, %v1283
        %v1285 = vpop.f32.mrb[0].mxu0
        %v1286 = vpop.f32.mrb[0].mxu0
        %v1287 = vadd.f32 0.0, %v1286
        %v1288 = vpop.f32.mrb[0].mxu0
        %1289 = vdwg.mxu0
        %v1290 = vld [vmem:[%s3] sm:$0x1]
        %v1292 = vlaneseq
        %v1293 = vshrl.u32 %v1292, 7
        %v1294 = vsub.s32 0, %v1293
        %v1295 = vrot.slane %v1290, %v1294
        %v1297 = vmul.f32 %v1284, %v1295
        %v1298 = vmul.f32 %v1287, %v1295
        %v1299 = vld [vmem:[%s4] sm:$0x1]
        %v1301 = vlaneseq
        %v1302 = vshrl.u32 %v1301, 7
        %v1303 = vsub.s32 0, %v1302
        %v1304 = vrot.slane %v1299, %v1303
        %v1306 = vadd.f32 %v1297, %v1304
        %v1307 = vadd.f32 %v1298, %v1304
        %v1308 = vld [vmem:[#allocation3] sm:$0xff]
        %v1309 = vld [vmem:[#allocation3 + $0x8] sm:$0xff]
        %v1310 = vsub.f32 %v1306, %v1308
        %v1311 = vsub.f32 %v1307, %v1309
        %v1312 = vmul.f32 %v1310, 0.5
        %v1313 = vmul.f32 %v1311, 0.5
        %v1314 = vadd.f32 %v1308, %v1312
        %v1315 = vadd.f32 %v1309, %v1313
        %vm1316 = vcmp.ge.f32.partialorder %v1314, 1.0
        %vm1317 = vcmp.ge.f32.partialorder %v1315, 1.0
        %v1318 = vsel %vm1316, 1, 0
        %v1319 = vsel %vm1317, 1, 0
        %v1320 = vcvt.s32.f32 %v1318
        %v1321 = vcvt.s32.f32 %v1319
        %v1322 = vsub.f32 1.0, %v1320
        %v1323 = vsub.f32 1.0, %v1321
        %v1324 = vmul.f32 %v1314, %v1322
        %v1325 = vmul.f32 %v1315, %v1323
        %1326 = vst.msk [vmem:[#allocation3] sm:$0xff] %vm1226, %v1324
        %1327 = vst.msk [vmem:[#allocation3 + $0x8] sm:$0xff] %vm1226, %v1325
        %v1328 = vld [vmem:[%s328] sm:$0xff]
        %v1329 = vld [vmem:[%s328 + $0x8] sm:$0xff]
        %v1330 = vadd.f32 %v1328, %v1320
        %v1331 = vadd.f32 %v1329, %v1321
        %1332 = vst.msk [vmem:[%s339] sm:$0xff] %vm1226, %v1330
        %1333 = vst.msk [vmem:[%s339 + $0x8] sm:$0xff] %vm1226, %v1331
        %s1334 = sand.u32 %s162, 1
        %s1335 = scalar_lea.sflag [#allocation5], %s1334
        %s1336 = sand.u32 %s162, 1
        %s1337 = smul.addr %s1336, 32
        %s1338 = scalar_lea.vmem [#allocation4], %s1337
        %s1339 = smul.u32 2, %s25
        %p1340 = scmp.lt.s32.totalorder %s26, 3
        %s1341 = scalar_select %p1340, %s26, 3
        %p1342 = scmp.lt.s32.totalorder %s1339, 1
        %s1343 = scalar_select %p1342, %s1339, 1
        %s1344 = smul.addr %s1341, 2
        %s1345 = sadd.s32 %s1343, %s1344
        %s1346 = smul.addr %s1345, 8
        %s1347 = scalar_lea.vmem %s6, %s1346
        // Predicated region
        $region45: #{block_forward.4} parent=39 // pred_check
          %p1348 = pneg %p172
        $region46: #{block_forward.4} parent=39 // pred_check_branch
          %1350 = sbr.rel (%p1348) target = $region48
        $region47: #{block_forward.4} parent=39 // pred_region
          %s1351 = smul.u32 2, %s25
          %s1353 = ssub.s32 512, 512
          %1354 = vsyncadd %s1335, %s1353
          %s1355 = smul.addr %s1351, 4
          %s1356 = smul.addr %s26, 8
          %s1357 = sadd.s32 %s1355, %s1356
          %s1358 = smul.addr %s1357, 64
          %s1359 = scalar_lea.hbm %s5, %s1358
          %s1360 = sshll.u32 %s1338, 4
          %s1361 = int_to_ptr.vmem [resolvable:$true] %s1360
          %1366 = dma.vmem_to_hbm [thread:$0]  %s1361, 512, %s1359, %s1335, 64, 64, 4
        $region48: #{block_forward.4} parent=39 // pred_fallthru
          _
        // Predicated region
        $region49: #{block_forward.4} parent=39 // pred_check
          %p1367 = pneg %p200
        $region50: #{block_forward.4} parent=39 // pred_check_branch
          %1369 = sbr.rel (%p1367) target = $region52
        $region51: #{block_forward.4} parent=39 // pred_region
          %s1370 = smul.u32 2, %s25
        $region52: #{block_forward.4} parent=39 // pred_fallthru
          _
      $region40: #{block_forward.4} parent=5 // pred_fallthru
        _
      %p1371 = scmp.le.s32.totalorder 2, %s16
      // Predicated region
      $region53: #{block_forward.4} parent=5 // pred_check
        %p1372 = pneg %p1371
      $region54: #{block_forward.4} parent=5 // pred_check_branch
        %1374 = sbr.rel (%p1372) target = $region56
      $region55: #{block_forward.4} parent=5 // pred_region
        %s1375 = ssub.s32 %s16, 2
        // Predicated region
        $region57: #{block_forward.4} parent=55 // pred_check
          %p1376 = pneg %p178
        $region58: #{block_forward.4} parent=55 // pred_check_branch
          %1378 = sbr.rel (%p1376) target = $region60
        $region59: #{block_forward.4} parent=55 // pred_region
          %s1379 = sand.u32 %s163, 1
          %s1380 = scalar_lea.sflag [#allocation5], %s1379
          %s1381 = sand.u32 %s163, 1
          %s1382 = smul.addr %s1381, 32
          %s1383 = scalar_lea.vmem [#allocation4], %s1382
          %1384 = dma.done %s1380, 512
        $region60: #{block_forward.4} parent=55 // pred_fallthru
          _
        // Predicated region
        $region61: #{block_forward.4} parent=55 // pred_check
          %p1385 = pneg %p206
        $region62: #{block_forward.4} parent=55 // pred_check_branch
          %1387 = sbr.rel (%p1385) target = $region64
        $region63: #{block_forward.4} parent=55 // pred_region
          %s1388 = smul.u32 2, %s27
          %p1389 = scmp.lt.s32.totalorder %s28, 3
          %s1390 = scalar_select %p1389, %s28, 3
          %p1391 = scmp.lt.s32.totalorder %s1388, 1
          %s1392 = scalar_select %p1391, %s1388, 1
          %s1393 = smul.addr %s1390, 2
          %s1394 = sadd.s32 %s1392, %s1393
          %s1395 = smul.addr %s1394, 8
          %s1396 = scalar_lea.vmem %s6, %s1395
        $region64: #{block_forward.4} parent=55 // pred_fallthru
          _
      $region56: #{block_forward.4} parent=5 // pred_fallthru
        _
    $region6: #{block_forward.4} parent=1 // loop_footer
      %s20 = sadd.s32 1, %s16
    $region7: #{block_forward.4} parent=1 // loop_footer_branch
      %15 = sbr.rel target = $region3
    $region8: #{block_forward.4} parent=1 // loop_exit
      _
    %1397 = vsyncpa [#allocation5], 1
    %s1398 = scalar_lea.sflag [#allocation5], 1
    %1399 = vsyncpa %s1398, 1

</llo_original>
